<compile_context>
chip_gen: v5e
topology: v5e:2x2
jax: 0.10.0
libtpu: 0.0.40
codegen_flags: <defaults>
</compile_context>

<pallas_src>
import jax
import jax.numpy as jnp
from jax.experimental import pallas as pl
from jax.experimental.pallas import tpu as pltpu

EPS = 1e-5  # PyTorch BatchNorm2d default eps


def _round_up(x, m):
    return ((x + m - 1) // m) * m


def _tpu_budget():
    """(pixel-tile target, VMEM-limit cap) per TPU generation, safe fallback."""
    phys = 128 << 20
    try:
        info = pltpu.get_tpu_info()
        phys = int(getattr(info, "vmem_capacity_bytes", 0) or phys)
    except Exception:
        pass
    if phys >= (128 << 20):      # v5e / v6e: 128 MiB physical VMEM
        return 8192, 100 << 20
    return 4096, 48 << 20        # v7x: 64 MiB per TensorCore


def _choose_tile_p(total_p, tp_target, vmem_cap, vmem_need_fn):
    """>=4 grid steps when the problem allows, <=~10% padded rows, fits VMEM."""
    if total_p <= 512:
        return _round_up(total_p, 8)
    steps = max(4, pl.cdiv(total_p, tp_target))
    tile = _round_up(pl.cdiv(total_p, steps), 32)
    while steps < 64:                                 # cap padding waste
        padded = _round_up(total_p, tile)
        if padded - total_p <= 0.10 * total_p + 32:
            break
        steps += 1
        tile = _round_up(pl.cdiv(total_p, steps), 32)
    while tile > 256 and vmem_need_fn(tile) > vmem_cap:   # respect VMEM budget
        tile = _round_up(tile // 2, 32)
    return max(tile, 32)


def _make_kernel(n_main):
    def kernel(x_ref, idx_ref, w01_ref, b01_ref, wdc_ref, be2_ref,
               we3_ref, be3_ref, prelu_ref, o_ref):
        a1 = prelu_ref[0]
        a2 = prelu_ref[1]
        a_out = prelu_ref[2]

        x = x_ref[...]                                            # (TP, Cin)

        # ---- fused [main | extension-1x1] matmul (BN scales pre-folded) ----
        me = jnp.dot(x, w01_ref[...], preferred_element_type=jnp.float32)
        me = me + b01_ref[...]                                    # (TP, Cout_pad+Cinter)
        main = me[:, :n_main]
        # PReLU(a1) on the whole row: the main columns hit zero rows of wdc_ref,
        # so activating them is harmless and avoids an unaligned lane split.
        me_act = jnp.where(me > 0, me, a1 * me)

        # ---- ConvTranspose2d(k=2, s=2, p=0): matmul into 4 pos-major groups ----
        d = jnp.dot(me_act.astype(wdc_ref.dtype), wdc_ref[...],
                    preferred_element_type=jnp.float32)
        d = d + be2_ref[...]                                      # (TP, 4*Cinter)
        d = jnp.where(d > 0, d, a2 * d)

        # ---- final 1x1 conv via block-diagonal weight (Dropout2d = identity) ----
        ext = jnp.dot(d.astype(we3_ref.dtype), we3_ref[...],
                      preferred_element_type=jnp.float32)
        ext = ext + be3_ref[...]                                  # (TP, 4*Cout_pad)

        # ---- MaxUnpool2d(2): window-local 2-bit offset match ----
        # TODO(synk): exact only for indices produced by a paired MaxPool2d(2)
        # (the ENet use-case); arbitrary out-of-window indices would need a
        # general scatter.
        local = idx_ref[...].astype(jnp.int32)                    # (TP, Cout_pad), 0..3
        main_up = jnp.concatenate(
            [jnp.where(local == p, main, 0.0) for p in range(4)], axis=-1)

        # ---- combine + output PReLU, single lane-dense store ----
        out = main_up + ext
        out = jnp.where(out > 0, out, a_out * out)
        o_ref[...] = out.astype(o_ref.dtype)

    return kernel


def upsample_bottleneck_forward(x, max_indices, params, *, tile_p=None,
                                compute_dtype=jnp.bfloat16, out_dtype=None,
                                layout="nchw", indices_are_local=False):
    """Fused ENet Upsamplebottleneck forward (eval mode).

    x / max_indices layout: "nchw" (PyTorch default, (N,C,H,W)) or "nhwc"
    (fast path, (N,H,W,C); skips the channels-last HBM transpose passes).
    If indices_are_local, max_indices already holds window-local offsets (0..3)
    per output channel (e.g. emitted by a paired MaxPool kernel).
    out_dtype defaults to compute_dtype (bf16 fast path).

    params: dict with w_main (Cout,Cin,1,1), w_e1 (Cinter,Cin,1,1),
            w_dc (Cinter,Cinter,2,2), w_e3 (Cout,Cinter,1,1),
            bn_main/bn_e1/bn_e2/bn_e3 = (gamma, beta, mean, var),
            a1/a2/a_out PReLU scalars.
    """
    if layout == "nchw":
        N, Cin, H, W = x.shape
    elif layout == "nhwc":
        N, H, W, Cin = x.shape
    else:
        raise ValueError(f"unknown layout {layout!r}")
    Cout = params['w_main'].shape[0]
    Cinter = params['w_e1'].shape[0]
    if out_dtype is None:
        out_dtype = compute_dtype
    total_p = N * H * W

    # Lane-dense output: pad Cout so the (P, 4*Cout_pad) store is a multiple of
    # 128 lanes (unmasked vst, wide writeback DMA). Padded channels are exact
    # zeros (zero weights + zero biases) and are sliced off below.
    Cout_pad = _round_up(Cout, 32)

    # ---- fold BN (eval mode) into weight scales / biases ----
    def fold_bn(gamma, beta, mean, var):
        s = gamma / jnp.sqrt(var + EPS)
        b = beta - mean * s
        return s.astype(jnp.float32), b.astype(jnp.float32)

    s_main, b_main = fold_bn(*params['bn_main'])
    s_e1, b_e1 = fold_bn(*params['bn_e1'])
    s_e2, b_e2 = fold_bn(*params['bn_e2'])
    s_e3, b_e3 = fold_bn(*params['bn_e3'])

    cpad = Cout_pad - Cout

    # BN scales folded directly into the weights; only biases go to the kernel.
    w_main = params['w_main'][:, :, 0, 0].T * s_main[None, :]        # (Cin, Cout)
    w_main = jnp.pad(w_main, ((0, 0), (0, cpad)))                    # (Cin, Cout_pad)
    b_main_p = jnp.pad(b_main, (0, cpad))
    w_e1 = params['w_e1'][:, :, 0, 0].T * s_e1[None, :]              # (Cin, Cinter)
    w01 = jnp.concatenate([w_main, w_e1], axis=1)                    # (Cin, Cout_pad+Cinter)
    b01 = jnp.concatenate([b_main_p, b_e1]).reshape(1, Cout_pad + Cinter)

    # ConvTranspose2d weight (in,out,kh,kw) -> (in, pos*Cinter + out), pos = kh*2+kw,
    # with Cout_pad leading zero rows so the fused [main|e] activation can feed it.
    w_dc = jnp.transpose(params['w_dc'], (0, 2, 3, 1)).reshape(Cinter, 4 * Cinter)
    w_dc = w_dc * jnp.tile(s_e2, 4)[None, :]
    w_dc_big = jnp.concatenate(
        [jnp.zeros((Cout_pad, 4 * Cinter), jnp.float32), w_dc], axis=0)
    b_e2t = jnp.tile(b_e2, 4).reshape(1, 4 * Cinter)

    # Final 1x1 conv as a block-diagonal (4*Cinter, 4*Cout_pad) matmul.
    w_e3 = params['w_e3'][:, :, 0, 0].T * s_e3[None, :]              # (Cinter, Cout)
    w_e3 = jnp.pad(w_e3, ((0, 0), (0, cpad)))                        # (Cinter, Cout_pad)
    w_e3_bd = jnp.kron(jnp.eye(4, dtype=jnp.float32), w_e3)          # (4*Cinter, 4*Cout_pad)
    b_e3t = jnp.tile(jnp.pad(b_e3, (0, cpad)), 4).reshape(1, 4 * Cout_pad)

    prelu = jnp.array([params['a1'], params['a2'], params['a_out']], jnp.float32)

    w01 = w01.astype(compute_dtype)
    w_dc_big = w_dc_big.astype(compute_dtype)
    w_e3_bd = w_e3_bd.astype(compute_dtype)

    cbytes = jnp.dtype(compute_dtype).itemsize
    obytes = jnp.dtype(out_dtype).itemsize
    weight_bytes = ((w01.size + w_dc_big.size + w_e3_bd.size) * cbytes
                    + (b01.size + b_e2t.size + b_e3t.size) * 4)

    def vmem_need(tp):
        # double-buffered x / idx / out streams
        streams = 2 * tp * (Cin * cbytes + Cout_pad * 1 + 4 * Cout_pad * obytes)
        # f32 intermediates materialized per tile (me, me_act, d, ext, main_up, out)
        interm = tp * 4 * (2 * (Cout_pad + Cinter) + 2 * 4 * Cinter + 3 * 4 * Cout_pad)
        return streams + interm + 2 * weight_bytes + (2 << 20)

    tp_target, vmem_cap = _tpu_budget()
    if tile_p is None:
        tile_p = _choose_tile_p(total_p, tp_target, vmem_cap, vmem_need)
    tile_p = _round_up(int(tile_p), 32) if total_p > 512 else _round_up(int(tile_p), 8)
    padded_p = _round_up(total_p, tile_p)
    grid_p = padded_p // tile_p
    vmem_limit = int(min(max(vmem_need(tile_p), 16 << 20), vmem_cap))

    # ---- activations -> (pixels, channels); bf16 compute halves the x read ----
    if layout == "nchw":
        x_mat = jnp.transpose(x, (0, 2, 3, 1)).reshape(total_p, Cin)
    else:
        x_mat = x.reshape(total_p, Cin)
    x_mat = x_mat.astype(compute_dtype)

    # MaxUnpool2d(2) flat index -> window-local 2-bit offset (0..3), streamed as
    # int8 (1 B/channel/pixel, the minimum HBM traffic for an NCHW/NHWC ingress).
    if indices_are_local:
        local = max_indices.astype(jnp.int8)
    else:
        local = (((max_indices // (2 * W)) % 2) * 2 + (max_indices % 2)).astype(jnp.int8)
    if layout == "nchw":
        idx_mat = jnp.transpose(local, (0, 2, 3, 1)).reshape(total_p, Cout)
    else:
        idx_mat = local.reshape(total_p, Cout)
    if cpad:
        idx_mat = jnp.pad(idx_mat, ((0, 0), (0, cpad)))

    if padded_p != total_p:
        pad = padded_p - total_p
        x_mat = jnp.pad(x_mat, ((0, pad), (0, 0)))
        idx_mat = jnp.pad(idx_mat, ((0, pad), (0, 0)))

    def full2d(arr):
        return pl.BlockSpec(arr.shape, lambda i: (0, 0))

    kernel = _make_kernel(Cout_pad)
    out2d = pl.pallas_call(
        kernel,
        out_shape=jax.ShapeDtypeStruct((padded_p, 4 * Cout_pad), out_dtype),
        grid=(grid_p,),
        in_specs=[
            pl.BlockSpec((tile_p, Cin), lambda i: (i, 0)),
            pl.BlockSpec((tile_p, Cout_pad), lambda i: (i, 0)),
            full2d(w01), full2d(b01),
            full2d(w_dc_big), full2d(b_e2t),
            full2d(w_e3_bd), full2d(b_e3t),
            pl.BlockSpec(memory_space=pltpu.MemorySpace.SMEM),
        ],
        out_specs=pl.BlockSpec((tile_p, 4 * Cout_pad), lambda i: (i, 0)),
        compiler_params=pltpu.CompilerParams(
            dimension_semantics=("parallel",),
            vmem_limit_bytes=vmem_limit),
    )(x_mat, idx_mat, w01, b01, w_dc_big, b_e2t, w_e3_bd, b_e3t, prelu)

    # (P, 4*Cout_pad) pos-major -> spatial; pos = a*2 + b (a=row, b=col offset)
    out6 = out2d[:total_p].reshape(N, H, W, 2, 2, Cout_pad)[..., :Cout]
    if layout == "nchw":
        out = jnp.transpose(out6, (0, 5, 1, 3, 2, 4)).reshape(N, Cout, 2 * H, 2 * W)
    else:
        out = jnp.transpose(out6, (0, 1, 3, 2, 4, 5)).reshape(N, 2 * H, 2 * W, Cout)
    return out


def reference_forward(x, idx, p):
    """Pure-JAX reference mirroring PyTorch eval-mode forward (NCHW)."""
    N, Cin, H, W = x.shape

    def bn(y, gamma, beta, mean, var):
        inv = 1.0 / jnp.sqrt(var + EPS)
        return ((y - mean[None, :, None, None]) * inv[None, :, None, None]
                * gamma[None, :, None, None] + beta[None, :, None, None])

    def prelu(y, a):
        return jnp.where(y > 0, y, a * y)

    def conv1x1(y, w):
        return jnp.einsum('nchw,oc->nohw', y, w[:, :, 0, 0])

    main = bn(conv1x1(x, p['w_main']), *p['bn_main'])
    Cout = main.shape[1]
    main_flat = main.reshape(N, Cout, H * W)
    idx_flat = idx.reshape(N, Cout, H * W)
    plane = jnp.zeros((N, Cout, 4 * H * W), main.dtype)
    plane = jax.vmap(jax.vmap(lambda o, i, v: o.at[i].set(v)))(plane, idx_flat, main_flat)
    main_up = plane.reshape(N, Cout, 2 * H, 2 * W)

    e = prelu(bn(conv1x1(x, p['w_e1']), *p['bn_e1']), p['a1'])
    Cinter = e.shape[1]
    d = jnp.einsum('nchw,coab->nohawb', e, p['w_dc']).reshape(N, Cinter, 2 * H, 2 * W)
    d = prelu(bn(d, *p['bn_e2']), p['a2'])
    ext = bn(conv1x1(d, p['w_e3']), *p['bn_e3'])
    return prelu(main_up + ext, p['a_out'])


if __name__ == "__main__":
    N, Cin, Cout, Cinter = 2, 4, 8, 4
    H = W = 16  # deconv kernel_size=2, stride=2, padding=0 -> 32x32 output

    # ---- deterministic parameter init (synthetic; shapes from module __init__) ----
    ks = jax.random.split(jax.random.PRNGKey(42), 8)

    def bn_params(k, c):
        k1, k2, k3, k4 = jax.random.split(k, 4)
        gamma = jax.random.uniform(k1, (c,), jnp.float32, 0.5, 1.5)
        beta = jax.random.normal(k2, (c,), jnp.float32) * 0.1
        mean = jax.random.normal(k3, (c,), jnp.float32) * 0.1
        var = jax.random.uniform(k4, (c,), jnp.float32, 0.5, 1.5)
        return (gamma, beta, mean, var)

    params = {
        'w_main': jax.random.normal(ks[0], (Cout, Cin, 1, 1), jnp.float32) * 0.3,
        'bn_main': bn_params(ks[1], Cout),
        'w_e1': jax.random.normal(ks[2], (Cinter, Cin, 1, 1), jnp.float32) * 0.3,
        'bn_e1': bn_params(ks[3], Cinter),
        'w_dc': jax.random.normal(ks[4], (Cinter, Cinter, 2, 2), jnp.float32) * 0.3,
        'bn_e2': bn_params(ks[5], Cinter),
        'w_e3': jax.random.normal(ks[6], (Cout, Cinter, 1, 1), jnp.float32) * 0.3,
        'bn_e3': bn_params(ks[7], Cout),
        'a1': 0.25, 'a2': 0.25, 'a_out': 0.25,  # PReLU (num_parameters=1) weights
    }

    # ---- deterministic example inputs ----
    kx, ki = jax.random.split(jax.random.PRNGKey(0))
    x = jax.random.normal(kx, (N, Cin, H, W), jnp.float32)
    # max_indices as produced by MaxPool2d(2, return_indices=True): flat index into
    # the (2H, 2W) plane, within each 2x2 window.
    off = jax.random.randint(ki, (N, Cout, H, W), 0, 4)
    hh = jnp.arange(H)[None, None, :, None]
    ww = jnp.arange(W)[None, None, None, :]
    max_indices = ((2 * hh + off // 2) * (2 * W) + (2 * ww + off % 2)).astype(jnp.int32)

    ref = reference_forward(x, max_indices, params)

    # 1) f32 compute path, NCHW I/O: bit-faithful to the eval-mode module.
    out_f32 = jax.block_until_ready(
        upsample_bottleneck_forward(x, max_indices, params,
                                    compute_dtype=jnp.float32))
    assert out_f32.shape == (N, Cout, 2 * H, 2 * W)
    assert bool(jnp.allclose(out_f32, ref, atol=1e-3, rtol=1e-3)), \
        float(jnp.max(jnp.abs(out_f32 - ref)))

    # 2) bf16 matmul + bf16 output fast path (defaults), forced multi-step grid;
    #    loose tolerance reflects bf16 MXU inputs and bf16 output rounding.
    out_bf16 = jax.block_until_ready(
        upsample_bottleneck_forward(x, max_indices, params, tile_p=128))
    assert out_bf16.shape == (N, Cout, 2 * H, 2 * W)
    assert bool(jnp.allclose(out_bf16.astype(jnp.float32), ref, atol=2e-1, rtol=1e-1)), \
        float(jnp.max(jnp.abs(out_bf16.astype(jnp.float32) - ref)))

    # 3) channels-last fast path with precomputed int8 window offsets (no
    #    NCHW<->pixel-major HBM passes around the kernel).
    x_nhwc = jnp.transpose(x, (0, 2, 3, 1))
    idx_nhwc = jnp.transpose(max_indices, (0, 2, 3, 1))
    local_nhwc = (((idx_nhwc // (2 * W)) % 2) * 2 + (idx_nhwc % 2)).astype(jnp.int8)
    out_nhwc = jax.block_until_ready(
        upsample_bottleneck_forward(x_nhwc, local_nhwc, params,
                                    compute_dtype=jnp.float32,
                                    layout="nhwc", indices_are_local=True))
    assert out_nhwc.shape == (N, 2 * H, 2 * W, Cout)
    out_nhwc_nchw = jnp.transpose(out_nhwc, (0, 3, 1, 2))
    assert bool(jnp.allclose(out_nhwc_nchw, ref, atol=1e-3, rtol=1e-3)), \
        float(jnp.max(jnp.abs(out_nhwc_nchw - ref)))

    print("KERNEL_OK")
</pallas_src>

<mosaic_0001>
module attributes {stable_mosaic.version = 11 : i64} {
  func.func @kernel(%arg0: i32, %arg1: memref<512x4xf32, #tpu.memory_space<vmem>>, %arg2: memref<512x32xi8, #tpu.memory_space<vmem>>, %arg3: memref<4x36xf32, #tpu.memory_space<vmem>>, %arg4: memref<1x36xf32, #tpu.memory_space<vmem>>, %arg5: memref<36x16xf32, #tpu.memory_space<vmem>>, %arg6: memref<1x16xf32, #tpu.memory_space<vmem>>, %arg7: memref<16x128xf32, #tpu.memory_space<vmem>>, %arg8: memref<1x128xf32, #tpu.memory_space<vmem>>, %arg9: memref<3xf32, #tpu.memory_space<smem>>, %arg10: memref<512x128xf32, #tpu.memory_space<vmem>>) attributes {dimension_semantics = [#tpu.dimension_semantics<parallel>], iteration_bounds = array<i64: 1>, scalar_prefetch = 0 : i64, scratch_operands = 0 : i64, tpu.core_type = #tpu.core_type<tc>, window_params = [{transform_indices = @transform_0, window_bounds = array<i64: 512, 4>}, {transform_indices = @transform_1, window_bounds = array<i64: 512, 32>}, {pipeline_mode = #tpu.pipeline_mode<synchronous>, transform_indices = @transform_2, window_bounds = array<i64: 4, 36>}, {pipeline_mode = #tpu.pipeline_mode<synchronous>, transform_indices = @transform_3, window_bounds = array<i64: 1, 36>}, {pipeline_mode = #tpu.pipeline_mode<synchronous>, transform_indices = @transform_4, window_bounds = array<i64: 36, 16>}, {pipeline_mode = #tpu.pipeline_mode<synchronous>, transform_indices = @transform_5, window_bounds = array<i64: 1, 16>}, {pipeline_mode = #tpu.pipeline_mode<synchronous>, transform_indices = @transform_6, window_bounds = array<i64: 16, 128>}, {pipeline_mode = #tpu.pipeline_mode<synchronous>, transform_indices = @transform_7, window_bounds = array<i64: 1, 128>}, {transform_indices = @transform_8, window_bounds = array<i64: 3>}, {transform_indices = @transform_9, window_bounds = array<i64: 512, 128>}]} {
    %c0 = arith.constant 0 : index
    %0 = memref.load %arg9[%c0] : memref<3xf32, #tpu.memory_space<smem>>
    %c1 = arith.constant 1 : index
    %1 = memref.load %arg9[%c1] : memref<3xf32, #tpu.memory_space<smem>>
    %c2 = arith.constant 2 : index
    %2 = memref.load %arg9[%c2] : memref<3xf32, #tpu.memory_space<smem>>
    %c0_0 = arith.constant 0 : index
    %c0_1 = arith.constant 0 : index
    %3 = vector.load %arg1[%c0_0, %c0_1] : memref<512x4xf32, #tpu.memory_space<vmem>>, vector<512x4xf32>
    %c0_2 = arith.constant 0 : index
    %c0_3 = arith.constant 0 : index
    %4 = vector.load %arg3[%c0_2, %c0_3] : memref<4x36xf32, #tpu.memory_space<vmem>>, vector<4x36xf32>
    %cst = arith.constant dense<0.000000e+00> : vector<512x36xf32>
    %5 = tpu.matmul %3, %4, %cst {dimension_numbers = #tpu.dot_dimension_numbers<[1], [0], [0], [1], [0, 0, 1, 1], [], []>} : vector<512x4xf32>, vector<4x36xf32>, vector<512x36xf32> -> vector<512x36xf32>
    %c0_4 = arith.constant 0 : index
    %c0_5 = arith.constant 0 : index
    %6 = vector.load %arg4[%c0_4, %c0_5] : memref<1x36xf32, #tpu.memory_space<vmem>>, vector<1x36xf32>
    %7 = vector.broadcast %6 : vector<1x36xf32> to vector<512x36xf32>
    %8 = arith.addf %5, %7 : vector<512x36xf32>
    %9 = vector.extract_strided_slice %8 {offsets = [0, 0], sizes = [512, 32], strides = [1, 1]} : vector<512x36xf32> to vector<512x32xf32>
    %cst_6 = arith.constant 0.000000e+00 : f32
    %10 = vector.broadcast %cst_6 : f32 to vector<512x36xf32>
    %11 = arith.cmpf ogt, %8, %10 : vector<512x36xf32>
    %12 = vector.broadcast %0 : f32 to vector<512x36xf32>
    %13 = arith.mulf %12, %8 : vector<512x36xf32>
    %14 = arith.select %11, %8, %13 : vector<512x36xi1>, vector<512x36xf32>
    %c0_7 = arith.constant 0 : index
    %c0_8 = arith.constant 0 : index
    %15 = vector.load %arg5[%c0_7, %c0_8] : memref<36x16xf32, #tpu.memory_space<vmem>>, vector<36x16xf32>
    %cst_9 = arith.constant dense<0.000000e+00> : vector<512x16xf32>
    %16 = tpu.matmul %14, %15, %cst_9 {dimension_numbers = #tpu.dot_dimension_numbers<[1], [0], [0], [1], [0, 0, 1, 1], [], []>} : vector<512x36xf32>, vector<36x16xf32>, vector<512x16xf32> -> vector<512x16xf32>
    %c0_10 = arith.constant 0 : index
    %c0_11 = arith.constant 0 : index
    %17 = vector.load %arg6[%c0_10, %c0_11] : memref<1x16xf32, #tpu.memory_space<vmem>>, vector<1x16xf32>
    %18 = vector.broadcast %17 : vector<1x16xf32> to vector<512x16xf32>
    %19 = arith.addf %16, %18 : vector<512x16xf32>
    %cst_12 = arith.constant 0.000000e+00 : f32
    %20 = vector.broadcast %cst_12 : f32 to vector<512x16xf32>
    %21 = arith.cmpf ogt, %19, %20 : vector<512x16xf32>
    %22 = vector.broadcast %1 : f32 to vector<512x16xf32>
    %23 = arith.mulf %22, %19 : vector<512x16xf32>
    %24 = arith.select %21, %19, %23 : vector<512x16xi1>, vector<512x16xf32>
    %c0_13 = arith.constant 0 : index
    %c0_14 = arith.constant 0 : index
    %25 = vector.load %arg7[%c0_13, %c0_14] : memref<16x128xf32, #tpu.memory_space<vmem>>, vector<16x128xf32>
    %cst_15 = arith.constant dense<0.000000e+00> : vector<512x128xf32>
    %26 = tpu.matmul %24, %25, %cst_15 {dimension_numbers = #tpu.dot_dimension_numbers<[1], [0], [0], [1], [0, 0, 1, 1], [], []>} : vector<512x16xf32>, vector<16x128xf32>, vector<512x128xf32> -> vector<512x128xf32>
    %c0_16 = arith.constant 0 : index
    %c0_17 = arith.constant 0 : index
    %27 = vector.load %arg8[%c0_16, %c0_17] : memref<1x128xf32, #tpu.memory_space<vmem>>, vector<1x128xf32>
    %28 = vector.broadcast %27 : vector<1x128xf32> to vector<512x128xf32>
    %29 = arith.addf %26, %28 : vector<512x128xf32>
    %c0_18 = arith.constant 0 : index
    %c0_19 = arith.constant 0 : index
    %30 = vector.load %arg2[%c0_18, %c0_19] : memref<512x32xi8, #tpu.memory_space<vmem>>, vector<512x32xi8>
    %31 = arith.extsi %30 : vector<512x32xi8> to vector<512x32xi32>
    %c0_i32 = arith.constant 0 : i32
    %32 = vector.broadcast %c0_i32 : i32 to vector<512x32xi32>
    %33 = arith.cmpi eq, %31, %32 : vector<512x32xi32>
    %cst_20 = arith.constant 0.000000e+00 : f32
    %34 = vector.broadcast %cst_20 : f32 to vector<512x32xf32>
    %35 = arith.select %33, %9, %34 : vector<512x32xi1>, vector<512x32xf32>
    %c1_i32 = arith.constant 1 : i32
    %36 = vector.broadcast %c1_i32 : i32 to vector<512x32xi32>
    %37 = arith.cmpi eq, %31, %36 : vector<512x32xi32>
    %cst_21 = arith.constant 0.000000e+00 : f32
    %38 = vector.broadcast %cst_21 : f32 to vector<512x32xf32>
    %39 = arith.select %37, %9, %38 : vector<512x32xi1>, vector<512x32xf32>
    %c2_i32 = arith.constant 2 : i32
    %40 = vector.broadcast %c2_i32 : i32 to vector<512x32xi32>
    %41 = arith.cmpi eq, %31, %40 : vector<512x32xi32>
    %cst_22 = arith.constant 0.000000e+00 : f32
    %42 = vector.broadcast %cst_22 : f32 to vector<512x32xf32>
    %43 = arith.select %41, %9, %42 : vector<512x32xi1>, vector<512x32xf32>
    %c3_i32 = arith.constant 3 : i32
    %44 = vector.broadcast %c3_i32 : i32 to vector<512x32xi32>
    %45 = arith.cmpi eq, %31, %44 : vector<512x32xi32>
    %cst_23 = arith.constant 0.000000e+00 : f32
    %46 = vector.broadcast %cst_23 : f32 to vector<512x32xf32>
    %47 = arith.select %45, %9, %46 : vector<512x32xi1>, vector<512x32xf32>
    %48 = tpu.concatenate %35, %39, %43, %47 in 1 : vector<512x32xf32>, vector<512x32xf32>, vector<512x32xf32>, vector<512x32xf32> -> vector<512x128xf32>
    %49 = arith.addf %48, %29 : vector<512x128xf32>
    %cst_24 = arith.constant 0.000000e+00 : f32
    %50 = vector.broadcast %cst_24 : f32 to vector<512x128xf32>
    %51 = arith.cmpf ogt, %49, %50 : vector<512x128xf32>
    %52 = vector.broadcast %2 : f32 to vector<512x128xf32>
    %53 = arith.mulf %52, %49 : vector<512x128xf32>
    %54 = arith.select %51, %49, %53 : vector<512x128xi1>, vector<512x128xf32>
    %c0_25 = arith.constant 0 : index
    %c0_26 = arith.constant 0 : index
    %55 = vector.load %arg10[%c0_25, %c0_26] : memref<512x128xf32, #tpu.memory_space<vmem>>, vector<512x128xf32>
    tpu.vector_store %arg10[%c0_25, %c0_26], %54 {strides = array<i32>} : memref<512x128xf32, #tpu.memory_space<vmem>>, vector<512x128xf32>,
    return
  }
  func.func @transform_0(%arg0: i32) -> (i32, i32) {
    %c0_i32 = arith.constant 0 : i32
    %c0_i32_0 = arith.constant 0 : i32
    return %arg0, %c0_i32 : i32, i32
  }
  func.func @transform_1(%arg0: i32) -> (i32, i32) {
    %c0_i32 = arith.constant 0 : i32
    %c0_i32_0 = arith.constant 0 : i32
    return %arg0, %c0_i32 : i32, i32
  }
  func.func @transform_2(%arg0: i32) -> (i32, i32) {
    %c0_i32 = arith.constant 0 : i32
    %c0_i32_0 = arith.constant 0 : i32
    %c0_i32_1 = arith.constant 0 : i32
    return %c0_i32, %c0_i32_0 : i32, i32
  }
  func.func @transform_3(%arg0: i32) -> (i32, i32) {
    %c0_i32 = arith.constant 0 : i32
    %c0_i32_0 = arith.constant 0 : i32
    %c0_i32_1 = arith.constant 0 : i32
    return %c0_i32, %c0_i32_0 : i32, i32
  }
  func.func @transform_4(%arg0: i32) -> (i32, i32) {
    %c0_i32 = arith.constant 0 : i32
    %c0_i32_0 = arith.constant 0 : i32
    %c0_i32_1 = arith.constant 0 : i32
    return %c0_i32, %c0_i32_0 : i32, i32
  }
  func.func @transform_5(%arg0: i32) -> (i32, i32) {
    %c0_i32 = arith.constant 0 : i32
    %c0_i32_0 = arith.constant 0 : i32
    %c0_i32_1 = arith.constant 0 : i32
    return %c0_i32, %c0_i32_0 : i32, i32
  }
  func.func @transform_6(%arg0: i32) -> (i32, i32) {
    %c0_i32 = arith.constant 0 : i32
    %c0_i32_0 = arith.constant 0 : i32
    %c0_i32_1 = arith.constant 0 : i32
    return %c0_i32, %c0_i32_0 : i32, i32
  }
  func.func @transform_7(%arg0: i32) -> (i32, i32) {
    %c0_i32 = arith.constant 0 : i32
    %c0_i32_0 = arith.constant 0 : i32
    %c0_i32_1 = arith.constant 0 : i32
    return %c0_i32, %c0_i32_0 : i32, i32
  }
  func.func @transform_8(%arg0: i32) -> i32 {
    %c0_i32 = arith.constant 0 : i32
    %c0_i32_0 = arith.constant 0 : i32
    return %c0_i32 : i32
  }
  func.func @transform_9(%arg0: i32) -> (i32, i32) {
    %c0_i32 = arith.constant 0 : i32
    %c0_i32_0 = arith.constant 0 : i32
    return %arg0, %c0_i32 : i32, i32
  }
}

</mosaic_0001>

<llo_original>
// kernel: tpu_custom_call.1
$region0: #{tpu_custom_call.1}
  #allocation0 [shape = 'u32[]', space=smem, size = 0x4, offset = 0x4, fixed_abs, tag = 'smem constant byte address 0x4 - core index']
  #allocation1 [shape = 'u32[72,128]{1,0:T(1,128)}', space=vmem, size = 0x9000, scoped, tag = 'internal scratch']
  %s0 = inlined_call_operand.vmem [shape: f32[512,4], index: 0, kind: input, shape index: {}]
  %s1 = inlined_call_operand.vmem [shape: s8[512,32], index: 1, kind: input, shape index: {}]
  %s2 = inlined_call_operand.vmem [shape: f32[4,36], index: 2, kind: input, shape index: {}]
  %s3 = inlined_call_operand.vmem [shape: f32[1,36], index: 3, kind: input, shape index: {}]
  %s4 = inlined_call_operand.vmem [shape: f32[36,16], index: 4, kind: input, shape index: {}]
  %s5 = inlined_call_operand.vmem [shape: f32[1,16], index: 5, kind: input, shape index: {}]
  %s6 = inlined_call_operand.vmem [shape: f32[16,128], index: 6, kind: input, shape index: {}]
  %s7 = inlined_call_operand.vmem [shape: f32[1,128], index: 7, kind: input, shape index: {}]
  %s8 = inlined_call_operand.vmem [shape: f32[3], index: 8, kind: input, shape index: {}]
  %s9 = inlined_call_operand.hbm [shape: f32[512,128], index: 9, kind: output, shape index: {}]
  %s10 = sld [smem:[#allocation0]]
  $region50: #{tpu_custom_call.1} parent=0
    _
  %s12 = ssub.s32 1, %s10
  %s13 = scalar_select 0, %s12, %s10
  $region1: #{tpu_custom_call.1} parent=0
    #allocation2 [shape = 'u8[512]{0}', space=smem, size = 0x200, scoped, tag = 'input window, operand 8, single buffered']
    #allocation3 [shape = 's32[1]{0}', space=sflag, size = 0x4, scoped, tag = 'scoped memory for tpu_custom_call.1']
    #allocation4 [shape = 's32[1]{0}', space=sflag, size = 0x4, scoped, tag = 'scoped memory for tpu_custom_call.1']
    #allocation5 [shape = 'u8[262144]{0}', space=vmem, size = 0x40000, scoped, tag = 'output window, operand 0, single buffered']
    %14 = vsyncpa [#allocation4], 0
    %15 = vsyncpa [#allocation3], 0
    // Predicated region
    $region2: #{tpu_custom_call.1} parent=1 // pred_check
      _
    $region3: #{tpu_custom_call.1} parent=1 // pred_check_branch
      %17 = sbr.rel (0) target = $region5
    $region4: #{tpu_custom_call.1} parent=1 // pred_region
      _
    $region5: #{tpu_custom_call.1} parent=1 // pred_fallthru
      _
    // Predicated region
    $region6: #{tpu_custom_call.1} parent=1 // pred_check
      _
    $region7: #{tpu_custom_call.1} parent=1 // pred_check_branch
      %19 = sbr.rel (0) target = $region9
    $region8: #{tpu_custom_call.1} parent=1 // pred_region
      _
    $region9: #{tpu_custom_call.1} parent=1 // pred_fallthru
      _
    // Predicated region
    $region10: #{tpu_custom_call.1} parent=1 // pred_check
      _
    $region11: #{tpu_custom_call.1} parent=1 // pred_check_branch
      %21 = sbr.rel (0) target = $region13
    $region12: #{tpu_custom_call.1} parent=1 // pred_region
      _
    $region13: #{tpu_custom_call.1} parent=1 // pred_fallthru
      _
    // Predicated region
    $region14: #{tpu_custom_call.1} parent=1 // pred_check
      _
    $region15: #{tpu_custom_call.1} parent=1 // pred_check_branch
      %23 = sbr.rel (0) target = $region17
    $region16: #{tpu_custom_call.1} parent=1 // pred_region
      _
    $region17: #{tpu_custom_call.1} parent=1 // pred_fallthru
      _
    // Predicated region
    $region18: #{tpu_custom_call.1} parent=1 // pred_check
      _
    $region19: #{tpu_custom_call.1} parent=1 // pred_check_branch
      %25 = sbr.rel (0) target = $region21
    $region20: #{tpu_custom_call.1} parent=1 // pred_region
      _
    $region21: #{tpu_custom_call.1} parent=1 // pred_fallthru
      _
    // Predicated region
    $region22: #{tpu_custom_call.1} parent=1 // pred_check
      _
    $region23: #{tpu_custom_call.1} parent=1 // pred_check_branch
      %27 = sbr.rel (0) target = $region25
    $region24: #{tpu_custom_call.1} parent=1 // pred_region
      _
    $region25: #{tpu_custom_call.1} parent=1 // pred_fallthru
      _
    // Predicated region
    $region26: #{tpu_custom_call.1} parent=1 // pred_check
      _
    $region27: #{tpu_custom_call.1} parent=1 // pred_check_branch
      %29 = sbr.rel (0) target = $region29
    $region28: #{tpu_custom_call.1} parent=1 // pred_region
      _
    $region29: #{tpu_custom_call.1} parent=1 // pred_fallthru
      _
    // Predicated region
    $region30: #{tpu_custom_call.1} parent=1 // pred_check
      _
    $region31: #{tpu_custom_call.1} parent=1 // pred_check_branch
      %31 = sbr.rel (0) target = $region33
    $region32: #{tpu_custom_call.1} parent=1 // pred_region
      _
    $region33: #{tpu_custom_call.1} parent=1 // pred_fallthru
      _
    // Predicated region
    $region34: #{tpu_custom_call.1} parent=1 // pred_check
      _
    $region35: #{tpu_custom_call.1} parent=1 // pred_check_branch
      %33 = sbr.rel (0) target = $region37
    $region36: #{tpu_custom_call.1} parent=1 // pred_region
      %35 = vsyncadd [#allocation4], 0
      %s37 = sshll.u32 %s8, 4
      %s38 = int_to_ptr.vmem [resolvable:$true] %s37
      %40 = dma.vmem_to_smem %s38, 16, [#allocation2], [#allocation4]
    $region37: #{tpu_custom_call.1} parent=1 // pred_fallthru
      _
    // Predicated region
    $region38: #{tpu_custom_call.1} parent=1 // pred_check
      _
    $region39: #{tpu_custom_call.1} parent=1 // pred_check_branch
      %42 = sbr.rel (0) target = $region41
    $region40: #{tpu_custom_call.1} parent=1 // pred_region
      %44 = dma.done [#allocation4], 16
    $region41: #{tpu_custom_call.1} parent=1 // pred_fallthru
      _
    %45 = sfence
    %s46 = sld [smem:[#allocation2]]
    %s47 = sld [smem:[#allocation2 + $0x1]]
    %s48 = sld [smem:[#allocation2 + $0x2]]
    %v49 = vld [vmem:[%s0] sm:$0xff]
    %v50 = vld [vmem:[%s0 + $0x8] sm:$0xff]
    %v51 = vld [vmem:[%s0 + $0x10] sm:$0xff]
    %v52 = vld [vmem:[%s0 + $0x18] sm:$0xff]
    %v53 = vld [vmem:[%s0 + $0x20] sm:$0xff]
    %v54 = vld [vmem:[%s0 + $0x28] sm:$0xff]
    %v55 = vld [vmem:[%s0 + $0x30] sm:$0xff]
    %v56 = vld [vmem:[%s0 + $0x38] sm:$0xff]
    %v57 = vld [vmem:[%s0 + $0x40] sm:$0xff]
    %v58 = vld [vmem:[%s0 + $0x48] sm:$0xff]
    %v59 = vld [vmem:[%s0 + $0x50] sm:$0xff]
    %v60 = vld [vmem:[%s0 + $0x58] sm:$0xff]
    %v61 = vld [vmem:[%s0 + $0x60] sm:$0xff]
    %v62 = vld [vmem:[%s0 + $0x68] sm:$0xff]
    %v63 = vld [vmem:[%s0 + $0x70] sm:$0xff]
    %v64 = vld [vmem:[%s0 + $0x78] sm:$0xff]
    %v65 = vld [vmem:[%s0 + $0x80] sm:$0xff]
    %v66 = vld [vmem:[%s0 + $0x88] sm:$0xff]
    %v67 = vld [vmem:[%s0 + $0x90] sm:$0xff]
    %v68 = vld [vmem:[%s0 + $0x98] sm:$0xff]
    %v69 = vld [vmem:[%s0 + $0xa0] sm:$0xff]
    %v70 = vld [vmem:[%s0 + $0xa8] sm:$0xff]
    %v71 = vld [vmem:[%s0 + $0xb0] sm:$0xff]
    %v72 = vld [vmem:[%s0 + $0xb8] sm:$0xff]
    %v73 = vld [vmem:[%s0 + $0xc0] sm:$0xff]
    %v74 = vld [vmem:[%s0 + $0xc8] sm:$0xff]
    %v75 = vld [vmem:[%s0 + $0xd0] sm:$0xff]
    %v76 = vld [vmem:[%s0 + $0xd8] sm:$0xff]
    %v77 = vld [vmem:[%s0 + $0xe0] sm:$0xff]
    %v78 = vld [vmem:[%s0 + $0xe8] sm:$0xff]
    %v79 = vld [vmem:[%s0 + $0xf0] sm:$0xff]
    %v80 = vld [vmem:[%s0 + $0xf8] sm:$0xff]
    %v81 = vld [vmem:[%s0 + $0x100] sm:$0xff]
    %v82 = vld [vmem:[%s0 + $0x108] sm:$0xff]
    %v83 = vld [vmem:[%s0 + $0x110] sm:$0xff]
    %v84 = vld [vmem:[%s0 + $0x118] sm:$0xff]
    %v85 = vld [vmem:[%s0 + $0x120] sm:$0xff]
    %v86 = vld [vmem:[%s0 + $0x128] sm:$0xff]
    %v87 = vld [vmem:[%s0 + $0x130] sm:$0xff]
    %v88 = vld [vmem:[%s0 + $0x138] sm:$0xff]
    %v89 = vld [vmem:[%s0 + $0x140] sm:$0xff]
    %v90 = vld [vmem:[%s0 + $0x148] sm:$0xff]
    %v91 = vld [vmem:[%s0 + $0x150] sm:$0xff]
    %v92 = vld [vmem:[%s0 + $0x158] sm:$0xff]
    %v93 = vld [vmem:[%s0 + $0x160] sm:$0xff]
    %v94 = vld [vmem:[%s0 + $0x168] sm:$0xff]
    %v95 = vld [vmem:[%s0 + $0x170] sm:$0xff]
    %v96 = vld [vmem:[%s0 + $0x178] sm:$0xff]
    %v97 = vld [vmem:[%s0 + $0x180] sm:$0xff]
    %v98 = vld [vmem:[%s0 + $0x188] sm:$0xff]
    %v99 = vld [vmem:[%s0 + $0x190] sm:$0xff]
    %v100 = vld [vmem:[%s0 + $0x198] sm:$0xff]
    %v101 = vld [vmem:[%s0 + $0x1a0] sm:$0xff]
    %v102 = vld [vmem:[%s0 + $0x1a8] sm:$0xff]
    %v103 = vld [vmem:[%s0 + $0x1b0] sm:$0xff]
    %v104 = vld [vmem:[%s0 + $0x1b8] sm:$0xff]
    %v105 = vld [vmem:[%s0 + $0x1c0] sm:$0xff]
    %v106 = vld [vmem:[%s0 + $0x1c8] sm:$0xff]
    %v107 = vld [vmem:[%s0 + $0x1d0] sm:$0xff]
    %v108 = vld [vmem:[%s0 + $0x1d8] sm:$0xff]
    %v109 = vld [vmem:[%s0 + $0x1e0] sm:$0xff]
    %v110 = vld [vmem:[%s0 + $0x1e8] sm:$0xff]
    %v111 = vld [vmem:[%s0 + $0x1f0] sm:$0xff]
    %v112 = vld [vmem:[%s0 + $0x1f8] sm:$0xff]
    %v113 = vld [vmem:[%s2] sm:$0xf]
    %v114 = vld [vmem:[%s3] sm:$0x1]
    %v116 = vperm.slane %v114, 0
    %vm118 = vcmask 31744
    %v120 = vsel %vm118, %v49, 0
    %v123 = vsel %vm118, %v50, 0
    %v126 = vsel %vm118, %v51, 0
    %v129 = vsel %vm118, %v52, 0
    %v132 = vsel %vm118, %v53, 0
    %v135 = vsel %vm118, %v54, 0
    %v138 = vsel %vm118, %v55, 0
    %v141 = vsel %vm118, %v56, 0
    %v144 = vsel %vm118, %v57, 0
    %v147 = vsel %vm118, %v58, 0
    %v150 = vsel %vm118, %v59, 0
    %v153 = vsel %vm118, %v60, 0
    %v156 = vsel %vm118, %v61, 0
    %v159 = vsel %vm118, %v62, 0
    %v162 = vsel %vm118, %v63, 0
    %v165 = vsel %vm118, %v64, 0
    %v168 = vsel %vm118, %v65, 0
    %v171 = vsel %vm118, %v66, 0
    %v174 = vsel %vm118, %v67, 0
    %v177 = vsel %vm118, %v68, 0
    %v180 = vsel %vm118, %v69, 0
    %v183 = vsel %vm118, %v70, 0
    %v186 = vsel %vm118, %v71, 0
    %v189 = vsel %vm118, %v72, 0
    %v192 = vsel %vm118, %v73, 0
    %v195 = vsel %vm118, %v74, 0
    %v198 = vsel %vm118, %v75, 0
    %v201 = vsel %vm118, %v76, 0
    %v204 = vsel %vm118, %v77, 0
    %v207 = vsel %vm118, %v78, 0
    %v210 = vsel %vm118, %v79, 0
    %v213 = vsel %vm118, %v80, 0
    %v216 = vsel %vm118, %v81, 0
    %v219 = vsel %vm118, %v82, 0
    %v222 = vsel %vm118, %v83, 0
    %v225 = vsel %vm118, %v84, 0
    %v228 = vsel %vm118, %v85, 0
    %v231 = vsel %vm118, %v86, 0
    %v234 = vsel %vm118, %v87, 0
    %v237 = vsel %vm118, %v88, 0
    %v240 = vsel %vm118, %v89, 0
    %v243 = vsel %vm118, %v90, 0
    %v246 = vsel %vm118, %v91, 0
    %v249 = vsel %vm118, %v92, 0
    %v252 = vsel %vm118, %v93, 0
    %v255 = vsel %vm118, %v94, 0
    %v258 = vsel %vm118, %v95, 0
    %v261 = vsel %vm118, %v96, 0
    %v264 = vsel %vm118, %v97, 0
    %v267 = vsel %vm118, %v98, 0
    %v270 = vsel %vm118, %v99, 0
    %v273 = vsel %vm118, %v100, 0
    %v276 = vsel %vm118, %v101, 0
    %v279 = vsel %vm118, %v102, 0
    %v282 = vsel %vm118, %v103, 0
    %v285 = vsel %vm118, %v104, 0
    %v288 = vsel %vm118, %v105, 0
    %v291 = vsel %vm118, %v106, 0
    %v294 = vsel %vm118, %v107, 0
    %v297 = vsel %vm118, %v108, 0
    %v300 = vsel %vm118, %v109, 0
    %v303 = vsel %vm118, %v110, 0
    %v306 = vsel %vm118, %v111, 0
    %v309 = vsel %vm118, %v112, 0
    %vm311 = vcmask 1043456
    %v313 = vsel %vm311, %v113, 0
    %315 = vmatpush.msra.mxu0 0.0
    %316 = vmatpush.msra.mxu0 0.0
    %317 = vmatpush.msra.mxu0 0.0
    %318 = vmatpush.msra.mxu0 0.0
    %319 = vmatpush.msra.mxu0 0.0
    %320 = vmatpush.msra.mxu0 0.0
    %321 = vmatpush.msra.mxu0 0.0
    %322 = vmatpush.msra.mxu0 0.0
    %323 = vmatpush.msra.mxu0 0.0
    %324 = vmatpush.msra.mxu0 0.0
    %325 = vmatpush.msra.mxu0 0.0
    %326 = vmatpush.msra.mxu0 0.0
    %327 = vmatpush.msra.mxu0 0.0
    %328 = vmatpush.msra.mxu0 0.0
    %329 = vmatpush.msra.mxu0 0.0
    %330 = vmatpush.msra.mxu0 %v313
    %331 = vmatmul.f32.gmra.mxu0 %v120
    %v332 = vpop.f32.mrf.mxu0
    %v333 = vadd.f32 %v116, %v332
    %334 = vmatmul.f32.gmra.mxu0 %v123
    %v335 = vpop.f32.mrf.mxu0
    %v336 = vadd.f32 %v116, %v335
    %337 = vmatmul.f32.gmra.mxu0 %v126
    %v338 = vpop.f32.mrf.mxu0
    %v339 = vadd.f32 %v116, %v338
    %340 = vmatmul.f32.gmra.mxu0 %v129
    %v341 = vpop.f32.mrf.mxu0
    %v342 = vadd.f32 %v116, %v341
    %343 = vmatmul.f32.gmra.mxu0 %v132
    %v344 = vpop.f32.mrf.mxu0
    %v345 = vadd.f32 %v116, %v344
    %346 = vmatmul.f32.gmra.mxu0 %v135
    %v347 = vpop.f32.mrf.mxu0
    %v348 = vadd.f32 %v116, %v347
    %349 = vmatmul.f32.gmra.mxu0 %v138
    %v350 = vpop.f32.mrf.mxu0
    %v351 = vadd.f32 %v116, %v350
    %352 = vmatmul.f32.gmra.mxu0 %v141
    %v353 = vpop.f32.mrf.mxu0
    %v354 = vadd.f32 %v116, %v353
    %355 = vmatmul.f32.gmra.mxu0 %v144
    %v356 = vpop.f32.mrf.mxu0
    %v357 = vadd.f32 %v116, %v356
    %358 = vmatmul.f32.gmra.mxu0 %v147
    %v359 = vpop.f32.mrf.mxu0
    %v360 = vadd.f32 %v116, %v359
    %361 = vmatmul.f32.gmra.mxu0 %v150
    %v362 = vpop.f32.mrf.mxu0
    %v363 = vadd.f32 %v116, %v362
    %364 = vmatmul.f32.gmra.mxu0 %v153
    %v365 = vpop.f32.mrf.mxu0
    %v366 = vadd.f32 %v116, %v365
    %367 = vmatmul.f32.gmra.mxu0 %v156
    %v368 = vpop.f32.mrf.mxu0
    %v369 = vadd.f32 %v116, %v368
    %370 = vmatmul.f32.gmra.mxu0 %v159
    %v371 = vpop.f32.mrf.mxu0
    %v372 = vadd.f32 %v116, %v371
    %373 = vmatmul.f32.gmra.mxu0 %v162
    %v374 = vpop.f32.mrf.mxu0
    %v375 = vadd.f32 %v116, %v374
    %376 = vmatmul.f32.gmra.mxu0 %v165
    %v377 = vpop.f32.mrf.mxu0
    %v378 = vadd.f32 %v116, %v377
    %379 = vmatmul.f32.gmra.mxu0 %v168
    %v380 = vpop.f32.mrf.mxu0
    %v381 = vadd.f32 %v116, %v380
    %382 = vmatmul.f32.gmra.mxu0 %v171
    %v383 = vpop.f32.mrf.mxu0
    %v384 = vadd.f32 %v116, %v383
    %385 = vmatmul.f32.gmra.mxu0 %v174
    %v386 = vpop.f32.mrf.mxu0
    %v387 = vadd.f32 %v116, %v386
    %388 = vmatmul.f32.gmra.mxu0 %v177
    %v389 = vpop.f32.mrf.mxu0
    %v390 = vadd.f32 %v116, %v389
    %391 = vmatmul.f32.gmra.mxu0 %v180
    %v392 = vpop.f32.mrf.mxu0
    %v393 = vadd.f32 %v116, %v392
    %394 = vmatmul.f32.gmra.mxu0 %v183
    %v395 = vpop.f32.mrf.mxu0
    %v396 = vadd.f32 %v116, %v395
    %397 = vmatmul.f32.gmra.mxu0 %v186
    %v398 = vpop.f32.mrf.mxu0
    %v399 = vadd.f32 %v116, %v398
    %400 = vmatmul.f32.gmra.mxu0 %v189
    %v401 = vpop.f32.mrf.mxu0
    %v402 = vadd.f32 %v116, %v401
    %403 = vmatmul.f32.gmra.mxu0 %v192
    %v404 = vpop.f32.mrf.mxu0
    %v405 = vadd.f32 %v116, %v404
    %406 = vmatmul.f32.gmra.mxu0 %v195
    %v407 = vpop.f32.mrf.mxu0
    %v408 = vadd.f32 %v116, %v407
    %409 = vmatmul.f32.gmra.mxu0 %v198
    %v410 = vpop.f32.mrf.mxu0
    %v411 = vadd.f32 %v116, %v410
    %412 = vmatmul.f32.gmra.mxu0 %v201
    %v413 = vpop.f32.mrf.mxu0
    %v414 = vadd.f32 %v116, %v413
    %415 = vmatmul.f32.gmra.mxu0 %v204
    %v416 = vpop.f32.mrf.mxu0
    %v417 = vadd.f32 %v116, %v416
    %418 = vmatmul.f32.gmra.mxu0 %v207
    %v419 = vpop.f32.mrf.mxu0
    %v420 = vadd.f32 %v116, %v419
    %421 = vmatmul.f32.gmra.mxu0 %v210
    %v422 = vpop.f32.mrf.mxu0
    %v423 = vadd.f32 %v116, %v422
    %424 = vmatmul.f32.gmra.mxu0 %v213
    %v425 = vpop.f32.mrf.mxu0
    %v426 = vadd.f32 %v116, %v425
    %427 = vmatmul.f32.gmra.mxu0 %v216
    %v428 = vpop.f32.mrf.mxu0
    %v429 = vadd.f32 %v116, %v428
    %430 = vmatmul.f32.gmra.mxu0 %v219
    %v431 = vpop.f32.mrf.mxu0
    %v432 = vadd.f32 %v116, %v431
    %433 = vmatmul.f32.gmra.mxu0 %v222
    %v434 = vpop.f32.mrf.mxu0
    %v435 = vadd.f32 %v116, %v434
    %436 = vmatmul.f32.gmra.mxu0 %v225
    %v437 = vpop.f32.mrf.mxu0
    %v438 = vadd.f32 %v116, %v437
    %439 = vmatmul.f32.gmra.mxu0 %v228
    %v440 = vpop.f32.mrf.mxu0
    %v441 = vadd.f32 %v116, %v440
    %442 = vmatmul.f32.gmra.mxu0 %v231
    %v443 = vpop.f32.mrf.mxu0
    %v444 = vadd.f32 %v116, %v443
    %445 = vmatmul.f32.gmra.mxu0 %v234
    %v446 = vpop.f32.mrf.mxu0
    %v447 = vadd.f32 %v116, %v446
    %448 = vmatmul.f32.gmra.mxu0 %v237
    %v449 = vpop.f32.mrf.mxu0
    %v450 = vadd.f32 %v116, %v449
    %451 = vmatmul.f32.gmra.mxu0 %v240
    %v452 = vpop.f32.mrf.mxu0
    %v453 = vadd.f32 %v116, %v452
    %454 = vmatmul.f32.gmra.mxu0 %v243
    %v455 = vpop.f32.mrf.mxu0
    %v456 = vadd.f32 %v116, %v455
    %457 = vmatmul.f32.gmra.mxu0 %v246
    %v458 = vpop.f32.mrf.mxu0
    %v459 = vadd.f32 %v116, %v458
    %460 = vmatmul.f32.gmra.mxu0 %v249
    %v461 = vpop.f32.mrf.mxu0
    %v462 = vadd.f32 %v116, %v461
    %463 = vmatmul.f32.gmra.mxu0 %v252
    %v464 = vpop.f32.mrf.mxu0
    %v465 = vadd.f32 %v116, %v464
    %466 = vmatmul.f32.gmra.mxu0 %v255
    %v467 = vpop.f32.mrf.mxu0
    %v468 = vadd.f32 %v116, %v467
    %469 = vmatmul.f32.gmra.mxu0 %v258
    %v470 = vpop.f32.mrf.mxu0
    %v471 = vadd.f32 %v116, %v470
    %472 = vmatmul.f32.gmra.mxu0 %v261
    %v473 = vpop.f32.mrf.mxu0
    %v474 = vadd.f32 %v116, %v473
    %475 = vmatmul.f32.gmra.mxu0 %v264
    %v476 = vpop.f32.mrf.mxu0
    %v477 = vadd.f32 %v116, %v476
    %478 = vmatmul.f32.gmra.mxu0 %v267
    %v479 = vpop.f32.mrf.mxu0
    %v480 = vadd.f32 %v116, %v479
    %481 = vmatmul.f32.gmra.mxu0 %v270
    %v482 = vpop.f32.mrf.mxu0
    %v483 = vadd.f32 %v116, %v482
    %484 = vmatmul.f32.gmra.mxu0 %v273
    %v485 = vpop.f32.mrf.mxu0
    %v486 = vadd.f32 %v116, %v485
    %487 = vmatmul.f32.gmra.mxu0 %v276
    %v488 = vpop.f32.mrf.mxu0
    %v489 = vadd.f32 %v116, %v488
    %490 = vmatmul.f32.gmra.mxu0 %v279
    %v491 = vpop.f32.mrf.mxu0
    %v492 = vadd.f32 %v116, %v491
    %493 = vmatmul.f32.gmra.mxu0 %v282
    %v494 = vpop.f32.mrf.mxu0
    %v495 = vadd.f32 %v116, %v494
    %496 = vmatmul.f32.gmra.mxu0 %v285
    %v497 = vpop.f32.mrf.mxu0
    %v498 = vadd.f32 %v116, %v497
    %499 = vmatmul.f32.gmra.mxu0 %v288
    %v500 = vpop.f32.mrf.mxu0
    %v501 = vadd.f32 %v116, %v500
    %502 = vmatmul.f32.gmra.mxu0 %v291
    %v503 = vpop.f32.mrf.mxu0
    %v504 = vadd.f32 %v116, %v503
    %505 = vmatmul.f32.gmra.mxu0 %v294
    %v506 = vpop.f32.mrf.mxu0
    %v507 = vadd.f32 %v116, %v506
    %508 = vmatmul.f32.gmra.mxu0 %v297
    %v509 = vpop.f32.mrf.mxu0
    %v510 = vadd.f32 %v116, %v509
    %511 = vmatmul.f32.gmra.mxu0 %v300
    %v512 = vpop.f32.mrf.mxu0
    %v513 = vadd.f32 %v116, %v512
    %514 = vmatmul.f32.gmra.mxu0 %v303
    %v515 = vpop.f32.mrf.mxu0
    %v516 = vadd.f32 %v116, %v515
    %517 = vmatmul.f32.gmra.mxu0 %v306
    %v518 = vpop.f32.mrf.mxu0
    %v519 = vadd.f32 %v116, %v518
    %520 = vmatmul.f32.gmra.mxu0 %v309
    %v521 = vpop.f32.mrf.mxu0
    %v522 = vadd.f32 %v116, %v521
    %523 = vdwg.mxu0
    %vm524 = vcmp.gt.f32.partialorder %v333, 0.0
    %vm525 = vcmp.gt.f32.partialorder %v336, 0.0
    %vm526 = vcmp.gt.f32.partialorder %v339, 0.0
    %vm527 = vcmp.gt.f32.partialorder %v342, 0.0
    %vm528 = vcmp.gt.f32.partialorder %v345, 0.0
    %vm529 = vcmp.gt.f32.partialorder %v348, 0.0
    %vm530 = vcmp.gt.f32.partialorder %v351, 0.0
    %vm531 = vcmp.gt.f32.partialorder %v354, 0.0
    %vm532 = vcmp.gt.f32.partialorder %v357, 0.0
    %vm533 = vcmp.gt.f32.partialorder %v360, 0.0
    %vm534 = vcmp.gt.f32.partialorder %v363, 0.0
    %vm535 = vcmp.gt.f32.partialorder %v366, 0.0
    %vm536 = vcmp.gt.f32.partialorder %v369, 0.0
    %vm537 = vcmp.gt.f32.partialorder %v372, 0.0
    %vm538 = vcmp.gt.f32.partialorder %v375, 0.0
    %vm539 = vcmp.gt.f32.partialorder %v378, 0.0
    %vm540 = vcmp.gt.f32.partialorder %v381, 0.0
    %vm541 = vcmp.gt.f32.partialorder %v384, 0.0
    %vm542 = vcmp.gt.f32.partialorder %v387, 0.0
    %vm543 = vcmp.gt.f32.partialorder %v390, 0.0
    %vm544 = vcmp.gt.f32.partialorder %v393, 0.0
    %vm545 = vcmp.gt.f32.partialorder %v396, 0.0
    %vm546 = vcmp.gt.f32.partialorder %v399, 0.0
    %vm547 = vcmp.gt.f32.partialorder %v402, 0.0
    %vm548 = vcmp.gt.f32.partialorder %v405, 0.0
    %vm549 = vcmp.gt.f32.partialorder %v408, 0.0
    %vm550 = vcmp.gt.f32.partialorder %v411, 0.0
    %vm551 = vcmp.gt.f32.partialorder %v414, 0.0
    %vm552 = vcmp.gt.f32.partialorder %v417, 0.0
    %vm553 = vcmp.gt.f32.partialorder %v420, 0.0
    %vm554 = vcmp.gt.f32.partialorder %v423, 0.0
    %vm555 = vcmp.gt.f32.partialorder %v426, 0.0
    %vm556 = vcmp.gt.f32.partialorder %v429, 0.0
    %vm557 = vcmp.gt.f32.partialorder %v432, 0.0
    %vm558 = vcmp.gt.f32.partialorder %v435, 0.0
    %vm559 = vcmp.gt.f32.partialorder %v438, 0.0
    %vm560 = vcmp.gt.f32.partialorder %v441, 0.0
    %vm561 = vcmp.gt.f32.partialorder %v444, 0.0
    %vm562 = vcmp.gt.f32.partialorder %v447, 0.0
    %vm563 = vcmp.gt.f32.partialorder %v450, 0.0
    %vm564 = vcmp.gt.f32.partialorder %v453, 0.0
    %vm565 = vcmp.gt.f32.partialorder %v456, 0.0
    %vm566 = vcmp.gt.f32.partialorder %v459, 0.0
    %vm567 = vcmp.gt.f32.partialorder %v462, 0.0
    %vm568 = vcmp.gt.f32.partialorder %v465, 0.0
    %vm569 = vcmp.gt.f32.partialorder %v468, 0.0
    %vm570 = vcmp.gt.f32.partialorder %v471, 0.0
    %vm571 = vcmp.gt.f32.partialorder %v474, 0.0
    %vm572 = vcmp.gt.f32.partialorder %v477, 0.0
    %vm573 = vcmp.gt.f32.partialorder %v480, 0.0
    %vm574 = vcmp.gt.f32.partialorder %v483, 0.0
    %vm575 = vcmp.gt.f32.partialorder %v486, 0.0
    %vm576 = vcmp.gt.f32.partialorder %v489, 0.0
    %vm577 = vcmp.gt.f32.partialorder %v492, 0.0
    %vm578 = vcmp.gt.f32.partialorder %v495, 0.0
    %vm579 = vcmp.gt.f32.partialorder %v498, 0.0
    %vm580 = vcmp.gt.f32.partialorder %v501, 0.0
    %vm581 = vcmp.gt.f32.partialorder %v504, 0.0
    %vm582 = vcmp.gt.f32.partialorder %v507, 0.0
    %vm583 = vcmp.gt.f32.partialorder %v510, 0.0
    %vm584 = vcmp.gt.f32.partialorder %v513, 0.0
    %vm585 = vcmp.gt.f32.partialorder %v516, 0.0
    %vm586 = vcmp.gt.f32.partialorder %v519, 0.0
    %vm587 = vcmp.gt.f32.partialorder %v522, 0.0
    %v588 = vstv %s46
    %v589 = vmul.f32 %v588, %v333
    %v590 = vmul.f32 %v588, %v336
    %v591 = vmul.f32 %v588, %v339
    %v592 = vmul.f32 %v588, %v342
    %v593 = vmul.f32 %v588, %v345
    %v594 = vmul.f32 %v588, %v348
    %v595 = vmul.f32 %v588, %v351
    %v596 = vmul.f32 %v588, %v354
    %v597 = vmul.f32 %v588, %v357
    %v598 = vmul.f32 %v588, %v360
    %v599 = vmul.f32 %v588, %v363
    %v600 = vmul.f32 %v588, %v366
    %v601 = vmul.f32 %v588, %v369
    %v602 = vmul.f32 %v588, %v372
    %v603 = vmul.f32 %v588, %v375
    %v604 = vmul.f32 %v588, %v378
    %v605 = vmul.f32 %v588, %v381
    %v606 = vmul.f32 %v588, %v384
    %v607 = vmul.f32 %v588, %v387
    %v608 = vmul.f32 %v588, %v390
    %v609 = vmul.f32 %v588, %v393
    %v610 = vmul.f32 %v588, %v396
    %v611 = vmul.f32 %v588, %v399
    %v612 = vmul.f32 %v588, %v402
    %v613 = vmul.f32 %v588, %v405
    %v614 = vmul.f32 %v588, %v408
    %v615 = vmul.f32 %v588, %v411
    %v616 = vmul.f32 %v588, %v414
    %v617 = vmul.f32 %v588, %v417
    %v618 = vmul.f32 %v588, %v420
    %v619 = vmul.f32 %v588, %v423
    %v620 = vmul.f32 %v588, %v426
    %v621 = vmul.f32 %v588, %v429
    %v622 = vmul.f32 %v588, %v432
    %v623 = vmul.f32 %v588, %v435
    %v624 = vmul.f32 %v588, %v438
    %v625 = vmul.f32 %v588, %v441
    %v626 = vmul.f32 %v588, %v444
    %v627 = vmul.f32 %v588, %v447
    %v628 = vmul.f32 %v588, %v450
    %v629 = vmul.f32 %v588, %v453
    %v630 = vmul.f32 %v588, %v456
    %v631 = vmul.f32 %v588, %v459
    %v632 = vmul.f32 %v588, %v462
    %v633 = vmul.f32 %v588, %v465
    %v634 = vmul.f32 %v588, %v468
    %v635 = vmul.f32 %v588, %v471
    %v636 = vmul.f32 %v588, %v474
    %v637 = vmul.f32 %v588, %v477
    %v638 = vmul.f32 %v588, %v480
    %v639 = vmul.f32 %v588, %v483
    %v640 = vmul.f32 %v588, %v486
    %v641 = vmul.f32 %v588, %v489
    %v642 = vmul.f32 %v588, %v492
    %v643 = vmul.f32 %v588, %v495
    %v644 = vmul.f32 %v588, %v498
    %v645 = vmul.f32 %v588, %v501
    %v646 = vmul.f32 %v588, %v504
    %v647 = vmul.f32 %v588, %v507
    %v648 = vmul.f32 %v588, %v510
    %v649 = vmul.f32 %v588, %v513
    %v650 = vmul.f32 %v588, %v516
    %v651 = vmul.f32 %v588, %v519
    %v652 = vmul.f32 %v588, %v522
    %v653 = vsel %vm524, %v333, %v589
    %v654 = vsel %vm525, %v336, %v590
    %v655 = vsel %vm526, %v339, %v591
    %v656 = vsel %vm527, %v342, %v592
    %v657 = vsel %vm528, %v345, %v593
    %v658 = vsel %vm529, %v348, %v594
    %v659 = vsel %vm530, %v351, %v595
    %v660 = vsel %vm531, %v354, %v596
    %v661 = vsel %vm532, %v357, %v597
    %v662 = vsel %vm533, %v360, %v598
    %v663 = vsel %vm534, %v363, %v599
    %v664 = vsel %vm535, %v366, %v600
    %v665 = vsel %vm536, %v369, %v601
    %v666 = vsel %vm537, %v372, %v602
    %v667 = vsel %vm538, %v375, %v603
    %v668 = vsel %vm539, %v378, %v604
    %v669 = vsel %vm540, %v381, %v605
    %v670 = vsel %vm541, %v384, %v606
    %v671 = vsel %vm542, %v387, %v607
    %v672 = vsel %vm543, %v390, %v608
    %v673 = vsel %vm544, %v393, %v609
    %v674 = vsel %vm545, %v396, %v610
    %v675 = vsel %vm546, %v399, %v611
    %v676 = vsel %vm547, %v402, %v612
    %v677 = vsel %vm548, %v405, %v613
    %v678 = vsel %vm549, %v408, %v614
    %v679 = vsel %vm550, %v411, %v615
    %v680 = vsel %vm551, %v414, %v616
    %v681 = vsel %vm552, %v417, %v617
    %v682 = vsel %vm553, %v420, %v618
    %v683 = vsel %vm554, %v423, %v619
    %v684 = vsel %vm555, %v426, %v620
    %v685 = vsel %vm556, %v429, %v621
    %v686 = vsel %vm557, %v432, %v622
    %v687 = vsel %vm558, %v435, %v623
    %v688 = vsel %vm559, %v438, %v624
    %v689 = vsel %vm560, %v441, %v625
    %v690 = vsel %vm561, %v444, %v626
    %v691 = vsel %vm562, %v447, %v627
    %v692 = vsel %vm563, %v450, %v628
    %v693 = vsel %vm564, %v453, %v629
    %v694 = vsel %vm565, %v456, %v630
    %v695 = vsel %vm566, %v459, %v631
    %v696 = vsel %vm567, %v462, %v632
    %v697 = vsel %vm568, %v465, %v633
    %v698 = vsel %vm569, %v468, %v634
    %v699 = vsel %vm570, %v471, %v635
    %v700 = vsel %vm571, %v474, %v636
    %v701 = vsel %vm572, %v477, %v637
    %v702 = vsel %vm573, %v480, %v638
    %v703 = vsel %vm574, %v483, %v639
    %v704 = vsel %vm575, %v486, %v640
    %v705 = vsel %vm576, %v489, %v641
    %v706 = vsel %vm577, %v492, %v642
    %v707 = vsel %vm578, %v495, %v643
    %v708 = vsel %vm579, %v498, %v644
    %v709 = vsel %vm580, %v501, %v645
    %v710 = vsel %vm581, %v504, %v646
    %v711 = vsel %vm582, %v507, %v647
    %v712 = vsel %vm583, %v510, %v648
    %v713 = vsel %vm584, %v513, %v649
    %v714 = vsel %vm585, %v516, %v650
    %v715 = vsel %vm586, %v519, %v651
    %v716 = vsel %vm587, %v522, %v652
    %v717 = vld [vmem:[%s4] sm:$0xff]
    %v718 = vld [vmem:[%s4 + $0x8] sm:$0xff]
    %v719 = vld [vmem:[%s4 + $0x10] sm:$0xff]
    %v720 = vld [vmem:[%s4 + $0x18] sm:$0xff]
    %v721 = vld [vmem:[%s4 + $0x20] sm:$0xf]
    %v722 = vld [vmem:[%s5] sm:$0x1]
    %v724 = vperm.slane %v722, 0
    %vm726 = vcmask 293888
    %v728 = vsel %vm726, %v653, 0
    %v731 = vsel %vm726, %v654, 0
    %v734 = vsel %vm726, %v655, 0
    %v737 = vsel %vm726, %v656, 0
    %v740 = vsel %vm726, %v657, 0
    %v743 = vsel %vm726, %v658, 0
    %v746 = vsel %vm726, %v659, 0
    %v749 = vsel %vm726, %v660, 0
    %v752 = vsel %vm726, %v661, 0
    %v755 = vsel %vm726, %v662, 0
    %v758 = vsel %vm726, %v663, 0
    %v761 = vsel %vm726, %v664, 0
    %v764 = vsel %vm726, %v665, 0
    %v767 = vsel %vm726, %v666, 0
    %v770 = vsel %vm726, %v667, 0
    %v773 = vsel %vm726, %v668, 0
    %v776 = vsel %vm726, %v669, 0
    %v779 = vsel %vm726, %v670, 0
    %v782 = vsel %vm726, %v671, 0
    %v785 = vsel %vm726, %v672, 0
    %v788 = vsel %vm726, %v673, 0
    %v791 = vsel %vm726, %v674, 0
    %v794 = vsel %vm726, %v675, 0
    %v797 = vsel %vm726, %v676, 0
    %v800 = vsel %vm726, %v677, 0
    %v803 = vsel %vm726, %v678, 0
    %v806 = vsel %vm726, %v679, 0
    %v809 = vsel %vm726, %v680, 0
    %v812 = vsel %vm726, %v681, 0
    %v815 = vsel %vm726, %v682, 0
    %v818 = vsel %vm726, %v683, 0
    %v821 = vsel %vm726, %v684, 0
    %v824 = vsel %vm726, %v685, 0
    %v827 = vsel %vm726, %v686, 0
    %v830 = vsel %vm726, %v687, 0
    %v833 = vsel %vm726, %v688, 0
    %v836 = vsel %vm726, %v689, 0
    %v839 = vsel %vm726, %v690, 0
    %v842 = vsel %vm726, %v691, 0
    %v845 = vsel %vm726, %v692, 0
    %v848 = vsel %vm726, %v693, 0
    %v851 = vsel %vm726, %v694, 0
    %v854 = vsel %vm726, %v695, 0
    %v857 = vsel %vm726, %v696, 0
    %v860 = vsel %vm726, %v697, 0
    %v863 = vsel %vm726, %v698, 0
    %v866 = vsel %vm726, %v699, 0
    %v869 = vsel %vm726, %v700, 0
    %v872 = vsel %vm726, %v701, 0
    %v875 = vsel %vm726, %v702, 0
    %v878 = vsel %vm726, %v703, 0
    %v881 = vsel %vm726, %v704, 0
    %v884 = vsel %vm726, %v705, 0
    %v887 = vsel %vm726, %v706, 0
    %v890 = vsel %vm726, %v707, 0
    %v893 = vsel %vm726, %v708, 0
    %v896 = vsel %vm726, %v709, 0
    %v899 = vsel %vm726, %v710, 0
    %v902 = vsel %vm726, %v711, 0
    %v905 = vsel %vm726, %v712, 0
    %v908 = vsel %vm726, %v713, 0
    %v911 = vsel %vm726, %v714, 0
    %v914 = vsel %vm726, %v715, 0
    %v917 = vsel %vm726, %v716, 0
    %v920 = vsel %vm311, %v721, 0
    %922 = vmatpush.msra.mxu0 0.0
    %923 = vmatpush.msra.mxu0 0.0
    %924 = vmatpush.msra.mxu0 0.0
    %925 = vmatpush.msra.mxu0 0.0
    %926 = vmatpush.msra.mxu0 0.0
    %927 = vmatpush.msra.mxu0 0.0
    %928 = vmatpush.msra.mxu0 0.0
    %929 = vmatpush.msra.mxu0 0.0
    %930 = vmatpush.msra.mxu0 0.0
    %931 = vmatpush.msra.mxu0 0.0
    %932 = vmatpush.msra.mxu0 0.0
    %933 = vmatpush.msra.mxu0 %v920
    %934 = vmatpush.msra.mxu0 %v720
    %935 = vmatpush.msra.mxu0 %v719
    %936 = vmatpush.msra.mxu0 %v718
    %937 = vmatpush.msra.mxu0 %v717
    %938 = vmatmul.f32.gmra.mxu0 %v728
    %v939 = vpop.f32.mrf.mxu0
    %v940 = vadd.f32 %v724, %v939
    %941 = vmatmul.f32.gmra.mxu0 %v731
    %v942 = vpop.f32.mrf.mxu0
    %v943 = vadd.f32 %v724, %v942
    %944 = vmatmul.f32.gmra.mxu0 %v734
    %v945 = vpop.f32.mrf.mxu0
    %v946 = vadd.f32 %v724, %v945
    %947 = vmatmul.f32.gmra.mxu0 %v737
    %v948 = vpop.f32.mrf.mxu0
    %v949 = vadd.f32 %v724, %v948
    %950 = vmatmul.f32.gmra.mxu0 %v740
    %v951 = vpop.f32.mrf.mxu0
    %v952 = vadd.f32 %v724, %v951
    %953 = vmatmul.f32.gmra.mxu0 %v743
    %v954 = vpop.f32.mrf.mxu0
    %v955 = vadd.f32 %v724, %v954
    %956 = vmatmul.f32.gmra.mxu0 %v746
    %v957 = vpop.f32.mrf.mxu0
    %v958 = vadd.f32 %v724, %v957
    %959 = vmatmul.f32.gmra.mxu0 %v749
    %v960 = vpop.f32.mrf.mxu0
    %v961 = vadd.f32 %v724, %v960
    %962 = vmatmul.f32.gmra.mxu0 %v752
    %v963 = vpop.f32.mrf.mxu0
    %v964 = vadd.f32 %v724, %v963
    %965 = vmatmul.f32.gmra.mxu0 %v755
    %v966 = vpop.f32.mrf.mxu0
    %v967 = vadd.f32 %v724, %v966
    %968 = vmatmul.f32.gmra.mxu0 %v758
    %v969 = vpop.f32.mrf.mxu0
    %v970 = vadd.f32 %v724, %v969
    %971 = vmatmul.f32.gmra.mxu0 %v761
    %v972 = vpop.f32.mrf.mxu0
    %v973 = vadd.f32 %v724, %v972
    %974 = vmatmul.f32.gmra.mxu0 %v764
    %v975 = vpop.f32.mrf.mxu0
    %v976 = vadd.f32 %v724, %v975
    %977 = vmatmul.f32.gmra.mxu0 %v767
    %v978 = vpop.f32.mrf.mxu0
    %v979 = vadd.f32 %v724, %v978
    %980 = vmatmul.f32.gmra.mxu0 %v770
    %v981 = vpop.f32.mrf.mxu0
    %v982 = vadd.f32 %v724, %v981
    %983 = vmatmul.f32.gmra.mxu0 %v773
    %v984 = vpop.f32.mrf.mxu0
    %v985 = vadd.f32 %v724, %v984
    %986 = vmatmul.f32.gmra.mxu0 %v776
    %v987 = vpop.f32.mrf.mxu0
    %v988 = vadd.f32 %v724, %v987
    %989 = vmatmul.f32.gmra.mxu0 %v779
    %v990 = vpop.f32.mrf.mxu0
    %v991 = vadd.f32 %v724, %v990
    %992 = vmatmul.f32.gmra.mxu0 %v782
    %v993 = vpop.f32.mrf.mxu0
    %v994 = vadd.f32 %v724, %v993
    %995 = vmatmul.f32.gmra.mxu0 %v785
    %v996 = vpop.f32.mrf.mxu0
    %v997 = vadd.f32 %v724, %v996
    %998 = vmatmul.f32.gmra.mxu0 %v788
    %v999 = vpop.f32.mrf.mxu0
    %v1000 = vadd.f32 %v724, %v999
    %1001 = vmatmul.f32.gmra.mxu0 %v791
    %v1002 = vpop.f32.mrf.mxu0
    %v1003 = vadd.f32 %v724, %v1002
    %1004 = vmatmul.f32.gmra.mxu0 %v794
    %v1005 = vpop.f32.mrf.mxu0
    %v1006 = vadd.f32 %v724, %v1005
    %1007 = vmatmul.f32.gmra.mxu0 %v797
    %v1008 = vpop.f32.mrf.mxu0
    %v1009 = vadd.f32 %v724, %v1008
    %1010 = vmatmul.f32.gmra.mxu0 %v800
    %v1011 = vpop.f32.mrf.mxu0
    %v1012 = vadd.f32 %v724, %v1011
    %1013 = vmatmul.f32.gmra.mxu0 %v803
    %v1014 = vpop.f32.mrf.mxu0
    %v1015 = vadd.f32 %v724, %v1014
    %1016 = vmatmul.f32.gmra.mxu0 %v806
    %v1017 = vpop.f32.mrf.mxu0
    %v1018 = vadd.f32 %v724, %v1017
    %1019 = vmatmul.f32.gmra.mxu0 %v809
    %v1020 = vpop.f32.mrf.mxu0
    %v1021 = vadd.f32 %v724, %v1020
    %1022 = vmatmul.f32.gmra.mxu0 %v812
    %v1023 = vpop.f32.mrf.mxu0
    %v1024 = vadd.f32 %v724, %v1023
    %1025 = vmatmul.f32.gmra.mxu0 %v815
    %v1026 = vpop.f32.mrf.mxu0
    %v1027 = vadd.f32 %v724, %v1026
    %1028 = vmatmul.f32.gmra.mxu0 %v818
    %v1029 = vpop.f32.mrf.mxu0
    %v1030 = vadd.f32 %v724, %v1029
    %1031 = vmatmul.f32.gmra.mxu0 %v821
    %v1032 = vpop.f32.mrf.mxu0
    %v1033 = vadd.f32 %v724, %v1032
    %1034 = vmatmul.f32.gmra.mxu0 %v824
    %v1035 = vpop.f32.mrf.mxu0
    %v1036 = vadd.f32 %v724, %v1035
    %1037 = vmatmul.f32.gmra.mxu0 %v827
    %v1038 = vpop.f32.mrf.mxu0
    %v1039 = vadd.f32 %v724, %v1038
    %1040 = vmatmul.f32.gmra.mxu0 %v830
    %v1041 = vpop.f32.mrf.mxu0
    %v1042 = vadd.f32 %v724, %v1041
    %1043 = vmatmul.f32.gmra.mxu0 %v833
    %v1044 = vpop.f32.mrf.mxu0
    %v1045 = vadd.f32 %v724, %v1044
    %1046 = vmatmul.f32.gmra.mxu0 %v836
    %v1047 = vpop.f32.mrf.mxu0
    %v1048 = vadd.f32 %v724, %v1047
    %1049 = vmatmul.f32.gmra.mxu0 %v839
    %v1050 = vpop.f32.mrf.mxu0
    %v1051 = vadd.f32 %v724, %v1050
    %1052 = vmatmul.f32.gmra.mxu0 %v842
    %v1053 = vpop.f32.mrf.mxu0
    %v1054 = vadd.f32 %v724, %v1053
    %1055 = vmatmul.f32.gmra.mxu0 %v845
    %v1056 = vpop.f32.mrf.mxu0
    %v1057 = vadd.f32 %v724, %v1056
    %1058 = vmatmul.f32.gmra.mxu0 %v848
    %v1059 = vpop.f32.mrf.mxu0
    %v1060 = vadd.f32 %v724, %v1059
    %1061 = vmatmul.f32.gmra.mxu0 %v851
    %v1062 = vpop.f32.mrf.mxu0
    %v1063 = vadd.f32 %v724, %v1062
    %1064 = vmatmul.f32.gmra.mxu0 %v854
    %v1065 = vpop.f32.mrf.mxu0
    %v1066 = vadd.f32 %v724, %v1065
    %1067 = vmatmul.f32.gmra.mxu0 %v857
    %v1068 = vpop.f32.mrf.mxu0
    %v1069 = vadd.f32 %v724, %v1068
    %1070 = vmatmul.f32.gmra.mxu0 %v860
    %v1071 = vpop.f32.mrf.mxu0
    %v1072 = vadd.f32 %v724, %v1071
    %1073 = vmatmul.f32.gmra.mxu0 %v863
    %v1074 = vpop.f32.mrf.mxu0
    %v1075 = vadd.f32 %v724, %v1074
    %1076 = vmatmul.f32.gmra.mxu0 %v866
    %v1077 = vpop.f32.mrf.mxu0
    %v1078 = vadd.f32 %v724, %v1077
    %1079 = vmatmul.f32.gmra.mxu0 %v869
    %v1080 = vpop.f32.mrf.mxu0
    %v1081 = vadd.f32 %v724, %v1080
    %1082 = vmatmul.f32.gmra.mxu0 %v872
    %v1083 = vpop.f32.mrf.mxu0
    %v1084 = vadd.f32 %v724, %v1083
    %1085 = vmatmul.f32.gmra.mxu0 %v875
    %v1086 = vpop.f32.mrf.mxu0
    %v1087 = vadd.f32 %v724, %v1086
    %1088 = vmatmul.f32.gmra.mxu0 %v878
    %v1089 = vpop.f32.mrf.mxu0
    %v1090 = vadd.f32 %v724, %v1089
    %1091 = vmatmul.f32.gmra.mxu0 %v881
    %v1092 = vpop.f32.mrf.mxu0
    %v1093 = vadd.f32 %v724, %v1092
    %1094 = vmatmul.f32.gmra.mxu0 %v884
    %v1095 = vpop.f32.mrf.mxu0
    %v1096 = vadd.f32 %v724, %v1095
    %1097 = vmatmul.f32.gmra.mxu0 %v887
    %v1098 = vpop.f32.mrf.mxu0
    %v1099 = vadd.f32 %v724, %v1098
    %1100 = vmatmul.f32.gmra.mxu0 %v890
    %v1101 = vpop.f32.mrf.mxu0
    %v1102 = vadd.f32 %v724, %v1101
    %1103 = vmatmul.f32.gmra.mxu0 %v893
    %v1104 = vpop.f32.mrf.mxu0
    %v1105 = vadd.f32 %v724, %v1104
    %1106 = vmatmul.f32.gmra.mxu0 %v896
    %v1107 = vpop.f32.mrf.mxu0
    %v1108 = vadd.f32 %v724, %v1107
    %1109 = vmatmul.f32.gmra.mxu0 %v899
    %v1110 = vpop.f32.mrf.mxu0
    %v1111 = vadd.f32 %v724, %v1110
    %1112 = vmatmul.f32.gmra.mxu0 %v902
    %v1113 = vpop.f32.mrf.mxu0
    %v1114 = vadd.f32 %v724, %v1113
    %1115 = vmatmul.f32.gmra.mxu0 %v905
    %v1116 = vpop.f32.mrf.mxu0
    %v1117 = vadd.f32 %v724, %v1116
    %1118 = vmatmul.f32.gmra.mxu0 %v908
    %v1119 = vpop.f32.mrf.mxu0
    %v1120 = vadd.f32 %v724, %v1119
    %1121 = vmatmul.f32.gmra.mxu0 %v911
    %v1122 = vpop.f32.mrf.mxu0
    %v1123 = vadd.f32 %v724, %v1122
    %1124 = vmatmul.f32.gmra.mxu0 %v914
    %v1125 = vpop.f32.mrf.mxu0
    %v1126 = vadd.f32 %v724, %v1125
    %1127 = vmatmul.f32.gmra.mxu0 %v917
    %v1128 = vpop.f32.mrf.mxu0
    %v1129 = vadd.f32 %v724, %v1128
    %1130 = vdwg.mxu0
    %vm1131 = vcmp.gt.f32.partialorder %v940, 0.0
    %vm1132 = vcmp.gt.f32.partialorder %v943, 0.0
    %vm1133 = vcmp.gt.f32.partialorder %v946, 0.0
    %vm1134 = vcmp.gt.f32.partialorder %v949, 0.0
    %vm1135 = vcmp.gt.f32.partialorder %v952, 0.0
    %vm1136 = vcmp.gt.f32.partialorder %v955, 0.0
    %vm1137 = vcmp.gt.f32.partialorder %v958, 0.0
    %vm1138 = vcmp.gt.f32.partialorder %v961, 0.0
    %vm1139 = vcmp.gt.f32.partialorder %v964, 0.0
    %vm1140 = vcmp.gt.f32.partialorder %v967, 0.0
    %vm1141 = vcmp.gt.f32.partialorder %v970, 0.0
    %vm1142 = vcmp.gt.f32.partialorder %v973, 0.0
    %vm1143 = vcmp.gt.f32.partialorder %v976, 0.0
    %vm1144 = vcmp.gt.f32.partialorder %v979, 0.0
    %vm1145 = vcmp.gt.f32.partialorder %v982, 0.0
    %vm1146 = vcmp.gt.f32.partialorder %v985, 0.0
    %vm1147 = vcmp.gt.f32.partialorder %v988, 0.0
    %vm1148 = vcmp.gt.f32.partialorder %v991, 0.0
    %vm1149 = vcmp.gt.f32.partialorder %v994, 0.0
    %vm1150 = vcmp.gt.f32.partialorder %v997, 0.0
    %vm1151 = vcmp.gt.f32.partialorder %v1000, 0.0
    %vm1152 = vcmp.gt.f32.partialorder %v1003, 0.0
    %vm1153 = vcmp.gt.f32.partialorder %v1006, 0.0
    %vm1154 = vcmp.gt.f32.partialorder %v1009, 0.0
    %vm1155 = vcmp.gt.f32.partialorder %v1012, 0.0
    %vm1156 = vcmp.gt.f32.partialorder %v1015, 0.0
    %vm1157 = vcmp.gt.f32.partialorder %v1018, 0.0
    %vm1158 = vcmp.gt.f32.partialorder %v1021, 0.0
    %vm1159 = vcmp.gt.f32.partialorder %v1024, 0.0
    %vm1160 = vcmp.gt.f32.partialorder %v1027, 0.0
    %vm1161 = vcmp.gt.f32.partialorder %v1030, 0.0
    %vm1162 = vcmp.gt.f32.partialorder %v1033, 0.0
    %vm1163 = vcmp.gt.f32.partialorder %v1036, 0.0
    %vm1164 = vcmp.gt.f32.partialorder %v1039, 0.0
    %vm1165 = vcmp.gt.f32.partialorder %v1042, 0.0
    %vm1166 = vcmp.gt.f32.partialorder %v1045, 0.0
    %vm1167 = vcmp.gt.f32.partialorder %v1048, 0.0
    %vm1168 = vcmp.gt.f32.partialorder %v1051, 0.0
    %vm1169 = vcmp.gt.f32.partialorder %v1054, 0.0
    %vm1170 = vcmp.gt.f32.partialorder %v1057, 0.0
    %vm1171 = vcmp.gt.f32.partialorder %v1060, 0.0
    %vm1172 = vcmp.gt.f32.partialorder %v1063, 0.0
    %vm1173 = vcmp.gt.f32.partialorder %v1066, 0.0
    %vm1174 = vcmp.gt.f32.partialorder %v1069, 0.0
    %vm1175 = vcmp.gt.f32.partialorder %v1072, 0.0
    %vm1176 = vcmp.gt.f32.partialorder %v1075, 0.0
    %vm1177 = vcmp.gt.f32.partialorder %v1078, 0.0
    %vm1178 = vcmp.gt.f32.partialorder %v1081, 0.0
    %vm1179 = vcmp.gt.f32.partialorder %v1084, 0.0
    %vm1180 = vcmp.gt.f32.partialorder %v1087, 0.0
    %vm1181 = vcmp.gt.f32.partialorder %v1090, 0.0
    %vm1182 = vcmp.gt.f32.partialorder %v1093, 0.0
    %vm1183 = vcmp.gt.f32.partialorder %v1096, 0.0
    %vm1184 = vcmp.gt.f32.partialorder %v1099, 0.0
    %vm1185 = vcmp.gt.f32.partialorder %v1102, 0.0
    %vm1186 = vcmp.gt.f32.partialorder %v1105, 0.0
    %vm1187 = vcmp.gt.f32.partialorder %v1108, 0.0
    %vm1188 = vcmp.gt.f32.partialorder %v1111, 0.0
    %vm1189 = vcmp.gt.f32.partialorder %v1114, 0.0
    %vm1190 = vcmp.gt.f32.partialorder %v1117, 0.0
    %vm1191 = vcmp.gt.f32.partialorder %v1120, 0.0
    %vm1192 = vcmp.gt.f32.partialorder %v1123, 0.0
    %vm1193 = vcmp.gt.f32.partialorder %v1126, 0.0
    %vm1194 = vcmp.gt.f32.partialorder %v1129, 0.0
    %v1195 = vstv %s47
    %v1196 = vmul.f32 %v1195, %v940
    %v1197 = vmul.f32 %v1195, %v943
    %v1198 = vmul.f32 %v1195, %v946
    %v1199 = vmul.f32 %v1195, %v949
    %v1200 = vmul.f32 %v1195, %v952
    %v1201 = vmul.f32 %v1195, %v955
    %v1202 = vmul.f32 %v1195, %v958
    %v1203 = vmul.f32 %v1195, %v961
    %v1204 = vmul.f32 %v1195, %v964
    %v1205 = vmul.f32 %v1195, %v967
    %v1206 = vmul.f32 %v1195, %v970
    %v1207 = vmul.f32 %v1195, %v973
    %v1208 = vmul.f32 %v1195, %v976
    %v1209 = vmul.f32 %v1195, %v979
    %v1210 = vmul.f32 %v1195, %v982
    %v1211 = vmul.f32 %v1195, %v985
    %v1212 = vmul.f32 %v1195, %v988
    %v1213 = vmul.f32 %v1195, %v991
    %v1214 = vmul.f32 %v1195, %v994
    %v1215 = vmul.f32 %v1195, %v997
    %v1216 = vmul.f32 %v1195, %v1000
    %v1217 = vmul.f32 %v1195, %v1003
    %v1218 = vmul.f32 %v1195, %v1006
    %v1219 = vmul.f32 %v1195, %v1009
    %v1220 = vmul.f32 %v1195, %v1012
    %v1221 = vmul.f32 %v1195, %v1015
    %v1222 = vmul.f32 %v1195, %v1018
    %v1223 = vmul.f32 %v1195, %v1021
    %v1224 = vmul.f32 %v1195, %v1024
    %v1225 = vmul.f32 %v1195, %v1027
    %v1226 = vmul.f32 %v1195, %v1030
    %v1227 = vmul.f32 %v1195, %v1033
    %v1228 = vmul.f32 %v1195, %v1036
    %v1229 = vmul.f32 %v1195, %v1039
    %v1230 = vmul.f32 %v1195, %v1042
    %v1231 = vmul.f32 %v1195, %v1045
    %v1232 = vmul.f32 %v1195, %v1048
    %v1233 = vmul.f32 %v1195, %v1051
    %v1234 = vmul.f32 %v1195, %v1054
    %v1235 = vmul.f32 %v1195, %v1057
    %v1236 = vmul.f32 %v1195, %v1060
    %v1237 = vmul.f32 %v1195, %v1063
    %v1238 = vmul.f32 %v1195, %v1066
    %v1239 = vmul.f32 %v1195, %v1069
    %v1240 = vmul.f32 %v1195, %v1072
    %v1241 = vmul.f32 %v1195, %v1075
    %v1242 = vmul.f32 %v1195, %v1078
    %v1243 = vmul.f32 %v1195, %v1081
    %v1244 = vmul.f32 %v1195, %v1084
    %v1245 = vmul.f32 %v1195, %v1087
    %v1246 = vmul.f32 %v1195, %v1090
    %v1247 = vmul.f32 %v1195, %v1093
    %v1248 = vmul.f32 %v1195, %v1096
    %v1249 = vmul.f32 %v1195, %v1099
    %v1250 = vmul.f32 %v1195, %v1102
    %v1251 = vmul.f32 %v1195, %v1105
    %v1252 = vmul.f32 %v1195, %v1108
    %v1253 = vmul.f32 %v1195, %v1111
    %v1254 = vmul.f32 %v1195, %v1114
    %v1255 = vmul.f32 %v1195, %v1117
    %v1256 = vmul.f32 %v1195, %v1120
    %v1257 = vmul.f32 %v1195, %v1123
    %v1258 = vmul.f32 %v1195, %v1126
    %v1259 = vmul.f32 %v1195, %v1129
    %v1260 = vsel %vm1131, %v940, %v1196
    %v1261 = vsel %vm1132, %v943, %v1197
    %v1262 = vsel %vm1133, %v946, %v1198
    %v1263 = vsel %vm1134, %v949, %v1199
    %v1264 = vsel %vm1135, %v952, %v1200
    %v1265 = vsel %vm1136, %v955, %v1201
    %v1266 = vsel %vm1137, %v958, %v1202
    %v1267 = vsel %vm1138, %v961, %v1203
    %v1268 = vsel %vm1139, %v964, %v1204
    %v1269 = vsel %vm1140, %v967, %v1205
    %v1270 = vsel %vm1141, %v970, %v1206
    %v1271 = vsel %vm1142, %v973, %v1207
    %v1272 = vsel %vm1143, %v976, %v1208
    %v1273 = vsel %vm1144, %v979, %v1209
    %v1274 = vsel %vm1145, %v982, %v1210
    %v1275 = vsel %vm1146, %v985, %v1211
    %v1276 = vsel %vm1147, %v988, %v1212
    %v1277 = vsel %vm1148, %v991, %v1213
    %v1278 = vsel %vm1149, %v994, %v1214
    %v1279 = vsel %vm1150, %v997, %v1215
    %v1280 = vsel %vm1151, %v1000, %v1216
    %v1281 = vsel %vm1152, %v1003, %v1217
    %v1282 = vsel %vm1153, %v1006, %v1218
    %v1283 = vsel %vm1154, %v1009, %v1219
    %v1284 = vsel %vm1155, %v1012, %v1220
    %v1285 = vsel %vm1156, %v1015, %v1221
    %v1286 = vsel %vm1157, %v1018, %v1222
    %v1287 = vsel %vm1158, %v1021, %v1223
    %v1288 = vsel %vm1159, %v1024, %v1224
    %v1289 = vsel %vm1160, %v1027, %v1225
    %v1290 = vsel %vm1161, %v1030, %v1226
    %v1291 = vsel %vm1162, %v1033, %v1227
    %v1292 = vsel %vm1163, %v1036, %v1228
    %v1293 = vsel %vm1164, %v1039, %v1229
    %v1294 = vsel %vm1165, %v1042, %v1230
    %v1295 = vsel %vm1166, %v1045, %v1231
    %v1296 = vsel %vm1167, %v1048, %v1232
    %v1297 = vsel %vm1168, %v1051, %v1233
    %v1298 = vsel %vm1169, %v1054, %v1234
    %v1299 = vsel %vm1170, %v1057, %v1235
    %v1300 = vsel %vm1171, %v1060, %v1236
    %v1301 = vsel %vm1172, %v1063, %v1237
    %v1302 = vsel %vm1173, %v1066, %v1238
    %v1303 = vsel %vm1174, %v1069, %v1239
    %v1304 = vsel %vm1175, %v1072, %v1240
    %v1305 = vsel %vm1176, %v1075, %v1241
    %v1306 = vsel %vm1177, %v1078, %v1242
    %v1307 = vsel %vm1178, %v1081, %v1243
    %v1308 = vsel %vm1179, %v1084, %v1244
    %v1309 = vsel %vm1180, %v1087, %v1245
    %v1310 = vsel %vm1181, %v1090, %v1246
    %v1311 = vsel %vm1182, %v1093, %v1247
    %v1312 = vsel %vm1183, %v1096, %v1248
    %v1313 = vsel %vm1184, %v1099, %v1249
    %v1314 = vsel %vm1185, %v1102, %v1250
    %v1315 = vsel %vm1186, %v1105, %v1251
    %v1316 = vsel %vm1187, %v1108, %v1252
    %v1317 = vsel %vm1188, %v1111, %v1253
    %v1318 = vsel %vm1189, %v1114, %v1254
    %v1319 = vsel %vm1190, %v1117, %v1255
    %v1320 = vsel %vm1191, %v1120, %v1256
    %v1321 = vsel %vm1192, %v1123, %v1257
    %v1322 = vsel %vm1193, %v1126, %v1258
    %v1323 = vsel %vm1194, %v1129, %v1259
    %v1324 = vld [vmem:[%s6] sm:$0xff]
    %v1325 = vld [vmem:[%s6 + $0x8] sm:$0xff]
    %v1326 = vld [vmem:[%s7] sm:$0x1]
    %v1328 = vperm.slane %v1326, 0
    %vm1330 = vcmask 130048
    %v1332 = vsel %vm1330, %v1260, 0
    %v1335 = vsel %vm1330, %v1261, 0
    %v1338 = vsel %vm1330, %v1262, 0
    %v1341 = vsel %vm1330, %v1263, 0
    %v1344 = vsel %vm1330, %v1264, 0
    %v1347 = vsel %vm1330, %v1265, 0
    %v1350 = vsel %vm1330, %v1266, 0
    %v1353 = vsel %vm1330, %v1267, 0
    %v1356 = vsel %vm1330, %v1268, 0
    %v1359 = vsel %vm1330, %v1269, 0
    %v1362 = vsel %vm1330, %v1270, 0
    %v1365 = vsel %vm1330, %v1271, 0
    %v1368 = vsel %vm1330, %v1272, 0
    %v1371 = vsel %vm1330, %v1273, 0
    %v1374 = vsel %vm1330, %v1274, 0
    %v1377 = vsel %vm1330, %v1275, 0
    %v1380 = vsel %vm1330, %v1276, 0
    %v1383 = vsel %vm1330, %v1277, 0
    %v1386 = vsel %vm1330, %v1278, 0
    %v1389 = vsel %vm1330, %v1279, 0
    %v1392 = vsel %vm1330, %v1280, 0
    %v1395 = vsel %vm1330, %v1281, 0
    %v1398 = vsel %vm1330, %v1282, 0
    %v1401 = vsel %vm1330, %v1283, 0
    %v1404 = vsel %vm1330, %v1284, 0
    %v1407 = vsel %vm1330, %v1285, 0
    %v1410 = vsel %vm1330, %v1286, 0
    %v1413 = vsel %vm1330, %v1287, 0
    %v1416 = vsel %vm1330, %v1288, 0
    %v1419 = vsel %vm1330, %v1289, 0
    %v1422 = vsel %vm1330, %v1290, 0
    %v1425 = vsel %vm1330, %v1291, 0
    %v1428 = vsel %vm1330, %v1292, 0
    %v1431 = vsel %vm1330, %v1293, 0
    %v1434 = vsel %vm1330, %v1294, 0
    %v1437 = vsel %vm1330, %v1295, 0
    %v1440 = vsel %vm1330, %v1296, 0
    %v1443 = vsel %vm1330, %v1297, 0
    %v1446 = vsel %vm1330, %v1298, 0
    %v1449 = vsel %vm1330, %v1299, 0
    %v1452 = vsel %vm1330, %v1300, 0
    %v1455 = vsel %vm1330, %v1301, 0
    %v1458 = vsel %vm1330, %v1302, 0
    %v1461 = vsel %vm1330, %v1303, 0
    %v1464 = vsel %vm1330, %v1304, 0
    %v1467 = vsel %vm1330, %v1305, 0
    %v1470 = vsel %vm1330, %v1306, 0
    %v1473 = vsel %vm1330, %v1307, 0
    %v1476 = vsel %vm1330, %v1308, 0
    %v1479 = vsel %vm1330, %v1309, 0
    %v1482 = vsel %vm1330, %v1310, 0
    %v1485 = vsel %vm1330, %v1311, 0
    %v1488 = vsel %vm1330, %v1312, 0
    %v1491 = vsel %vm1330, %v1313, 0
    %v1494 = vsel %vm1330, %v1314, 0
    %v1497 = vsel %vm1330, %v1315, 0
    %v1500 = vsel %vm1330, %v1316, 0
    %v1503 = vsel %vm1330, %v1317, 0
    %v1506 = vsel %vm1330, %v1318, 0
    %v1509 = vsel %vm1330, %v1319, 0
    %v1512 = vsel %vm1330, %v1320, 0
    %v1515 = vsel %vm1330, %v1321, 0
    %v1518 = vsel %vm1330, %v1322, 0
    %v1521 = vsel %vm1330, %v1323, 0
    %1523 = vmatpush.msra.mxu0 0.0
    %1524 = vmatpush.msra.mxu0 0.0
    %1525 = vmatpush.msra.mxu0 0.0
    %1526 = vmatpush.msra.mxu0 0.0
    %1527 = vmatpush.msra.mxu0 0.0
    %1528 = vmatpush.msra.mxu0 0.0
    %1529 = vmatpush.msra.mxu0 0.0
    %1530 = vmatpush.msra.mxu0 0.0
    %1531 = vmatpush.msra.mxu0 0.0
    %1532 = vmatpush.msra.mxu0 0.0
    %1533 = vmatpush.msra.mxu0 0.0
    %1534 = vmatpush.msra.mxu0 0.0
    %1535 = vmatpush.msra.mxu0 0.0
    %1536 = vmatpush.msra.mxu0 0.0
    %1537 = vmatpush.msra.mxu0 %v1325
    %1538 = vmatpush.msra.mxu0 %v1324
    %1539 = vmatmul.f32.gmra.mxu0 %v1332
    %v1540 = vpop.f32.mrf.mxu0
    %v1541 = vadd.f32 %v1328, %v1540
    %1542 = vmatmul.f32.gmra.mxu0 %v1335
    %v1543 = vpop.f32.mrf.mxu0
    %v1544 = vadd.f32 %v1328, %v1543
    %1545 = vmatmul.f32.gmra.mxu0 %v1338
    %v1546 = vpop.f32.mrf.mxu0
    %v1547 = vadd.f32 %v1328, %v1546
    %1548 = vmatmul.f32.gmra.mxu0 %v1341
    %v1549 = vpop.f32.mrf.mxu0
    %v1550 = vadd.f32 %v1328, %v1549
    %1551 = vmatmul.f32.gmra.mxu0 %v1344
    %v1552 = vpop.f32.mrf.mxu0
    %v1553 = vadd.f32 %v1328, %v1552
    %1554 = vmatmul.f32.gmra.mxu0 %v1347
    %v1555 = vpop.f32.mrf.mxu0
    %v1556 = vadd.f32 %v1328, %v1555
    %1557 = vmatmul.f32.gmra.mxu0 %v1350
    %v1558 = vpop.f32.mrf.mxu0
    %v1559 = vadd.f32 %v1328, %v1558
    %1560 = vmatmul.f32.gmra.mxu0 %v1353
    %v1561 = vpop.f32.mrf.mxu0
    %v1562 = vadd.f32 %v1328, %v1561
    %1563 = vmatmul.f32.gmra.mxu0 %v1356
    %v1564 = vpop.f32.mrf.mxu0
    %v1565 = vadd.f32 %v1328, %v1564
    %1566 = vmatmul.f32.gmra.mxu0 %v1359
    %v1567 = vpop.f32.mrf.mxu0
    %v1568 = vadd.f32 %v1328, %v1567
    %1569 = vmatmul.f32.gmra.mxu0 %v1362
    %v1570 = vpop.f32.mrf.mxu0
    %v1571 = vadd.f32 %v1328, %v1570
    %1572 = vmatmul.f32.gmra.mxu0 %v1365
    %v1573 = vpop.f32.mrf.mxu0
    %v1574 = vadd.f32 %v1328, %v1573
    %1575 = vmatmul.f32.gmra.mxu0 %v1368
    %v1576 = vpop.f32.mrf.mxu0
    %v1577 = vadd.f32 %v1328, %v1576
    %1578 = vmatmul.f32.gmra.mxu0 %v1371
    %v1579 = vpop.f32.mrf.mxu0
    %v1580 = vadd.f32 %v1328, %v1579
    %1581 = vmatmul.f32.gmra.mxu0 %v1374
    %v1582 = vpop.f32.mrf.mxu0
    %v1583 = vadd.f32 %v1328, %v1582
    %1584 = vmatmul.f32.gmra.mxu0 %v1377
    %v1585 = vpop.f32.mrf.mxu0
    %v1586 = vadd.f32 %v1328, %v1585
    %1587 = vmatmul.f32.gmra.mxu0 %v1380
    %v1588 = vpop.f32.mrf.mxu0
    %v1589 = vadd.f32 %v1328, %v1588
    %1590 = vmatmul.f32.gmra.mxu0 %v1383
    %v1591 = vpop.f32.mrf.mxu0
    %v1592 = vadd.f32 %v1328, %v1591
    %1593 = vmatmul.f32.gmra.mxu0 %v1386
    %v1594 = vpop.f32.mrf.mxu0
    %v1595 = vadd.f32 %v1328, %v1594
    %1596 = vmatmul.f32.gmra.mxu0 %v1389
    %v1597 = vpop.f32.mrf.mxu0
    %v1598 = vadd.f32 %v1328, %v1597
    %1599 = vmatmul.f32.gmra.mxu0 %v1392
    %v1600 = vpop.f32.mrf.mxu0
    %v1601 = vadd.f32 %v1328, %v1600
    %1602 = vmatmul.f32.gmra.mxu0 %v1395
    %v1603 = vpop.f32.mrf.mxu0
    %v1604 = vadd.f32 %v1328, %v1603
    %1605 = vmatmul.f32.gmra.mxu0 %v1398
    %v1606 = vpop.f32.mrf.mxu0
    %v1607 = vadd.f32 %v1328, %v1606
    %1608 = vmatmul.f32.gmra.mxu0 %v1401
    %v1609 = vpop.f32.mrf.mxu0
    %v1610 = vadd.f32 %v1328, %v1609
    %1611 = vmatmul.f32.gmra.mxu0 %v1404
    %v1612 = vpop.f32.mrf.mxu0
    %v1613 = vadd.f32 %v1328, %v1612
    %1614 = vmatmul.f32.gmra.mxu0 %v1407
    %v1615 = vpop.f32.mrf.mxu0
    %v1616 = vadd.f32 %v1328, %v1615
    %1617 = vmatmul.f32.gmra.mxu0 %v1410
    %v1618 = vpop.f32.mrf.mxu0
    %v1619 = vadd.f32 %v1328, %v1618
    %1620 = vmatmul.f32.gmra.mxu0 %v1413
    %v1621 = vpop.f32.mrf.mxu0
    %v1622 = vadd.f32 %v1328, %v1621
    %1623 = vmatmul.f32.gmra.mxu0 %v1416
    %v1624 = vpop.f32.mrf.mxu0
    %v1625 = vadd.f32 %v1328, %v1624
    %1626 = vmatmul.f32.gmra.mxu0 %v1419
    %v1627 = vpop.f32.mrf.mxu0
    %v1628 = vadd.f32 %v1328, %v1627
    %1629 = vmatmul.f32.gmra.mxu0 %v1422
    %v1630 = vpop.f32.mrf.mxu0
    %v1631 = vadd.f32 %v1328, %v1630
    %1632 = vmatmul.f32.gmra.mxu0 %v1425
    %v1633 = vpop.f32.mrf.mxu0
    %v1634 = vadd.f32 %v1328, %v1633
    %1635 = vmatmul.f32.gmra.mxu0 %v1428
    %v1636 = vpop.f32.mrf.mxu0
    %v1637 = vadd.f32 %v1328, %v1636
    %1638 = vmatmul.f32.gmra.mxu0 %v1431
    %v1639 = vpop.f32.mrf.mxu0
    %v1640 = vadd.f32 %v1328, %v1639
    %1641 = vmatmul.f32.gmra.mxu0 %v1434
    %v1642 = vpop.f32.mrf.mxu0
    %v1643 = vadd.f32 %v1328, %v1642
    %1644 = vmatmul.f32.gmra.mxu0 %v1437
    %v1645 = vpop.f32.mrf.mxu0
    %v1646 = vadd.f32 %v1328, %v1645
    %1647 = vmatmul.f32.gmra.mxu0 %v1440
    %v1648 = vpop.f32.mrf.mxu0
    %v1649 = vadd.f32 %v1328, %v1648
    %1650 = vmatmul.f32.gmra.mxu0 %v1443
    %v1651 = vpop.f32.mrf.mxu0
    %v1652 = vadd.f32 %v1328, %v1651
    %1653 = vmatmul.f32.gmra.mxu0 %v1446
    %v1654 = vpop.f32.mrf.mxu0
    %v1655 = vadd.f32 %v1328, %v1654
    %1656 = vmatmul.f32.gmra.mxu0 %v1449
    %v1657 = vpop.f32.mrf.mxu0
    %v1658 = vadd.f32 %v1328, %v1657
    %1659 = vmatmul.f32.gmra.mxu0 %v1452
    %v1660 = vpop.f32.mrf.mxu0
    %v1661 = vadd.f32 %v1328, %v1660
    %1662 = vmatmul.f32.gmra.mxu0 %v1455
    %v1663 = vpop.f32.mrf.mxu0
    %v1664 = vadd.f32 %v1328, %v1663
    %1665 = vmatmul.f32.gmra.mxu0 %v1458
    %v1666 = vpop.f32.mrf.mxu0
    %v1667 = vadd.f32 %v1328, %v1666
    %1668 = vmatmul.f32.gmra.mxu0 %v1461
    %v1669 = vpop.f32.mrf.mxu0
    %v1670 = vadd.f32 %v1328, %v1669
    %1671 = vmatmul.f32.gmra.mxu0 %v1464
    %v1672 = vpop.f32.mrf.mxu0
    %v1673 = vadd.f32 %v1328, %v1672
    %1674 = vmatmul.f32.gmra.mxu0 %v1467
    %v1675 = vpop.f32.mrf.mxu0
    %v1676 = vadd.f32 %v1328, %v1675
    %1677 = vmatmul.f32.gmra.mxu0 %v1470
    %v1678 = vpop.f32.mrf.mxu0
    %v1679 = vadd.f32 %v1328, %v1678
    %1680 = vmatmul.f32.gmra.mxu0 %v1473
    %v1681 = vpop.f32.mrf.mxu0
    %v1682 = vadd.f32 %v1328, %v1681
    %1683 = vmatmul.f32.gmra.mxu0 %v1476
    %v1684 = vpop.f32.mrf.mxu0
    %v1685 = vadd.f32 %v1328, %v1684
    %1686 = vmatmul.f32.gmra.mxu0 %v1479
    %v1687 = vpop.f32.mrf.mxu0
    %v1688 = vadd.f32 %v1328, %v1687
    %1689 = vmatmul.f32.gmra.mxu0 %v1482
    %v1690 = vpop.f32.mrf.mxu0
    %v1691 = vadd.f32 %v1328, %v1690
    %1692 = vmatmul.f32.gmra.mxu0 %v1485
    %v1693 = vpop.f32.mrf.mxu0
    %v1694 = vadd.f32 %v1328, %v1693
    %1695 = vmatmul.f32.gmra.mxu0 %v1488
    %v1696 = vpop.f32.mrf.mxu0
    %v1697 = vadd.f32 %v1328, %v1696
    %1698 = vmatmul.f32.gmra.mxu0 %v1491
    %v1699 = vpop.f32.mrf.mxu0
    %v1700 = vadd.f32 %v1328, %v1699
    %1701 = vmatmul.f32.gmra.mxu0 %v1494
    %v1702 = vpop.f32.mrf.mxu0
    %v1703 = vadd.f32 %v1328, %v1702
    %1704 = vmatmul.f32.gmra.mxu0 %v1497
    %v1705 = vpop.f32.mrf.mxu0
    %v1706 = vadd.f32 %v1328, %v1705
    %1707 = vmatmul.f32.gmra.mxu0 %v1500
    %v1708 = vpop.f32.mrf.mxu0
    %v1709 = vadd.f32 %v1328, %v1708
    %1710 = vmatmul.f32.gmra.mxu0 %v1503
    %v1711 = vpop.f32.mrf.mxu0
    %v1712 = vadd.f32 %v1328, %v1711
    %1713 = vmatmul.f32.gmra.mxu0 %v1506
    %v1714 = vpop.f32.mrf.mxu0
    %v1715 = vadd.f32 %v1328, %v1714
    %1716 = vmatmul.f32.gmra.mxu0 %v1509
    %v1717 = vpop.f32.mrf.mxu0
    %v1718 = vadd.f32 %v1328, %v1717
    %1719 = vmatmul.f32.gmra.mxu0 %v1512
    %v1720 = vpop.f32.mrf.mxu0
    %v1721 = vadd.f32 %v1328, %v1720
    %1722 = vmatmul.f32.gmra.mxu0 %v1515
    %v1723 = vpop.f32.mrf.mxu0
    %v1724 = vadd.f32 %v1328, %v1723
    %1725 = vmatmul.f32.gmra.mxu0 %v1518
    %v1726 = vpop.f32.mrf.mxu0
    %v1727 = vadd.f32 %v1328, %v1726
    %1728 = vmatmul.f32.gmra.mxu0 %v1521
    %v1729 = vpop.f32.mrf.mxu0
    %v1730 = vadd.f32 %v1328, %v1729
    %1731 = vdwg.mxu0
    %v1732 = vld [vmem:[%s1] sm:$0xff]
    %v1733 = vld [vmem:[%s1 + $0x8] sm:$0xff]
    %v1734 = vld [vmem:[%s1 + $0x10] sm:$0xff]
    %v1735 = vld [vmem:[%s1 + $0x18] sm:$0xff]
    %v1736 = vld [vmem:[%s1 + $0x20] sm:$0xff]
    %v1737 = vld [vmem:[%s1 + $0x28] sm:$0xff]
    %v1738 = vld [vmem:[%s1 + $0x30] sm:$0xff]
    %v1739 = vld [vmem:[%s1 + $0x38] sm:$0xff]
    %v1740 = vld [vmem:[%s1 + $0x40] sm:$0xff]
    %v1741 = vld [vmem:[%s1 + $0x48] sm:$0xff]
    %v1742 = vld [vmem:[%s1 + $0x50] sm:$0xff]
    %v1743 = vld [vmem:[%s1 + $0x58] sm:$0xff]
    %v1744 = vld [vmem:[%s1 + $0x60] sm:$0xff]
    %v1745 = vld [vmem:[%s1 + $0x68] sm:$0xff]
    %v1746 = vld [vmem:[%s1 + $0x70] sm:$0xff]
    %v1747 = vld [vmem:[%s1 + $0x78] sm:$0xff]
    %v1748 = vunpack.c.0.s8 %v1732
    %v1749 = vunpack.c.1.s8 %v1732
    %v1750 = vunpack.c.2.s8 %v1732
    %v1751 = vunpack.c.3.s8 %v1732
    %v1752 = vunpack.c.0.s8 %v1733
    %v1753 = vunpack.c.1.s8 %v1733
    %v1754 = vunpack.c.2.s8 %v1733
    %v1755 = vunpack.c.3.s8 %v1733
    %v1756 = vunpack.c.0.s8 %v1734
    %v1757 = vunpack.c.1.s8 %v1734
    %v1758 = vunpack.c.2.s8 %v1734
    %v1759 = vunpack.c.3.s8 %v1734
    %v1760 = vunpack.c.0.s8 %v1735
    %v1761 = vunpack.c.1.s8 %v1735
    %v1762 = vunpack.c.2.s8 %v1735
    %v1763 = vunpack.c.3.s8 %v1735
    %v1764 = vunpack.c.0.s8 %v1736
    %v1765 = vunpack.c.1.s8 %v1736
    %v1766 = vunpack.c.2.s8 %v1736
    %v1767 = vunpack.c.3.s8 %v1736
    %v1768 = vunpack.c.0.s8 %v1737
    %v1769 = vunpack.c.1.s8 %v1737
    %v1770 = vunpack.c.2.s8 %v1737
    %v1771 = vunpack.c.3.s8 %v1737
    %v1772 = vunpack.c.0.s8 %v1738
    %v1773 = vunpack.c.1.s8 %v1738
    %v1774 = vunpack.c.2.s8 %v1738
    %v1775 = vunpack.c.3.s8 %v1738
    %v1776 = vunpack.c.0.s8 %v1739
    %v1777 = vunpack.c.1.s8 %v1739
    %v1778 = vunpack.c.2.s8 %v1739
    %v1779 = vunpack.c.3.s8 %v1739
    %v1780 = vunpack.c.0.s8 %v1740
    %v1781 = vunpack.c.1.s8 %v1740
    %v1782 = vunpack.c.2.s8 %v1740
    %v1783 = vunpack.c.3.s8 %v1740
    %v1784 = vunpack.c.0.s8 %v1741
    %v1785 = vunpack.c.1.s8 %v1741
    %v1786 = vunpack.c.2.s8 %v1741
    %v1787 = vunpack.c.3.s8 %v1741
    %v1788 = vunpack.c.0.s8 %v1742
    %v1789 = vunpack.c.1.s8 %v1742
    %v1790 = vunpack.c.2.s8 %v1742
    %v1791 = vunpack.c.3.s8 %v1742
    %v1792 = vunpack.c.0.s8 %v1743
    %v1793 = vunpack.c.1.s8 %v1743
    %v1794 = vunpack.c.2.s8 %v1743
    %v1795 = vunpack.c.3.s8 %v1743
    %v1796 = vunpack.c.0.s8 %v1744
    %v1797 = vunpack.c.1.s8 %v1744
    %v1798 = vunpack.c.2.s8 %v1744
    %v1799 = vunpack.c.3.s8 %v1744
    %v1800 = vunpack.c.0.s8 %v1745
    %v1801 = vunpack.c.1.s8 %v1745
    %v1802 = vunpack.c.2.s8 %v1745
    %v1803 = vunpack.c.3.s8 %v1745
    %v1804 = vunpack.c.0.s8 %v1746
    %v1805 = vunpack.c.1.s8 %v1746
    %v1806 = vunpack.c.2.s8 %v1746
    %v1807 = vunpack.c.3.s8 %v1746
    %v1808 = vunpack.c.0.s8 %v1747
    %v1809 = vunpack.c.1.s8 %v1747
    %v1810 = vunpack.c.2.s8 %v1747
    %v1811 = vunpack.c.3.s8 %v1747
    %vm1812 = vcmp.eq.s32.totalorder %v1748, 0
    %vm1813 = vcmp.eq.s32.totalorder %v1749, 0
    %vm1814 = vcmp.eq.s32.totalorder %v1750, 0
    %vm1815 = vcmp.eq.s32.totalorder %v1751, 0
    %vm1816 = vcmp.eq.s32.totalorder %v1752, 0
    %vm1817 = vcmp.eq.s32.totalorder %v1753, 0
    %vm1818 = vcmp.eq.s32.totalorder %v1754, 0
    %vm1819 = vcmp.eq.s32.totalorder %v1755, 0
    %vm1820 = vcmp.eq.s32.totalorder %v1756, 0
    %vm1821 = vcmp.eq.s32.totalorder %v1757, 0
    %vm1822 = vcmp.eq.s32.totalorder %v1758, 0
    %vm1823 = vcmp.eq.s32.totalorder %v1759, 0
    %vm1824 = vcmp.eq.s32.totalorder %v1760, 0
    %vm1825 = vcmp.eq.s32.totalorder %v1761, 0
    %vm1826 = vcmp.eq.s32.totalorder %v1762, 0
    %vm1827 = vcmp.eq.s32.totalorder %v1763, 0
    %vm1828 = vcmp.eq.s32.totalorder %v1764, 0
    %vm1829 = vcmp.eq.s32.totalorder %v1765, 0
    %vm1830 = vcmp.eq.s32.totalorder %v1766, 0
    %vm1831 = vcmp.eq.s32.totalorder %v1767, 0
    %vm1832 = vcmp.eq.s32.totalorder %v1768, 0
    %vm1833 = vcmp.eq.s32.totalorder %v1769, 0
    %vm1834 = vcmp.eq.s32.totalorder %v1770, 0
    %vm1835 = vcmp.eq.s32.totalorder %v1771, 0
    %vm1836 = vcmp.eq.s32.totalorder %v1772, 0
    %vm1837 = vcmp.eq.s32.totalorder %v1773, 0
    %vm1838 = vcmp.eq.s32.totalorder %v1774, 0
    %vm1839 = vcmp.eq.s32.totalorder %v1775, 0
    %vm1840 = vcmp.eq.s32.totalorder %v1776, 0
    %vm1841 = vcmp.eq.s32.totalorder %v1777, 0
    %vm1842 = vcmp.eq.s32.totalorder %v1778, 0
    %vm1843 = vcmp.eq.s32.totalorder %v1779, 0
    %vm1844 = vcmp.eq.s32.totalorder %v1780, 0
    %vm1845 = vcmp.eq.s32.totalorder %v1781, 0
    %vm1846 = vcmp.eq.s32.totalorder %v1782, 0
    %vm1847 = vcmp.eq.s32.totalorder %v1783, 0
    %vm1848 = vcmp.eq.s32.totalorder %v1784, 0
    %vm1849 = vcmp.eq.s32.totalorder %v1785, 0
    %vm1850 = vcmp.eq.s32.totalorder %v1786, 0
    %vm1851 = vcmp.eq.s32.totalorder %v1787, 0
    %vm1852 = vcmp.eq.s32.totalorder %v1788, 0
    %vm1853 = vcmp.eq.s32.totalorder %v1789, 0
    %vm1854 = vcmp.eq.s32.totalorder %v1790, 0
    %vm1855 = vcmp.eq.s32.totalorder %v1791, 0
    %vm1856 = vcmp.eq.s32.totalorder %v1792, 0
    %vm1857 = vcmp.eq.s32.totalorder %v1793, 0
    %vm1858 = vcmp.eq.s32.totalorder %v1794, 0
    %vm1859 = vcmp.eq.s32.totalorder %v1795, 0
    %vm1860 = vcmp.eq.s32.totalorder %v1796, 0
    %vm1861 = vcmp.eq.s32.totalorder %v1797, 0
    %vm1862 = vcmp.eq.s32.totalorder %v1798, 0
    %vm1863 = vcmp.eq.s32.totalorder %v1799, 0
    %vm1864 = vcmp.eq.s32.totalorder %v1800, 0
    %vm1865 = vcmp.eq.s32.totalorder %v1801, 0
    %vm1866 = vcmp.eq.s32.totalorder %v1802, 0
    %vm1867 = vcmp.eq.s32.totalorder %v1803, 0
    %vm1868 = vcmp.eq.s32.totalorder %v1804, 0
    %vm1869 = vcmp.eq.s32.totalorder %v1805, 0
    %vm1870 = vcmp.eq.s32.totalorder %v1806, 0
    %vm1871 = vcmp.eq.s32.totalorder %v1807, 0
    %vm1872 = vcmp.eq.s32.totalorder %v1808, 0
    %vm1873 = vcmp.eq.s32.totalorder %v1809, 0
    %vm1874 = vcmp.eq.s32.totalorder %v1810, 0
    %vm1875 = vcmp.eq.s32.totalorder %v1811, 0
    %v1876 = vsel %vm1812, %v333, 0.0
    %v1877 = vsel %vm1813, %v336, 0.0
    %v1878 = vsel %vm1814, %v339, 0.0
    %v1879 = vsel %vm1815, %v342, 0.0
    %v1880 = vsel %vm1816, %v345, 0.0
    %v1881 = vsel %vm1817, %v348, 0.0
    %v1882 = vsel %vm1818, %v351, 0.0
    %v1883 = vsel %vm1819, %v354, 0.0
    %v1884 = vsel %vm1820, %v357, 0.0
    %v1885 = vsel %vm1821, %v360, 0.0
    %v1886 = vsel %vm1822, %v363, 0.0
    %v1887 = vsel %vm1823, %v366, 0.0
    %v1888 = vsel %vm1824, %v369, 0.0
    %v1889 = vsel %vm1825, %v372, 0.0
    %v1890 = vsel %vm1826, %v375, 0.0
    %v1891 = vsel %vm1827, %v378, 0.0
    %v1892 = vsel %vm1828, %v381, 0.0
    %v1893 = vsel %vm1829, %v384, 0.0
    %v1894 = vsel %vm1830, %v387, 0.0
    %v1895 = vsel %vm1831, %v390, 0.0
    %v1896 = vsel %vm1832, %v393, 0.0
    %v1897 = vsel %vm1833, %v396, 0.0
    %v1898 = vsel %vm1834, %v399, 0.0
    %v1899 = vsel %vm1835, %v402, 0.0
    %v1900 = vsel %vm1836, %v405, 0.0
    %v1901 = vsel %vm1837, %v408, 0.0
    %v1902 = vsel %vm1838, %v411, 0.0
    %v1903 = vsel %vm1839, %v414, 0.0
    %v1904 = vsel %vm1840, %v417, 0.0
    %v1905 = vsel %vm1841, %v420, 0.0
    %v1906 = vsel %vm1842, %v423, 0.0
    %v1907 = vsel %vm1843, %v426, 0.0
    %v1908 = vsel %vm1844, %v429, 0.0
    %v1909 = vsel %vm1845, %v432, 0.0
    %v1910 = vsel %vm1846, %v435, 0.0
    %v1911 = vsel %vm1847, %v438, 0.0
    %v1912 = vsel %vm1848, %v441, 0.0
    %v1913 = vsel %vm1849, %v444, 0.0
    %v1914 = vsel %vm1850, %v447, 0.0
    %v1915 = vsel %vm1851, %v450, 0.0
    %v1916 = vsel %vm1852, %v453, 0.0
    %v1917 = vsel %vm1853, %v456, 0.0
    %v1918 = vsel %vm1854, %v459, 0.0
    %v1919 = vsel %vm1855, %v462, 0.0
    %v1920 = vsel %vm1856, %v465, 0.0
    %v1921 = vsel %vm1857, %v468, 0.0
    %v1922 = vsel %vm1858, %v471, 0.0
    %v1923 = vsel %vm1859, %v474, 0.0
    %v1924 = vsel %vm1860, %v477, 0.0
    %v1925 = vsel %vm1861, %v480, 0.0
    %v1926 = vsel %vm1862, %v483, 0.0
    %v1927 = vsel %vm1863, %v486, 0.0
    %v1928 = vsel %vm1864, %v489, 0.0
    %v1929 = vsel %vm1865, %v492, 0.0
    %v1930 = vsel %vm1866, %v495, 0.0
    %v1931 = vsel %vm1867, %v498, 0.0
    %v1932 = vsel %vm1868, %v501, 0.0
    %v1933 = vsel %vm1869, %v504, 0.0
    %v1934 = vsel %vm1870, %v507, 0.0
    %v1935 = vsel %vm1871, %v510, 0.0
    %v1936 = vsel %vm1872, %v513, 0.0
    %v1937 = vsel %vm1873, %v516, 0.0
    %v1938 = vsel %vm1874, %v519, 0.0
    %v1939 = vsel %vm1875, %v522, 0.0
    %vm1940 = vcmp.eq.s32.totalorder %v1748, 1
    %vm1941 = vcmp.eq.s32.totalorder %v1749, 1
    %vm1942 = vcmp.eq.s32.totalorder %v1750, 1
    %vm1943 = vcmp.eq.s32.totalorder %v1751, 1
    %vm1944 = vcmp.eq.s32.totalorder %v1752, 1
    %vm1945 = vcmp.eq.s32.totalorder %v1753, 1
    %vm1946 = vcmp.eq.s32.totalorder %v1754, 1
    %vm1947 = vcmp.eq.s32.totalorder %v1755, 1
    %vm1948 = vcmp.eq.s32.totalorder %v1756, 1
    %vm1949 = vcmp.eq.s32.totalorder %v1757, 1
    %vm1950 = vcmp.eq.s32.totalorder %v1758, 1
    %vm1951 = vcmp.eq.s32.totalorder %v1759, 1
    %vm1952 = vcmp.eq.s32.totalorder %v1760, 1
    %vm1953 = vcmp.eq.s32.totalorder %v1761, 1
    %vm1954 = vcmp.eq.s32.totalorder %v1762, 1
    %vm1955 = vcmp.eq.s32.totalorder %v1763, 1
    %vm1956 = vcmp.eq.s32.totalorder %v1764, 1
    %vm1957 = vcmp.eq.s32.totalorder %v1765, 1
    %vm1958 = vcmp.eq.s32.totalorder %v1766, 1
    %vm1959 = vcmp.eq.s32.totalorder %v1767, 1
    %vm1960 = vcmp.eq.s32.totalorder %v1768, 1
    %vm1961 = vcmp.eq.s32.totalorder %v1769, 1
    %vm1962 = vcmp.eq.s32.totalorder %v1770, 1
    %vm1963 = vcmp.eq.s32.totalorder %v1771, 1
    %vm1964 = vcmp.eq.s32.totalorder %v1772, 1
    %vm1965 = vcmp.eq.s32.totalorder %v1773, 1
    %vm1966 = vcmp.eq.s32.totalorder %v1774, 1
    %vm1967 = vcmp.eq.s32.totalorder %v1775, 1
    %vm1968 = vcmp.eq.s32.totalorder %v1776, 1
    %vm1969 = vcmp.eq.s32.totalorder %v1777, 1
    %vm1970 = vcmp.eq.s32.totalorder %v1778, 1
    %vm1971 = vcmp.eq.s32.totalorder %v1779, 1
    %vm1972 = vcmp.eq.s32.totalorder %v1780, 1
    %vm1973 = vcmp.eq.s32.totalorder %v1781, 1
    %vm1974 = vcmp.eq.s32.totalorder %v1782, 1
    %vm1975 = vcmp.eq.s32.totalorder %v1783, 1
    %vm1976 = vcmp.eq.s32.totalorder %v1784, 1
    %vm1977 = vcmp.eq.s32.totalorder %v1785, 1
    %vm1978 = vcmp.eq.s32.totalorder %v1786, 1
    %vm1979 = vcmp.eq.s32.totalorder %v1787, 1
    %vm1980 = vcmp.eq.s32.totalorder %v1788, 1
    %vm1981 = vcmp.eq.s32.totalorder %v1789, 1
    %vm1982 = vcmp.eq.s32.totalorder %v1790, 1
    %vm1983 = vcmp.eq.s32.totalorder %v1791, 1
    %vm1984 = vcmp.eq.s32.totalorder %v1792, 1
    %vm1985 = vcmp.eq.s32.totalorder %v1793, 1
    %vm1986 = vcmp.eq.s32.totalorder %v1794, 1
    %vm1987 = vcmp.eq.s32.totalorder %v1795, 1
    %vm1988 = vcmp.eq.s32.totalorder %v1796, 1
    %vm1989 = vcmp.eq.s32.totalorder %v1797, 1
    %vm1990 = vcmp.eq.s32.totalorder %v1798, 1
    %vm1991 = vcmp.eq.s32.totalorder %v1799, 1
    %vm1992 = vcmp.eq.s32.totalorder %v1800, 1
    %vm1993 = vcmp.eq.s32.totalorder %v1801, 1
    %vm1994 = vcmp.eq.s32.totalorder %v1802, 1
    %vm1995 = vcmp.eq.s32.totalorder %v1803, 1
    %vm1996 = vcmp.eq.s32.totalorder %v1804, 1
    %vm1997 = vcmp.eq.s32.totalorder %v1805, 1
    %vm1998 = vcmp.eq.s32.totalorder %v1806, 1
    %vm1999 = vcmp.eq.s32.totalorder %v1807, 1
    %vm2000 = vcmp.eq.s32.totalorder %v1808, 1
    %vm2001 = vcmp.eq.s32.totalorder %v1809, 1
    %vm2002 = vcmp.eq.s32.totalorder %v1810, 1
    %vm2003 = vcmp.eq.s32.totalorder %v1811, 1
    %v2004 = vsel %vm1940, %v333, 0.0
    %v2005 = vsel %vm1941, %v336, 0.0
    %v2006 = vsel %vm1942, %v339, 0.0
    %v2007 = vsel %vm1943, %v342, 0.0
    %v2008 = vsel %vm1944, %v345, 0.0
    %v2009 = vsel %vm1945, %v348, 0.0
    %v2010 = vsel %vm1946, %v351, 0.0
    %v2011 = vsel %vm1947, %v354, 0.0
    %v2012 = vsel %vm1948, %v357, 0.0
    %v2013 = vsel %vm1949, %v360, 0.0
    %v2014 = vsel %vm1950, %v363, 0.0
    %v2015 = vsel %vm1951, %v366, 0.0
    %v2016 = vsel %vm1952, %v369, 0.0
    %v2017 = vsel %vm1953, %v372, 0.0
    %v2018 = vsel %vm1954, %v375, 0.0
    %v2019 = vsel %vm1955, %v378, 0.0
    %v2020 = vsel %vm1956, %v381, 0.0
    %v2021 = vsel %vm1957, %v384, 0.0
    %v2022 = vsel %vm1958, %v387, 0.0
    %v2023 = vsel %vm1959, %v390, 0.0
    %v2024 = vsel %vm1960, %v393, 0.0
    %v2025 = vsel %vm1961, %v396, 0.0
    %v2026 = vsel %vm1962, %v399, 0.0
    %v2027 = vsel %vm1963, %v402, 0.0
    %v2028 = vsel %vm1964, %v405, 0.0
    %v2029 = vsel %vm1965, %v408, 0.0
    %v2030 = vsel %vm1966, %v411, 0.0
    %v2031 = vsel %vm1967, %v414, 0.0
    %v2032 = vsel %vm1968, %v417, 0.0
    %v2033 = vsel %vm1969, %v420, 0.0
    %v2034 = vsel %vm1970, %v423, 0.0
    %v2035 = vsel %vm1971, %v426, 0.0
    %v2036 = vsel %vm1972, %v429, 0.0
    %v2037 = vsel %vm1973, %v432, 0.0
    %v2038 = vsel %vm1974, %v435, 0.0
    %v2039 = vsel %vm1975, %v438, 0.0
    %v2040 = vsel %vm1976, %v441, 0.0
    %v2041 = vsel %vm1977, %v444, 0.0
    %v2042 = vsel %vm1978, %v447, 0.0
    %v2043 = vsel %vm1979, %v450, 0.0
    %v2044 = vsel %vm1980, %v453, 0.0
    %v2045 = vsel %vm1981, %v456, 0.0
    %v2046 = vsel %vm1982, %v459, 0.0
    %v2047 = vsel %vm1983, %v462, 0.0
    %v2048 = vsel %vm1984, %v465, 0.0
    %v2049 = vsel %vm1985, %v468, 0.0
    %v2050 = vsel %vm1986, %v471, 0.0
    %v2051 = vsel %vm1987, %v474, 0.0
    %v2052 = vsel %vm1988, %v477, 0.0
    %v2053 = vsel %vm1989, %v480, 0.0
    %v2054 = vsel %vm1990, %v483, 0.0
    %v2055 = vsel %vm1991, %v486, 0.0
    %v2056 = vsel %vm1992, %v489, 0.0
    %v2057 = vsel %vm1993, %v492, 0.0
    %v2058 = vsel %vm1994, %v495, 0.0
    %v2059 = vsel %vm1995, %v498, 0.0
    %v2060 = vsel %vm1996, %v501, 0.0
    %v2061 = vsel %vm1997, %v504, 0.0
    %v2062 = vsel %vm1998, %v507, 0.0
    %v2063 = vsel %vm1999, %v510, 0.0
    %v2064 = vsel %vm2000, %v513, 0.0
    %v2065 = vsel %vm2001, %v516, 0.0
    %v2066 = vsel %vm2002, %v519, 0.0
    %v2067 = vsel %vm2003, %v522, 0.0
    %vm2068 = vcmp.eq.s32.totalorder %v1748, 2
    %vm2069 = vcmp.eq.s32.totalorder %v1749, 2
    %vm2070 = vcmp.eq.s32.totalorder %v1750, 2
    %vm2071 = vcmp.eq.s32.totalorder %v1751, 2
    %vm2072 = vcmp.eq.s32.totalorder %v1752, 2
    %vm2073 = vcmp.eq.s32.totalorder %v1753, 2
    %vm2074 = vcmp.eq.s32.totalorder %v1754, 2
    %vm2075 = vcmp.eq.s32.totalorder %v1755, 2
    %vm2076 = vcmp.eq.s32.totalorder %v1756, 2
    %vm2077 = vcmp.eq.s32.totalorder %v1757, 2
    %vm2078 = vcmp.eq.s32.totalorder %v1758, 2
    %vm2079 = vcmp.eq.s32.totalorder %v1759, 2
    %vm2080 = vcmp.eq.s32.totalorder %v1760, 2
    %vm2081 = vcmp.eq.s32.totalorder %v1761, 2
    %vm2082 = vcmp.eq.s32.totalorder %v1762, 2
    %vm2083 = vcmp.eq.s32.totalorder %v1763, 2
    %vm2084 = vcmp.eq.s32.totalorder %v1764, 2
    %vm2085 = vcmp.eq.s32.totalorder %v1765, 2
    %vm2086 = vcmp.eq.s32.totalorder %v1766, 2
    %vm2087 = vcmp.eq.s32.totalorder %v1767, 2
    %vm2088 = vcmp.eq.s32.totalorder %v1768, 2
    %vm2089 = vcmp.eq.s32.totalorder %v1769, 2
    %vm2090 = vcmp.eq.s32.totalorder %v1770, 2
    %vm2091 = vcmp.eq.s32.totalorder %v1771, 2
    %vm2092 = vcmp.eq.s32.totalorder %v1772, 2
    %vm2093 = vcmp.eq.s32.totalorder %v1773, 2
    %vm2094 = vcmp.eq.s32.totalorder %v1774, 2
    %vm2095 = vcmp.eq.s32.totalorder %v1775, 2
    %vm2096 = vcmp.eq.s32.totalorder %v1776, 2
    %vm2097 = vcmp.eq.s32.totalorder %v1777, 2
    %vm2098 = vcmp.eq.s32.totalorder %v1778, 2
    %vm2099 = vcmp.eq.s32.totalorder %v1779, 2
    %vm2100 = vcmp.eq.s32.totalorder %v1780, 2
    %vm2101 = vcmp.eq.s32.totalorder %v1781, 2
    %vm2102 = vcmp.eq.s32.totalorder %v1782, 2
    %vm2103 = vcmp.eq.s32.totalorder %v1783, 2
    %vm2104 = vcmp.eq.s32.totalorder %v1784, 2
    %vm2105 = vcmp.eq.s32.totalorder %v1785, 2
    %vm2106 = vcmp.eq.s32.totalorder %v1786, 2
    %vm2107 = vcmp.eq.s32.totalorder %v1787, 2
    %vm2108 = vcmp.eq.s32.totalorder %v1788, 2
    %vm2109 = vcmp.eq.s32.totalorder %v1789, 2
    %vm2110 = vcmp.eq.s32.totalorder %v1790, 2
    %vm2111 = vcmp.eq.s32.totalorder %v1791, 2
    %vm2112 = vcmp.eq.s32.totalorder %v1792, 2
    %vm2113 = vcmp.eq.s32.totalorder %v1793, 2
    %vm2114 = vcmp.eq.s32.totalorder %v1794, 2
    %vm2115 = vcmp.eq.s32.totalorder %v1795, 2
    %vm2116 = vcmp.eq.s32.totalorder %v1796, 2
    %vm2117 = vcmp.eq.s32.totalorder %v1797, 2
    %vm2118 = vcmp.eq.s32.totalorder %v1798, 2
    %vm2119 = vcmp.eq.s32.totalorder %v1799, 2
    %vm2120 = vcmp.eq.s32.totalorder %v1800, 2
    %vm2121 = vcmp.eq.s32.totalorder %v1801, 2
    %vm2122 = vcmp.eq.s32.totalorder %v1802, 2
    %vm2123 = vcmp.eq.s32.totalorder %v1803, 2
    %vm2124 = vcmp.eq.s32.totalorder %v1804, 2
    %vm2125 = vcmp.eq.s32.totalorder %v1805, 2
    %vm2126 = vcmp.eq.s32.totalorder %v1806, 2
    %vm2127 = vcmp.eq.s32.totalorder %v1807, 2
    %vm2128 = vcmp.eq.s32.totalorder %v1808, 2
    %vm2129 = vcmp.eq.s32.totalorder %v1809, 2
    %vm2130 = vcmp.eq.s32.totalorder %v1810, 2
    %vm2131 = vcmp.eq.s32.totalorder %v1811, 2
    %v2132 = vsel %vm2068, %v333, 0.0
    %v2133 = vsel %vm2069, %v336, 0.0
    %v2134 = vsel %vm2070, %v339, 0.0
    %v2135 = vsel %vm2071, %v342, 0.0
    %v2136 = vsel %vm2072, %v345, 0.0
    %v2137 = vsel %vm2073, %v348, 0.0
    %v2138 = vsel %vm2074, %v351, 0.0
    %v2139 = vsel %vm2075, %v354, 0.0
    %v2140 = vsel %vm2076, %v357, 0.0
    %v2141 = vsel %vm2077, %v360, 0.0
    %v2142 = vsel %vm2078, %v363, 0.0
    %v2143 = vsel %vm2079, %v366, 0.0
    %v2144 = vsel %vm2080, %v369, 0.0
    %v2145 = vsel %vm2081, %v372, 0.0
    %v2146 = vsel %vm2082, %v375, 0.0
    %v2147 = vsel %vm2083, %v378, 0.0
    %v2148 = vsel %vm2084, %v381, 0.0
    %v2149 = vsel %vm2085, %v384, 0.0
    %v2150 = vsel %vm2086, %v387, 0.0
    %v2151 = vsel %vm2087, %v390, 0.0
    %v2152 = vsel %vm2088, %v393, 0.0
    %v2153 = vsel %vm2089, %v396, 0.0
    %v2154 = vsel %vm2090, %v399, 0.0
    %v2155 = vsel %vm2091, %v402, 0.0
    %v2156 = vsel %vm2092, %v405, 0.0
    %v2157 = vsel %vm2093, %v408, 0.0
    %v2158 = vsel %vm2094, %v411, 0.0
    %v2159 = vsel %vm2095, %v414, 0.0
    %v2160 = vsel %vm2096, %v417, 0.0
    %v2161 = vsel %vm2097, %v420, 0.0
    %v2162 = vsel %vm2098, %v423, 0.0
    %v2163 = vsel %vm2099, %v426, 0.0
    %v2164 = vsel %vm2100, %v429, 0.0
    %v2165 = vsel %vm2101, %v432, 0.0
    %v2166 = vsel %vm2102, %v435, 0.0
    %v2167 = vsel %vm2103, %v438, 0.0
    %v2168 = vsel %vm2104, %v441, 0.0
    %v2169 = vsel %vm2105, %v444, 0.0
    %v2170 = vsel %vm2106, %v447, 0.0
    %v2171 = vsel %vm2107, %v450, 0.0
    %v2172 = vsel %vm2108, %v453, 0.0
    %v2173 = vsel %vm2109, %v456, 0.0
    %v2174 = vsel %vm2110, %v459, 0.0
    %v2175 = vsel %vm2111, %v462, 0.0
    %v2176 = vsel %vm2112, %v465, 0.0
    %v2177 = vsel %vm2113, %v468, 0.0
    %v2178 = vsel %vm2114, %v471, 0.0
    %v2179 = vsel %vm2115, %v474, 0.0
    %v2180 = vsel %vm2116, %v477, 0.0
    %v2181 = vsel %vm2117, %v480, 0.0
    %v2182 = vsel %vm2118, %v483, 0.0
    %v2183 = vsel %vm2119, %v486, 0.0
    %v2184 = vsel %vm2120, %v489, 0.0
    %v2185 = vsel %vm2121, %v492, 0.0
    %v2186 = vsel %vm2122, %v495, 0.0
    %v2187 = vsel %vm2123, %v498, 0.0
    %v2188 = vsel %vm2124, %v501, 0.0
    %v2189 = vsel %vm2125, %v504, 0.0
    %v2190 = vsel %vm2126, %v507, 0.0
    %v2191 = vsel %vm2127, %v510, 0.0
    %v2192 = vsel %vm2128, %v513, 0.0
    %v2193 = vsel %vm2129, %v516, 0.0
    %v2194 = vsel %vm2130, %v519, 0.0
    %v2195 = vsel %vm2131, %v522, 0.0
    %vm2196 = vcmp.eq.s32.totalorder %v1748, 3
    %vm2197 = vcmp.eq.s32.totalorder %v1749, 3
    %vm2198 = vcmp.eq.s32.totalorder %v1750, 3
    %vm2199 = vcmp.eq.s32.totalorder %v1751, 3
    %vm2200 = vcmp.eq.s32.totalorder %v1752, 3
    %vm2201 = vcmp.eq.s32.totalorder %v1753, 3
    %vm2202 = vcmp.eq.s32.totalorder %v1754, 3
    %vm2203 = vcmp.eq.s32.totalorder %v1755, 3
    %vm2204 = vcmp.eq.s32.totalorder %v1756, 3
    %vm2205 = vcmp.eq.s32.totalorder %v1757, 3
    %vm2206 = vcmp.eq.s32.totalorder %v1758, 3
    %vm2207 = vcmp.eq.s32.totalorder %v1759, 3
    %vm2208 = vcmp.eq.s32.totalorder %v1760, 3
    %vm2209 = vcmp.eq.s32.totalorder %v1761, 3
    %vm2210 = vcmp.eq.s32.totalorder %v1762, 3
    %vm2211 = vcmp.eq.s32.totalorder %v1763, 3
    %vm2212 = vcmp.eq.s32.totalorder %v1764, 3
    %vm2213 = vcmp.eq.s32.totalorder %v1765, 3
    %vm2214 = vcmp.eq.s32.totalorder %v1766, 3
    %vm2215 = vcmp.eq.s32.totalorder %v1767, 3
    %vm2216 = vcmp.eq.s32.totalorder %v1768, 3
    %vm2217 = vcmp.eq.s32.totalorder %v1769, 3
    %vm2218 = vcmp.eq.s32.totalorder %v1770, 3
    %vm2219 = vcmp.eq.s32.totalorder %v1771, 3
    %vm2220 = vcmp.eq.s32.totalorder %v1772, 3
    %vm2221 = vcmp.eq.s32.totalorder %v1773, 3
    %vm2222 = vcmp.eq.s32.totalorder %v1774, 3
    %vm2223 = vcmp.eq.s32.totalorder %v1775, 3
    %vm2224 = vcmp.eq.s32.totalorder %v1776, 3
    %vm2225 = vcmp.eq.s32.totalorder %v1777, 3
    %vm2226 = vcmp.eq.s32.totalorder %v1778, 3
    %vm2227 = vcmp.eq.s32.totalorder %v1779, 3
    %vm2228 = vcmp.eq.s32.totalorder %v1780, 3
    %vm2229 = vcmp.eq.s32.totalorder %v1781, 3
    %vm2230 = vcmp.eq.s32.totalorder %v1782, 3
    %vm2231 = vcmp.eq.s32.totalorder %v1783, 3
    %vm2232 = vcmp.eq.s32.totalorder %v1784, 3
    %vm2233 = vcmp.eq.s32.totalorder %v1785, 3
    %vm2234 = vcmp.eq.s32.totalorder %v1786, 3
    %vm2235 = vcmp.eq.s32.totalorder %v1787, 3
    %vm2236 = vcmp.eq.s32.totalorder %v1788, 3
    %vm2237 = vcmp.eq.s32.totalorder %v1789, 3
    %vm2238 = vcmp.eq.s32.totalorder %v1790, 3
    %vm2239 = vcmp.eq.s32.totalorder %v1791, 3
    %vm2240 = vcmp.eq.s32.totalorder %v1792, 3
    %vm2241 = vcmp.eq.s32.totalorder %v1793, 3
    %vm2242 = vcmp.eq.s32.totalorder %v1794, 3
    %vm2243 = vcmp.eq.s32.totalorder %v1795, 3
    %vm2244 = vcmp.eq.s32.totalorder %v1796, 3
    %vm2245 = vcmp.eq.s32.totalorder %v1797, 3
    %vm2246 = vcmp.eq.s32.totalorder %v1798, 3
    %vm2247 = vcmp.eq.s32.totalorder %v1799, 3
    %vm2248 = vcmp.eq.s32.totalorder %v1800, 3
    %vm2249 = vcmp.eq.s32.totalorder %v1801, 3
    %vm2250 = vcmp.eq.s32.totalorder %v1802, 3
    %vm2251 = vcmp.eq.s32.totalorder %v1803, 3
    %vm2252 = vcmp.eq.s32.totalorder %v1804, 3
    %vm2253 = vcmp.eq.s32.totalorder %v1805, 3
    %vm2254 = vcmp.eq.s32.totalorder %v1806, 3
    %vm2255 = vcmp.eq.s32.totalorder %v1807, 3
    %vm2256 = vcmp.eq.s32.totalorder %v1808, 3
    %vm2257 = vcmp.eq.s32.totalorder %v1809, 3
    %vm2258 = vcmp.eq.s32.totalorder %v1810, 3
    %vm2259 = vcmp.eq.s32.totalorder %v1811, 3
    %v2260 = vsel %vm2196, %v333, 0.0
    %v2261 = vsel %vm2197, %v336, 0.0
    %v2262 = vsel %vm2198, %v339, 0.0
    %v2263 = vsel %vm2199, %v342, 0.0
    %v2264 = vsel %vm2200, %v345, 0.0
    %v2265 = vsel %vm2201, %v348, 0.0
    %v2266 = vsel %vm2202, %v351, 0.0
    %v2267 = vsel %vm2203, %v354, 0.0
    %v2268 = vsel %vm2204, %v357, 0.0
    %v2269 = vsel %vm2205, %v360, 0.0
    %v2270 = vsel %vm2206, %v363, 0.0
    %v2271 = vsel %vm2207, %v366, 0.0
    %v2272 = vsel %vm2208, %v369, 0.0
    %v2273 = vsel %vm2209, %v372, 0.0
    %v2274 = vsel %vm2210, %v375, 0.0
    %v2275 = vsel %vm2211, %v378, 0.0
    %v2276 = vsel %vm2212, %v381, 0.0
    %v2277 = vsel %vm2213, %v384, 0.0
    %v2278 = vsel %vm2214, %v387, 0.0
    %v2279 = vsel %vm2215, %v390, 0.0
    %v2280 = vsel %vm2216, %v393, 0.0
    %v2281 = vsel %vm2217, %v396, 0.0
    %v2282 = vsel %vm2218, %v399, 0.0
    %v2283 = vsel %vm2219, %v402, 0.0
    %v2284 = vsel %vm2220, %v405, 0.0
    %v2285 = vsel %vm2221, %v408, 0.0
    %v2286 = vsel %vm2222, %v411, 0.0
    %v2287 = vsel %vm2223, %v414, 0.0
    %v2288 = vsel %vm2224, %v417, 0.0
    %v2289 = vsel %vm2225, %v420, 0.0
    %v2290 = vsel %vm2226, %v423, 0.0
    %v2291 = vsel %vm2227, %v426, 0.0
    %v2292 = vsel %vm2228, %v429, 0.0
    %v2293 = vsel %vm2229, %v432, 0.0
    %v2294 = vsel %vm2230, %v435, 0.0
    %v2295 = vsel %vm2231, %v438, 0.0
    %v2296 = vsel %vm2232, %v441, 0.0
    %v2297 = vsel %vm2233, %v444, 0.0
    %v2298 = vsel %vm2234, %v447, 0.0
    %v2299 = vsel %vm2235, %v450, 0.0
    %v2300 = vsel %vm2236, %v453, 0.0
    %v2301 = vsel %vm2237, %v456, 0.0
    %v2302 = vsel %vm2238, %v459, 0.0
    %v2303 = vsel %vm2239, %v462, 0.0
    %v2304 = vsel %vm2240, %v465, 0.0
    %v2305 = vsel %vm2241, %v468, 0.0
    %v2306 = vsel %vm2242, %v471, 0.0
    %v2307 = vsel %vm2243, %v474, 0.0
    %v2308 = vsel %vm2244, %v477, 0.0
    %v2309 = vsel %vm2245, %v480, 0.0
    %v2310 = vsel %vm2246, %v483, 0.0
    %v2311 = vsel %vm2247, %v486, 0.0
    %v2312 = vsel %vm2248, %v489, 0.0
    %v2313 = vsel %vm2249, %v492, 0.0
    %v2314 = vsel %vm2250, %v495, 0.0
    %v2315 = vsel %vm2251, %v498, 0.0
    %v2316 = vsel %vm2252, %v501, 0.0
    %v2317 = vsel %vm2253, %v504, 0.0
    %v2318 = vsel %vm2254, %v507, 0.0
    %v2319 = vsel %vm2255, %v510, 0.0
    %v2320 = vsel %vm2256, %v513, 0.0
    %v2321 = vsel %vm2257, %v516, 0.0
    %v2322 = vsel %vm2258, %v519, 0.0
    %v2323 = vsel %vm2259, %v522, 0.0
    %2388 = vrot.lane.b32.xlu0 %v2004, 32
    %v2389 = vpop.permute.xlu0 %2388
    %2390 = vrot.lane.b32.xlu0 %v2005, 32
    %v2391 = vpop.permute.xlu0 %2390
    %2392 = vrot.lane.b32.xlu0 %v2006, 32
    %v2393 = vpop.permute.xlu0 %2392
    %2394 = vrot.lane.b32.xlu0 %v2007, 32
    %v2395 = vpop.permute.xlu0 %2394
    %2396 = vrot.lane.b32.xlu0 %v2008, 32
    %v2397 = vpop.permute.xlu0 %2396
    %2398 = vrot.lane.b32.xlu0 %v2009, 32
    %v2399 = vpop.permute.xlu0 %2398
    %2400 = vrot.lane.b32.xlu0 %v2010, 32
    %v2401 = vpop.permute.xlu0 %2400
    %2402 = vrot.lane.b32.xlu0 %v2011, 32
    %v2403 = vpop.permute.xlu0 %2402
    %2404 = vrot.lane.b32.xlu0 %v2012, 32
    %v2405 = vpop.permute.xlu0 %2404
    %2406 = vrot.lane.b32.xlu0 %v2013, 32
    %v2407 = vpop.permute.xlu0 %2406
    %2408 = vrot.lane.b32.xlu0 %v2014, 32
    %v2409 = vpop.permute.xlu0 %2408
    %2410 = vrot.lane.b32.xlu0 %v2015, 32
    %v2411 = vpop.permute.xlu0 %2410
    %2412 = vrot.lane.b32.xlu0 %v2016, 32
    %v2413 = vpop.permute.xlu0 %2412
    %2414 = vrot.lane.b32.xlu0 %v2017, 32
    %v2415 = vpop.permute.xlu0 %2414
    %2416 = vrot.lane.b32.xlu0 %v2018, 32
    %v2417 = vpop.permute.xlu0 %2416
    %2418 = vrot.lane.b32.xlu0 %v2019, 32
    %v2419 = vpop.permute.xlu0 %2418
    %2420 = vrot.lane.b32.xlu0 %v2020, 32
    %v2421 = vpop.permute.xlu0 %2420
    %2422 = vrot.lane.b32.xlu0 %v2021, 32
    %v2423 = vpop.permute.xlu0 %2422
    %2424 = vrot.lane.b32.xlu0 %v2022, 32
    %v2425 = vpop.permute.xlu0 %2424
    %2426 = vrot.lane.b32.xlu0 %v2023, 32
    %v2427 = vpop.permute.xlu0 %2426
    %2428 = vrot.lane.b32.xlu0 %v2024, 32
    %v2429 = vpop.permute.xlu0 %2428
    %2430 = vrot.lane.b32.xlu0 %v2025, 32
    %v2431 = vpop.permute.xlu0 %2430
    %2432 = vrot.lane.b32.xlu0 %v2026, 32
    %v2433 = vpop.permute.xlu0 %2432
    %2434 = vrot.lane.b32.xlu0 %v2027, 32
    %v2435 = vpop.permute.xlu0 %2434
    %2436 = vrot.lane.b32.xlu0 %v2028, 32
    %v2437 = vpop.permute.xlu0 %2436
    %2438 = vrot.lane.b32.xlu0 %v2029, 32
    %v2439 = vpop.permute.xlu0 %2438
    %2440 = vrot.lane.b32.xlu0 %v2030, 32
    %v2441 = vpop.permute.xlu0 %2440
    %2442 = vrot.lane.b32.xlu0 %v2031, 32
    %v2443 = vpop.permute.xlu0 %2442
    %2444 = vrot.lane.b32.xlu0 %v2032, 32
    %v2445 = vpop.permute.xlu0 %2444
    %2446 = vrot.lane.b32.xlu0 %v2033, 32
    %v2447 = vpop.permute.xlu0 %2446
    %2448 = vrot.lane.b32.xlu0 %v2034, 32
    %v2449 = vpop.permute.xlu0 %2448
    %2450 = vrot.lane.b32.xlu0 %v2035, 32
    %v2451 = vpop.permute.xlu0 %2450
    %2452 = vrot.lane.b32.xlu0 %v2036, 32
    %v2453 = vpop.permute.xlu0 %2452
    %2454 = vrot.lane.b32.xlu0 %v2037, 32
    %v2455 = vpop.permute.xlu0 %2454
    %2456 = vrot.lane.b32.xlu0 %v2038, 32
    %v2457 = vpop.permute.xlu0 %2456
    %2458 = vrot.lane.b32.xlu0 %v2039, 32
    %v2459 = vpop.permute.xlu0 %2458
    %2460 = vrot.lane.b32.xlu0 %v2040, 32
    %v2461 = vpop.permute.xlu0 %2460
    %2462 = vrot.lane.b32.xlu0 %v2041, 32
    %v2463 = vpop.permute.xlu0 %2462
    %2464 = vrot.lane.b32.xlu0 %v2042, 32
    %v2465 = vpop.permute.xlu0 %2464
    %2466 = vrot.lane.b32.xlu0 %v2043, 32
    %v2467 = vpop.permute.xlu0 %2466
    %2468 = vrot.lane.b32.xlu0 %v2044, 32
    %v2469 = vpop.permute.xlu0 %2468
    %2470 = vrot.lane.b32.xlu0 %v2045, 32
    %v2471 = vpop.permute.xlu0 %2470
    %2472 = vrot.lane.b32.xlu0 %v2046, 32
    %v2473 = vpop.permute.xlu0 %2472
    %2474 = vrot.lane.b32.xlu0 %v2047, 32
    %v2475 = vpop.permute.xlu0 %2474
    %2476 = vrot.lane.b32.xlu0 %v2048, 32
    %v2477 = vpop.permute.xlu0 %2476
    %2478 = vrot.lane.b32.xlu0 %v2049, 32
    %v2479 = vpop.permute.xlu0 %2478
    %2480 = vrot.lane.b32.xlu0 %v2050, 32
    %v2481 = vpop.permute.xlu0 %2480
    %2482 = vrot.lane.b32.xlu0 %v2051, 32
    %v2483 = vpop.permute.xlu0 %2482
    %2484 = vrot.lane.b32.xlu0 %v2052, 32
    %v2485 = vpop.permute.xlu0 %2484
    %2486 = vrot.lane.b32.xlu0 %v2053, 32
    %v2487 = vpop.permute.xlu0 %2486
    %2488 = vrot.lane.b32.xlu0 %v2054, 32
    %v2489 = vpop.permute.xlu0 %2488
    %2490 = vrot.lane.b32.xlu0 %v2055, 32
    %v2491 = vpop.permute.xlu0 %2490
    %2492 = vrot.lane.b32.xlu0 %v2056, 32
    %v2493 = vpop.permute.xlu0 %2492
    %2494 = vrot.lane.b32.xlu0 %v2057, 32
    %v2495 = vpop.permute.xlu0 %2494
    %2496 = vrot.lane.b32.xlu0 %v2058, 32
    %v2497 = vpop.permute.xlu0 %2496
    %2498 = vrot.lane.b32.xlu0 %v2059, 32
    %v2499 = vpop.permute.xlu0 %2498
    %2500 = vrot.lane.b32.xlu0 %v2060, 32
    %v2501 = vpop.permute.xlu0 %2500
    %2502 = vrot.lane.b32.xlu0 %v2061, 32
    %v2503 = vpop.permute.xlu0 %2502
    %2504 = vrot.lane.b32.xlu0 %v2062, 32
    %v2505 = vpop.permute.xlu0 %2504
    %2506 = vrot.lane.b32.xlu0 %v2063, 32
    %v2507 = vpop.permute.xlu0 %2506
    %2508 = vrot.lane.b32.xlu0 %v2064, 32
    %v2509 = vpop.permute.xlu0 %2508
    %2510 = vrot.lane.b32.xlu0 %v2065, 32
    %v2511 = vpop.permute.xlu0 %2510
    %2512 = vrot.lane.b32.xlu0 %v2066, 32
    %v2513 = vpop.permute.xlu0 %2512
    %2514 = vrot.lane.b32.xlu0 %v2067, 32
    %v2515 = vpop.permute.xlu0 %2514
    %2644 = vrot.lane.b32.xlu0 %v2132, 64
    %v2645 = vpop.permute.xlu0 %2644
    %2646 = vrot.lane.b32.xlu0 %v2133, 64
    %v2647 = vpop.permute.xlu0 %2646
    %2648 = vrot.lane.b32.xlu0 %v2134, 64
    %v2649 = vpop.permute.xlu0 %2648
    %2650 = vrot.lane.b32.xlu0 %v2135, 64
    %v2651 = vpop.permute.xlu0 %2650
    %2652 = vrot.lane.b32.xlu0 %v2136, 64
    %v2653 = vpop.permute.xlu0 %2652
    %2654 = vrot.lane.b32.xlu0 %v2137, 64
    %v2655 = vpop.permute.xlu0 %2654
    %2656 = vrot.lane.b32.xlu0 %v2138, 64
    %v2657 = vpop.permute.xlu0 %2656
    %2658 = vrot.lane.b32.xlu0 %v2139, 64
    %v2659 = vpop.permute.xlu0 %2658
    %2660 = vrot.lane.b32.xlu0 %v2140, 64
    %v2661 = vpop.permute.xlu0 %2660
    %2662 = vrot.lane.b32.xlu0 %v2141, 64
    %v2663 = vpop.permute.xlu0 %2662
    %2664 = vrot.lane.b32.xlu0 %v2142, 64
    %v2665 = vpop.permute.xlu0 %2664
    %2666 = vrot.lane.b32.xlu0 %v2143, 64
    %v2667 = vpop.permute.xlu0 %2666
    %2668 = vrot.lane.b32.xlu0 %v2144, 64
    %v2669 = vpop.permute.xlu0 %2668
    %2670 = vrot.lane.b32.xlu0 %v2145, 64
    %v2671 = vpop.permute.xlu0 %2670
    %2672 = vrot.lane.b32.xlu0 %v2146, 64
    %v2673 = vpop.permute.xlu0 %2672
    %2674 = vrot.lane.b32.xlu0 %v2147, 64
    %v2675 = vpop.permute.xlu0 %2674
    %2676 = vrot.lane.b32.xlu0 %v2148, 64
    %v2677 = vpop.permute.xlu0 %2676
    %2678 = vrot.lane.b32.xlu0 %v2149, 64
    %v2679 = vpop.permute.xlu0 %2678
    %2680 = vrot.lane.b32.xlu0 %v2150, 64
    %v2681 = vpop.permute.xlu0 %2680
    %2682 = vrot.lane.b32.xlu0 %v2151, 64
    %v2683 = vpop.permute.xlu0 %2682
    %2684 = vrot.lane.b32.xlu0 %v2152, 64
    %v2685 = vpop.permute.xlu0 %2684
    %2686 = vrot.lane.b32.xlu0 %v2153, 64
    %v2687 = vpop.permute.xlu0 %2686
    %2688 = vrot.lane.b32.xlu0 %v2154, 64
    %v2689 = vpop.permute.xlu0 %2688
    %2690 = vrot.lane.b32.xlu0 %v2155, 64
    %v2691 = vpop.permute.xlu0 %2690
    %2692 = vrot.lane.b32.xlu0 %v2156, 64
    %v2693 = vpop.permute.xlu0 %2692
    %2694 = vrot.lane.b32.xlu0 %v2157, 64
    %v2695 = vpop.permute.xlu0 %2694
    %2696 = vrot.lane.b32.xlu0 %v2158, 64
    %v2697 = vpop.permute.xlu0 %2696
    %2698 = vrot.lane.b32.xlu0 %v2159, 64
    %v2699 = vpop.permute.xlu0 %2698
    %2700 = vrot.lane.b32.xlu0 %v2160, 64
    %v2701 = vpop.permute.xlu0 %2700
    %2702 = vrot.lane.b32.xlu0 %v2161, 64
    %v2703 = vpop.permute.xlu0 %2702
    %2704 = vrot.lane.b32.xlu0 %v2162, 64
    %v2705 = vpop.permute.xlu0 %2704
    %2706 = vrot.lane.b32.xlu0 %v2163, 64
    %v2707 = vpop.permute.xlu0 %2706
    %2708 = vrot.lane.b32.xlu0 %v2164, 64
    %v2709 = vpop.permute.xlu0 %2708
    %2710 = vrot.lane.b32.xlu0 %v2165, 64
    %v2711 = vpop.permute.xlu0 %2710
    %2712 = vrot.lane.b32.xlu0 %v2166, 64
    %v2713 = vpop.permute.xlu0 %2712
    %2714 = vrot.lane.b32.xlu0 %v2167, 64
    %v2715 = vpop.permute.xlu0 %2714
    %2716 = vrot.lane.b32.xlu0 %v2168, 64
    %v2717 = vpop.permute.xlu0 %2716
    %2718 = vrot.lane.b32.xlu0 %v2169, 64
    %v2719 = vpop.permute.xlu0 %2718
    %2720 = vrot.lane.b32.xlu0 %v2170, 64
    %v2721 = vpop.permute.xlu0 %2720
    %2722 = vrot.lane.b32.xlu0 %v2171, 64
    %v2723 = vpop.permute.xlu0 %2722
    %2724 = vrot.lane.b32.xlu0 %v2172, 64
    %v2725 = vpop.permute.xlu0 %2724
    %2726 = vrot.lane.b32.xlu0 %v2173, 64
    %v2727 = vpop.permute.xlu0 %2726
    %2728 = vrot.lane.b32.xlu0 %v2174, 64
    %v2729 = vpop.permute.xlu0 %2728
    %2730 = vrot.lane.b32.xlu0 %v2175, 64
    %v2731 = vpop.permute.xlu0 %2730
    %2732 = vrot.lane.b32.xlu0 %v2176, 64
    %v2733 = vpop.permute.xlu0 %2732
    %2734 = vrot.lane.b32.xlu0 %v2177, 64
    %v2735 = vpop.permute.xlu0 %2734
    %2736 = vrot.lane.b32.xlu0 %v2178, 64
    %v2737 = vpop.permute.xlu0 %2736
    %2738 = vrot.lane.b32.xlu0 %v2179, 64
    %v2739 = vpop.permute.xlu0 %2738
    %2740 = vrot.lane.b32.xlu0 %v2180, 64
    %v2741 = vpop.permute.xlu0 %2740
    %2742 = vrot.lane.b32.xlu0 %v2181, 64
    %v2743 = vpop.permute.xlu0 %2742
    %2744 = vrot.lane.b32.xlu0 %v2182, 64
    %v2745 = vpop.permute.xlu0 %2744
    %2746 = vrot.lane.b32.xlu0 %v2183, 64
    %v2747 = vpop.permute.xlu0 %2746
    %2748 = vrot.lane.b32.xlu0 %v2184, 64
    %v2749 = vpop.permute.xlu0 %2748
    %2750 = vrot.lane.b32.xlu0 %v2185, 64
    %v2751 = vpop.permute.xlu0 %2750
    %2752 = vrot.lane.b32.xlu0 %v2186, 64
    %v2753 = vpop.permute.xlu0 %2752
    %2754 = vrot.lane.b32.xlu0 %v2187, 64
    %v2755 = vpop.permute.xlu0 %2754
    %2756 = vrot.lane.b32.xlu0 %v2188, 64
    %v2757 = vpop.permute.xlu0 %2756
    %2758 = vrot.lane.b32.xlu0 %v2189, 64
    %v2759 = vpop.permute.xlu0 %2758
    %2760 = vrot.lane.b32.xlu0 %v2190, 64
    %v2761 = vpop.permute.xlu0 %2760
    %2762 = vrot.lane.b32.xlu0 %v2191, 64
    %v2763 = vpop.permute.xlu0 %2762
    %2764 = vrot.lane.b32.xlu0 %v2192, 64
    %v2765 = vpop.permute.xlu0 %2764
    %2766 = vrot.lane.b32.xlu0 %v2193, 64
    %v2767 = vpop.permute.xlu0 %2766
    %2768 = vrot.lane.b32.xlu0 %v2194, 64
    %v2769 = vpop.permute.xlu0 %2768
    %2770 = vrot.lane.b32.xlu0 %v2195, 64
    %v2771 = vpop.permute.xlu0 %2770
    %2900 = vrot.lane.b32.xlu0 %v2260, 96
    %v2901 = vpop.permute.xlu0 %2900
    %2902 = vrot.lane.b32.xlu0 %v2261, 96
    %v2903 = vpop.permute.xlu0 %2902
    %2904 = vrot.lane.b32.xlu0 %v2262, 96
    %v2905 = vpop.permute.xlu0 %2904
    %2906 = vrot.lane.b32.xlu0 %v2263, 96
    %v2907 = vpop.permute.xlu0 %2906
    %2908 = vrot.lane.b32.xlu0 %v2264, 96
    %v2909 = vpop.permute.xlu0 %2908
    %2910 = vrot.lane.b32.xlu0 %v2265, 96
    %v2911 = vpop.permute.xlu0 %2910
    %2912 = vrot.lane.b32.xlu0 %v2266, 96
    %v2913 = vpop.permute.xlu0 %2912
    %2914 = vrot.lane.b32.xlu0 %v2267, 96
    %v2915 = vpop.permute.xlu0 %2914
    %2916 = vrot.lane.b32.xlu0 %v2268, 96
    %v2917 = vpop.permute.xlu0 %2916
    %2918 = vrot.lane.b32.xlu0 %v2269, 96
    %v2919 = vpop.permute.xlu0 %2918
    %2920 = vrot.lane.b32.xlu0 %v2270, 96
    %v2921 = vpop.permute.xlu0 %2920
    %2922 = vrot.lane.b32.xlu0 %v2271, 96
    %v2923 = vpop.permute.xlu0 %2922
    %2924 = vrot.lane.b32.xlu0 %v2272, 96
    %v2925 = vpop.permute.xlu0 %2924
    %2926 = vrot.lane.b32.xlu0 %v2273, 96
    %v2927 = vpop.permute.xlu0 %2926
    %2928 = vrot.lane.b32.xlu0 %v2274, 96
    %v2929 = vpop.permute.xlu0 %2928
    %2930 = vrot.lane.b32.xlu0 %v2275, 96
    %v2931 = vpop.permute.xlu0 %2930
    %2932 = vrot.lane.b32.xlu0 %v2276, 96
    %v2933 = vpop.permute.xlu0 %2932
    %2934 = vrot.lane.b32.xlu0 %v2277, 96
    %v2935 = vpop.permute.xlu0 %2934
    %2936 = vrot.lane.b32.xlu0 %v2278, 96
    %v2937 = vpop.permute.xlu0 %2936
    %2938 = vrot.lane.b32.xlu0 %v2279, 96
    %v2939 = vpop.permute.xlu0 %2938
    %2940 = vrot.lane.b32.xlu0 %v2280, 96
    %v2941 = vpop.permute.xlu0 %2940
    %2942 = vrot.lane.b32.xlu0 %v2281, 96
    %v2943 = vpop.permute.xlu0 %2942
    %2944 = vrot.lane.b32.xlu0 %v2282, 96
    %v2945 = vpop.permute.xlu0 %2944
    %2946 = vrot.lane.b32.xlu0 %v2283, 96
    %v2947 = vpop.permute.xlu0 %2946
    %2948 = vrot.lane.b32.xlu0 %v2284, 96
    %v2949 = vpop.permute.xlu0 %2948
    %2950 = vrot.lane.b32.xlu0 %v2285, 96
    %v2951 = vpop.permute.xlu0 %2950
    %2952 = vrot.lane.b32.xlu0 %v2286, 96
    %v2953 = vpop.permute.xlu0 %2952
    %2954 = vrot.lane.b32.xlu0 %v2287, 96
    %v2955 = vpop.permute.xlu0 %2954
    %2956 = vrot.lane.b32.xlu0 %v2288, 96
    %v2957 = vpop.permute.xlu0 %2956
    %2958 = vrot.lane.b32.xlu0 %v2289, 96
    %v2959 = vpop.permute.xlu0 %2958
    %2960 = vrot.lane.b32.xlu0 %v2290, 96
    %v2961 = vpop.permute.xlu0 %2960
    %2962 = vrot.lane.b32.xlu0 %v2291, 96
    %v2963 = vpop.permute.xlu0 %2962
    %2964 = vrot.lane.b32.xlu0 %v2292, 96
    %v2965 = vpop.permute.xlu0 %2964
    %2966 = vrot.lane.b32.xlu0 %v2293, 96
    %v2967 = vpop.permute.xlu0 %2966
    %2968 = vrot.lane.b32.xlu0 %v2294, 96
    %v2969 = vpop.permute.xlu0 %2968
    %2970 = vrot.lane.b32.xlu0 %v2295, 96
    %v2971 = vpop.permute.xlu0 %2970
    %2972 = vrot.lane.b32.xlu0 %v2296, 96
    %v2973 = vpop.permute.xlu0 %2972
    %2974 = vrot.lane.b32.xlu0 %v2297, 96
    %v2975 = vpop.permute.xlu0 %2974
    %2976 = vrot.lane.b32.xlu0 %v2298, 96
    %v2977 = vpop.permute.xlu0 %2976
    %2978 = vrot.lane.b32.xlu0 %v2299, 96
    %v2979 = vpop.permute.xlu0 %2978
    %2980 = vrot.lane.b32.xlu0 %v2300, 96
    %v2981 = vpop.permute.xlu0 %2980
    %2982 = vrot.lane.b32.xlu0 %v2301, 96
    %v2983 = vpop.permute.xlu0 %2982
    %2984 = vrot.lane.b32.xlu0 %v2302, 96
    %v2985 = vpop.permute.xlu0 %2984
    %2986 = vrot.lane.b32.xlu0 %v2303, 96
    %v2987 = vpop.permute.xlu0 %2986
    %2988 = vrot.lane.b32.xlu0 %v2304, 96
    %v2989 = vpop.permute.xlu0 %2988
    %2990 = vrot.lane.b32.xlu0 %v2305, 96
    %v2991 = vpop.permute.xlu0 %2990
    %2992 = vrot.lane.b32.xlu0 %v2306, 96
    %v2993 = vpop.permute.xlu0 %2992
    %2994 = vrot.lane.b32.xlu0 %v2307, 96
    %v2995 = vpop.permute.xlu0 %2994
    %2996 = vrot.lane.b32.xlu0 %v2308, 96
    %v2997 = vpop.permute.xlu0 %2996
    %2998 = vrot.lane.b32.xlu0 %v2309, 96
    %v2999 = vpop.permute.xlu0 %2998
    %3000 = vrot.lane.b32.xlu0 %v2310, 96
    %v3001 = vpop.permute.xlu0 %3000
    %3002 = vrot.lane.b32.xlu0 %v2311, 96
    %v3003 = vpop.permute.xlu0 %3002
    %3004 = vrot.lane.b32.xlu0 %v2312, 96
    %v3005 = vpop.permute.xlu0 %3004
    %3006 = vrot.lane.b32.xlu0 %v2313, 96
    %v3007 = vpop.permute.xlu0 %3006
    %3008 = vrot.lane.b32.xlu0 %v2314, 96
    %v3009 = vpop.permute.xlu0 %3008
    %3010 = vrot.lane.b32.xlu0 %v2315, 96
    %v3011 = vpop.permute.xlu0 %3010
    %3012 = vrot.lane.b32.xlu0 %v2316, 96
    %v3013 = vpop.permute.xlu0 %3012
    %3014 = vrot.lane.b32.xlu0 %v2317, 96
    %v3015 = vpop.permute.xlu0 %3014
    %3016 = vrot.lane.b32.xlu0 %v2318, 96
    %v3017 = vpop.permute.xlu0 %3016
    %3018 = vrot.lane.b32.xlu0 %v2319, 96
    %v3019 = vpop.permute.xlu0 %3018
    %3020 = vrot.lane.b32.xlu0 %v2320, 96
    %v3021 = vpop.permute.xlu0 %3020
    %3022 = vrot.lane.b32.xlu0 %v2321, 96
    %v3023 = vpop.permute.xlu0 %3022
    %3024 = vrot.lane.b32.xlu0 %v2322, 96
    %v3025 = vpop.permute.xlu0 %3024
    %3026 = vrot.lane.b32.xlu0 %v2323, 96
    %v3027 = vpop.permute.xlu0 %3026
    %vm3092 = vcmask 261120
    %v3093 = vsel %vm3092, %v1876, %v2389
    %v3094 = vsel %vm3092, %v1877, %v2391
    %v3095 = vsel %vm3092, %v1878, %v2393
    %v3096 = vsel %vm3092, %v1879, %v2395
    %v3097 = vsel %vm3092, %v1880, %v2397
    %v3098 = vsel %vm3092, %v1881, %v2399
    %v3099 = vsel %vm3092, %v1882, %v2401
    %v3100 = vsel %vm3092, %v1883, %v2403
    %v3101 = vsel %vm3092, %v1884, %v2405
    %v3102 = vsel %vm3092, %v1885, %v2407
    %v3103 = vsel %vm3092, %v1886, %v2409
    %v3104 = vsel %vm3092, %v1887, %v2411
    %v3105 = vsel %vm3092, %v1888, %v2413
    %v3106 = vsel %vm3092, %v1889, %v2415
    %v3107 = vsel %vm3092, %v1890, %v2417
    %v3108 = vsel %vm3092, %v1891, %v2419
    %v3109 = vsel %vm3092, %v1892, %v2421
    %v3110 = vsel %vm3092, %v1893, %v2423
    %v3111 = vsel %vm3092, %v1894, %v2425
    %v3112 = vsel %vm3092, %v1895, %v2427
    %v3113 = vsel %vm3092, %v1896, %v2429
    %v3114 = vsel %vm3092, %v1897, %v2431
    %v3115 = vsel %vm3092, %v1898, %v2433
    %v3116 = vsel %vm3092, %v1899, %v2435
    %v3117 = vsel %vm3092, %v1900, %v2437
    %v3118 = vsel %vm3092, %v1901, %v2439
    %v3119 = vsel %vm3092, %v1902, %v2441
    %v3120 = vsel %vm3092, %v1903, %v2443
    %v3121 = vsel %vm3092, %v1904, %v2445
    %v3122 = vsel %vm3092, %v1905, %v2447
    %v3123 = vsel %vm3092, %v1906, %v2449
    %v3124 = vsel %vm3092, %v1907, %v2451
    %v3125 = vsel %vm3092, %v1908, %v2453
    %v3126 = vsel %vm3092, %v1909, %v2455
    %v3127 = vsel %vm3092, %v1910, %v2457
    %v3128 = vsel %vm3092, %v1911, %v2459
    %v3129 = vsel %vm3092, %v1912, %v2461
    %v3130 = vsel %vm3092, %v1913, %v2463
    %v3131 = vsel %vm3092, %v1914, %v2465
    %v3132 = vsel %vm3092, %v1915, %v2467
    %v3133 = vsel %vm3092, %v1916, %v2469
    %v3134 = vsel %vm3092, %v1917, %v2471
    %v3135 = vsel %vm3092, %v1918, %v2473
    %v3136 = vsel %vm3092, %v1919, %v2475
    %v3137 = vsel %vm3092, %v1920, %v2477
    %v3138 = vsel %vm3092, %v1921, %v2479
    %v3139 = vsel %vm3092, %v1922, %v2481
    %v3140 = vsel %vm3092, %v1923, %v2483
    %v3141 = vsel %vm3092, %v1924, %v2485
    %v3142 = vsel %vm3092, %v1925, %v2487
    %v3143 = vsel %vm3092, %v1926, %v2489
    %v3144 = vsel %vm3092, %v1927, %v2491
    %v3145 = vsel %vm3092, %v1928, %v2493
    %v3146 = vsel %vm3092, %v1929, %v2495
    %v3147 = vsel %vm3092, %v1930, %v2497
    %v3148 = vsel %vm3092, %v1931, %v2499
    %v3149 = vsel %vm3092, %v1932, %v2501
    %v3150 = vsel %vm3092, %v1933, %v2503
    %v3151 = vsel %vm3092, %v1934, %v2505
    %v3152 = vsel %vm3092, %v1935, %v2507
    %v3153 = vsel %vm3092, %v1936, %v2509
    %v3154 = vsel %vm3092, %v1937, %v2511
    %v3155 = vsel %vm3092, %v1938, %v2513
    %v3156 = vsel %vm3092, %v1939, %v2515
    %vm3157 = vcmask 523264
    %v3158 = vsel %vm3157, %v3093, %v2645
    %v3159 = vsel %vm3157, %v3094, %v2647
    %v3160 = vsel %vm3157, %v3095, %v2649
    %v3161 = vsel %vm3157, %v3096, %v2651
    %v3162 = vsel %vm3157, %v3097, %v2653
    %v3163 = vsel %vm3157, %v3098, %v2655
    %v3164 = vsel %vm3157, %v3099, %v2657
    %v3165 = vsel %vm3157, %v3100, %v2659
    %v3166 = vsel %vm3157, %v3101, %v2661
    %v3167 = vsel %vm3157, %v3102, %v2663
    %v3168 = vsel %vm3157, %v3103, %v2665
    %v3169 = vsel %vm3157, %v3104, %v2667
    %v3170 = vsel %vm3157, %v3105, %v2669
    %v3171 = vsel %vm3157, %v3106, %v2671
    %v3172 = vsel %vm3157, %v3107, %v2673
    %v3173 = vsel %vm3157, %v3108, %v2675
    %v3174 = vsel %vm3157, %v3109, %v2677
    %v3175 = vsel %vm3157, %v3110, %v2679
    %v3176 = vsel %vm3157, %v3111, %v2681
    %v3177 = vsel %vm3157, %v3112, %v2683
    %v3178 = vsel %vm3157, %v3113, %v2685
    %v3179 = vsel %vm3157, %v3114, %v2687
    %v3180 = vsel %vm3157, %v3115, %v2689
    %v3181 = vsel %vm3157, %v3116, %v2691
    %v3182 = vsel %vm3157, %v3117, %v2693
    %v3183 = vsel %vm3157, %v3118, %v2695
    %v3184 = vsel %vm3157, %v3119, %v2697
    %v3185 = vsel %vm3157, %v3120, %v2699
    %v3186 = vsel %vm3157, %v3121, %v2701
    %v3187 = vsel %vm3157, %v3122, %v2703
    %v3188 = vsel %vm3157, %v3123, %v2705
    %v3189 = vsel %vm3157, %v3124, %v2707
    %v3190 = vsel %vm3157, %v3125, %v2709
    %v3191 = vsel %vm3157, %v3126, %v2711
    %v3192 = vsel %vm3157, %v3127, %v2713
    %v3193 = vsel %vm3157, %v3128, %v2715
    %v3194 = vsel %vm3157, %v3129, %v2717
    %v3195 = vsel %vm3157, %v3130, %v2719
    %v3196 = vsel %vm3157, %v3131, %v2721
    %v3197 = vsel %vm3157, %v3132, %v2723
    %v3198 = vsel %vm3157, %v3133, %v2725
    %v3199 = vsel %vm3157, %v3134, %v2727
    %v3200 = vsel %vm3157, %v3135, %v2729
    %v3201 = vsel %vm3157, %v3136, %v2731
    %v3202 = vsel %vm3157, %v3137, %v2733
    %v3203 = vsel %vm3157, %v3138, %v2735
    %v3204 = vsel %vm3157, %v3139, %v2737
    %v3205 = vsel %vm3157, %v3140, %v2739
    %v3206 = vsel %vm3157, %v3141, %v2741
    %v3207 = vsel %vm3157, %v3142, %v2743
    %v3208 = vsel %vm3157, %v3143, %v2745
    %v3209 = vsel %vm3157, %v3144, %v2747
    %v3210 = vsel %vm3157, %v3145, %v2749
    %v3211 = vsel %vm3157, %v3146, %v2751
    %v3212 = vsel %vm3157, %v3147, %v2753
    %v3213 = vsel %vm3157, %v3148, %v2755
    %v3214 = vsel %vm3157, %v3149, %v2757
    %v3215 = vsel %vm3157, %v3150, %v2759
    %v3216 = vsel %vm3157, %v3151, %v2761
    %v3217 = vsel %vm3157, %v3152, %v2763
    %v3218 = vsel %vm3157, %v3153, %v2765
    %v3219 = vsel %vm3157, %v3154, %v2767
    %v3220 = vsel %vm3157, %v3155, %v2769
    %v3221 = vsel %vm3157, %v3156, %v2771
    %vm3222 = vcmask 785408
    %v3223 = vsel %vm3222, %v3158, %v2901
    %v3224 = vsel %vm3222, %v3159, %v2903
    %v3225 = vsel %vm3222, %v3160, %v2905
    %v3226 = vsel %vm3222, %v3161, %v2907
    %v3227 = vsel %vm3222, %v3162, %v2909
    %v3228 = vsel %vm3222, %v3163, %v2911
    %v3229 = vsel %vm3222, %v3164, %v2913
    %v3230 = vsel %vm3222, %v3165, %v2915
    %v3231 = vsel %vm3222, %v3166, %v2917
    %v3232 = vsel %vm3222, %v3167, %v2919
    %v3233 = vsel %vm3222, %v3168, %v2921
    %v3234 = vsel %vm3222, %v3169, %v2923
    %v3235 = vsel %vm3222, %v3170, %v2925
    %v3236 = vsel %vm3222, %v3171, %v2927
    %v3237 = vsel %vm3222, %v3172, %v2929
    %v3238 = vsel %vm3222, %v3173, %v2931
    %v3239 = vsel %vm3222, %v3174, %v2933
    %v3240 = vsel %vm3222, %v3175, %v2935
    %v3241 = vsel %vm3222, %v3176, %v2937
    %v3242 = vsel %vm3222, %v3177, %v2939
    %v3243 = vsel %vm3222, %v3178, %v2941
    %v3244 = vsel %vm3222, %v3179, %v2943
    %v3245 = vsel %vm3222, %v3180, %v2945
    %v3246 = vsel %vm3222, %v3181, %v2947
    %v3247 = vsel %vm3222, %v3182, %v2949
    %v3248 = vsel %vm3222, %v3183, %v2951
    %v3249 = vsel %vm3222, %v3184, %v2953
    %v3250 = vsel %vm3222, %v3185, %v2955
    %v3251 = vsel %vm3222, %v3186, %v2957
    %v3252 = vsel %vm3222, %v3187, %v2959
    %v3253 = vsel %vm3222, %v3188, %v2961
    %v3254 = vsel %vm3222, %v3189, %v2963
    %v3255 = vsel %vm3222, %v3190, %v2965
    %v3256 = vsel %vm3222, %v3191, %v2967
    %v3257 = vsel %vm3222, %v3192, %v2969
    %v3258 = vsel %vm3222, %v3193, %v2971
    %v3259 = vsel %vm3222, %v3194, %v2973
    %v3260 = vsel %vm3222, %v3195, %v2975
    %v3261 = vsel %vm3222, %v3196, %v2977
    %v3262 = vsel %vm3222, %v3197, %v2979
    %v3263 = vsel %vm3222, %v3198, %v2981
    %v3264 = vsel %vm3222, %v3199, %v2983
    %v3265 = vsel %vm3222, %v3200, %v2985
    %v3266 = vsel %vm3222, %v3201, %v2987
    %v3267 = vsel %vm3222, %v3202, %v2989
    %v3268 = vsel %vm3222, %v3203, %v2991
    %v3269 = vsel %vm3222, %v3204, %v2993
    %v3270 = vsel %vm3222, %v3205, %v2995
    %v3271 = vsel %vm3222, %v3206, %v2997
    %v3272 = vsel %vm3222, %v3207, %v2999
    %v3273 = vsel %vm3222, %v3208, %v3001
    %v3274 = vsel %vm3222, %v3209, %v3003
    %v3275 = vsel %vm3222, %v3210, %v3005
    %v3276 = vsel %vm3222, %v3211, %v3007
    %v3277 = vsel %vm3222, %v3212, %v3009
    %v3278 = vsel %vm3222, %v3213, %v3011
    %v3279 = vsel %vm3222, %v3214, %v3013
    %v3280 = vsel %vm3222, %v3215, %v3015
    %v3281 = vsel %vm3222, %v3216, %v3017
    %v3282 = vsel %vm3222, %v3217, %v3019
    %v3283 = vsel %vm3222, %v3218, %v3021
    %v3284 = vsel %vm3222, %v3219, %v3023
    %v3285 = vsel %vm3222, %v3220, %v3025
    %v3286 = vsel %vm3222, %v3221, %v3027
    %v3287 = vadd.f32 %v3223, %v1541
    %v3288 = vadd.f32 %v3224, %v1544
    %v3289 = vadd.f32 %v3225, %v1547
    %v3290 = vadd.f32 %v3226, %v1550
    %v3291 = vadd.f32 %v3227, %v1553
    %v3292 = vadd.f32 %v3228, %v1556
    %v3293 = vadd.f32 %v3229, %v1559
    %v3294 = vadd.f32 %v3230, %v1562
    %v3295 = vadd.f32 %v3231, %v1565
    %v3296 = vadd.f32 %v3232, %v1568
    %v3297 = vadd.f32 %v3233, %v1571
    %v3298 = vadd.f32 %v3234, %v1574
    %v3299 = vadd.f32 %v3235, %v1577
    %v3300 = vadd.f32 %v3236, %v1580
    %v3301 = vadd.f32 %v3237, %v1583
    %v3302 = vadd.f32 %v3238, %v1586
    %v3303 = vadd.f32 %v3239, %v1589
    %v3304 = vadd.f32 %v3240, %v1592
    %v3305 = vadd.f32 %v3241, %v1595
    %v3306 = vadd.f32 %v3242, %v1598
    %v3307 = vadd.f32 %v3243, %v1601
    %v3308 = vadd.f32 %v3244, %v1604
    %v3309 = vadd.f32 %v3245, %v1607
    %v3310 = vadd.f32 %v3246, %v1610
    %v3311 = vadd.f32 %v3247, %v1613
    %v3312 = vadd.f32 %v3248, %v1616
    %v3313 = vadd.f32 %v3249, %v1619
    %v3314 = vadd.f32 %v3250, %v1622
    %v3315 = vadd.f32 %v3251, %v1625
    %v3316 = vadd.f32 %v3252, %v1628
    %v3317 = vadd.f32 %v3253, %v1631
    %v3318 = vadd.f32 %v3254, %v1634
    %v3319 = vadd.f32 %v3255, %v1637
    %v3320 = vadd.f32 %v3256, %v1640
    %v3321 = vadd.f32 %v3257, %v1643
    %v3322 = vadd.f32 %v3258, %v1646
    %v3323 = vadd.f32 %v3259, %v1649
    %v3324 = vadd.f32 %v3260, %v1652
    %v3325 = vadd.f32 %v3261, %v1655
    %v3326 = vadd.f32 %v3262, %v1658
    %v3327 = vadd.f32 %v3263, %v1661
    %v3328 = vadd.f32 %v3264, %v1664
    %v3329 = vadd.f32 %v3265, %v1667
    %v3330 = vadd.f32 %v3266, %v1670
    %v3331 = vadd.f32 %v3267, %v1673
    %v3332 = vadd.f32 %v3268, %v1676
    %v3333 = vadd.f32 %v3269, %v1679
    %v3334 = vadd.f32 %v3270, %v1682
    %v3335 = vadd.f32 %v3271, %v1685
    %v3336 = vadd.f32 %v3272, %v1688
    %v3337 = vadd.f32 %v3273, %v1691
    %v3338 = vadd.f32 %v3274, %v1694
    %v3339 = vadd.f32 %v3275, %v1697
    %v3340 = vadd.f32 %v3276, %v1700
    %v3341 = vadd.f32 %v3277, %v1703
    %v3342 = vadd.f32 %v3278, %v1706
    %v3343 = vadd.f32 %v3279, %v1709
    %v3344 = vadd.f32 %v3280, %v1712
    %v3345 = vadd.f32 %v3281, %v1715
    %v3346 = vadd.f32 %v3282, %v1718
    %v3347 = vadd.f32 %v3283, %v1721
    %v3348 = vadd.f32 %v3284, %v1724
    %v3349 = vadd.f32 %v3285, %v1727
    %v3350 = vadd.f32 %v3286, %v1730
    %vm3351 = vcmp.gt.f32.partialorder %v3287, 0.0
    %vm3352 = vcmp.gt.f32.partialorder %v3288, 0.0
    %vm3353 = vcmp.gt.f32.partialorder %v3289, 0.0
    %vm3354 = vcmp.gt.f32.partialorder %v3290, 0.0
    %vm3355 = vcmp.gt.f32.partialorder %v3291, 0.0
    %vm3356 = vcmp.gt.f32.partialorder %v3292, 0.0
    %vm3357 = vcmp.gt.f32.partialorder %v3293, 0.0
    %vm3358 = vcmp.gt.f32.partialorder %v3294, 0.0
    %vm3359 = vcmp.gt.f32.partialorder %v3295, 0.0
    %vm3360 = vcmp.gt.f32.partialorder %v3296, 0.0
    %vm3361 = vcmp.gt.f32.partialorder %v3297, 0.0
    %vm3362 = vcmp.gt.f32.partialorder %v3298, 0.0
    %vm3363 = vcmp.gt.f32.partialorder %v3299, 0.0
    %vm3364 = vcmp.gt.f32.partialorder %v3300, 0.0
    %vm3365 = vcmp.gt.f32.partialorder %v3301, 0.0
    %vm3366 = vcmp.gt.f32.partialorder %v3302, 0.0
    %vm3367 = vcmp.gt.f32.partialorder %v3303, 0.0
    %vm3368 = vcmp.gt.f32.partialorder %v3304, 0.0
    %vm3369 = vcmp.gt.f32.partialorder %v3305, 0.0
    %vm3370 = vcmp.gt.f32.partialorder %v3306, 0.0
    %vm3371 = vcmp.gt.f32.partialorder %v3307, 0.0
    %vm3372 = vcmp.gt.f32.partialorder %v3308, 0.0
    %vm3373 = vcmp.gt.f32.partialorder %v3309, 0.0
    %vm3374 = vcmp.gt.f32.partialorder %v3310, 0.0
    %vm3375 = vcmp.gt.f32.partialorder %v3311, 0.0
    %vm3376 = vcmp.gt.f32.partialorder %v3312, 0.0
    %vm3377 = vcmp.gt.f32.partialorder %v3313, 0.0
    %vm3378 = vcmp.gt.f32.partialorder %v3314, 0.0
    %vm3379 = vcmp.gt.f32.partialorder %v3315, 0.0
    %vm3380 = vcmp.gt.f32.partialorder %v3316, 0.0
    %vm3381 = vcmp.gt.f32.partialorder %v3317, 0.0
    %vm3382 = vcmp.gt.f32.partialorder %v3318, 0.0
    %vm3383 = vcmp.gt.f32.partialorder %v3319, 0.0
    %vm3384 = vcmp.gt.f32.partialorder %v3320, 0.0
    %vm3385 = vcmp.gt.f32.partialorder %v3321, 0.0
    %vm3386 = vcmp.gt.f32.partialorder %v3322, 0.0
    %vm3387 = vcmp.gt.f32.partialorder %v3323, 0.0
    %vm3388 = vcmp.gt.f32.partialorder %v3324, 0.0
    %vm3389 = vcmp.gt.f32.partialorder %v3325, 0.0
    %vm3390 = vcmp.gt.f32.partialorder %v3326, 0.0
    %vm3391 = vcmp.gt.f32.partialorder %v3327, 0.0
    %vm3392 = vcmp.gt.f32.partialorder %v3328, 0.0
    %vm3393 = vcmp.gt.f32.partialorder %v3329, 0.0
    %vm3394 = vcmp.gt.f32.partialorder %v3330, 0.0
    %vm3395 = vcmp.gt.f32.partialorder %v3331, 0.0
    %vm3396 = vcmp.gt.f32.partialorder %v3332, 0.0
    %vm3397 = vcmp.gt.f32.partialorder %v3333, 0.0
    %vm3398 = vcmp.gt.f32.partialorder %v3334, 0.0
    %vm3399 = vcmp.gt.f32.partialorder %v3335, 0.0
    %vm3400 = vcmp.gt.f32.partialorder %v3336, 0.0
    %vm3401 = vcmp.gt.f32.partialorder %v3337, 0.0
    %vm3402 = vcmp.gt.f32.partialorder %v3338, 0.0
    %vm3403 = vcmp.gt.f32.partialorder %v3339, 0.0
    %vm3404 = vcmp.gt.f32.partialorder %v3340, 0.0
    %vm3405 = vcmp.gt.f32.partialorder %v3341, 0.0
    %vm3406 = vcmp.gt.f32.partialorder %v3342, 0.0
    %vm3407 = vcmp.gt.f32.partialorder %v3343, 0.0
    %vm3408 = vcmp.gt.f32.partialorder %v3344, 0.0
    %vm3409 = vcmp.gt.f32.partialorder %v3345, 0.0
    %vm3410 = vcmp.gt.f32.partialorder %v3346, 0.0
    %vm3411 = vcmp.gt.f32.partialorder %v3347, 0.0
    %vm3412 = vcmp.gt.f32.partialorder %v3348, 0.0
    %vm3413 = vcmp.gt.f32.partialorder %v3349, 0.0
    %vm3414 = vcmp.gt.f32.partialorder %v3350, 0.0
    %v3415 = vstv %s48
    %v3416 = vmul.f32 %v3415, %v3287
    %v3417 = vmul.f32 %v3415, %v3288
    %v3418 = vmul.f32 %v3415, %v3289
    %v3419 = vmul.f32 %v3415, %v3290
    %v3420 = vmul.f32 %v3415, %v3291
    %v3421 = vmul.f32 %v3415, %v3292
    %v3422 = vmul.f32 %v3415, %v3293
    %v3423 = vmul.f32 %v3415, %v3294
    %v3424 = vmul.f32 %v3415, %v3295
    %v3425 = vmul.f32 %v3415, %v3296
    %v3426 = vmul.f32 %v3415, %v3297
    %v3427 = vmul.f32 %v3415, %v3298
    %v3428 = vmul.f32 %v3415, %v3299
    %v3429 = vmul.f32 %v3415, %v3300
    %v3430 = vmul.f32 %v3415, %v3301
    %v3431 = vmul.f32 %v3415, %v3302
    %v3432 = vmul.f32 %v3415, %v3303
    %v3433 = vmul.f32 %v3415, %v3304
    %v3434 = vmul.f32 %v3415, %v3305
    %v3435 = vmul.f32 %v3415, %v3306
    %v3436 = vmul.f32 %v3415, %v3307
    %v3437 = vmul.f32 %v3415, %v3308
    %v3438 = vmul.f32 %v3415, %v3309
    %v3439 = vmul.f32 %v3415, %v3310
    %v3440 = vmul.f32 %v3415, %v3311
    %v3441 = vmul.f32 %v3415, %v3312
    %v3442 = vmul.f32 %v3415, %v3313
    %v3443 = vmul.f32 %v3415, %v3314
    %v3444 = vmul.f32 %v3415, %v3315
    %v3445 = vmul.f32 %v3415, %v3316
    %v3446 = vmul.f32 %v3415, %v3317
    %v3447 = vmul.f32 %v3415, %v3318
    %v3448 = vmul.f32 %v3415, %v3319
    %v3449 = vmul.f32 %v3415, %v3320
    %v3450 = vmul.f32 %v3415, %v3321
    %v3451 = vmul.f32 %v3415, %v3322
    %v3452 = vmul.f32 %v3415, %v3323
    %v3453 = vmul.f32 %v3415, %v3324
    %v3454 = vmul.f32 %v3415, %v3325
    %v3455 = vmul.f32 %v3415, %v3326
    %v3456 = vmul.f32 %v3415, %v3327
    %v3457 = vmul.f32 %v3415, %v3328
    %v3458 = vmul.f32 %v3415, %v3329
    %v3459 = vmul.f32 %v3415, %v3330
    %v3460 = vmul.f32 %v3415, %v3331
    %v3461 = vmul.f32 %v3415, %v3332
    %v3462 = vmul.f32 %v3415, %v3333
    %v3463 = vmul.f32 %v3415, %v3334
    %v3464 = vmul.f32 %v3415, %v3335
    %v3465 = vmul.f32 %v3415, %v3336
    %v3466 = vmul.f32 %v3415, %v3337
    %v3467 = vmul.f32 %v3415, %v3338
    %v3468 = vmul.f32 %v3415, %v3339
    %v3469 = vmul.f32 %v3415, %v3340
    %v3470 = vmul.f32 %v3415, %v3341
    %v3471 = vmul.f32 %v3415, %v3342
    %v3472 = vmul.f32 %v3415, %v3343
    %v3473 = vmul.f32 %v3415, %v3344
    %v3474 = vmul.f32 %v3415, %v3345
    %v3475 = vmul.f32 %v3415, %v3346
    %v3476 = vmul.f32 %v3415, %v3347
    %v3477 = vmul.f32 %v3415, %v3348
    %v3478 = vmul.f32 %v3415, %v3349
    %v3479 = vmul.f32 %v3415, %v3350
    %v3480 = vsel %vm3351, %v3287, %v3416
    %v3481 = vsel %vm3352, %v3288, %v3417
    %v3482 = vsel %vm3353, %v3289, %v3418
    %v3483 = vsel %vm3354, %v3290, %v3419
    %v3484 = vsel %vm3355, %v3291, %v3420
    %v3485 = vsel %vm3356, %v3292, %v3421
    %v3486 = vsel %vm3357, %v3293, %v3422
    %v3487 = vsel %vm3358, %v3294, %v3423
    %v3488 = vsel %vm3359, %v3295, %v3424
    %v3489 = vsel %vm3360, %v3296, %v3425
    %v3490 = vsel %vm3361, %v3297, %v3426
    %v3491 = vsel %vm3362, %v3298, %v3427
    %v3492 = vsel %vm3363, %v3299, %v3428
    %v3493 = vsel %vm3364, %v3300, %v3429
    %v3494 = vsel %vm3365, %v3301, %v3430
    %v3495 = vsel %vm3366, %v3302, %v3431
    %v3496 = vsel %vm3367, %v3303, %v3432
    %v3497 = vsel %vm3368, %v3304, %v3433
    %v3498 = vsel %vm3369, %v3305, %v3434
    %v3499 = vsel %vm3370, %v3306, %v3435
    %v3500 = vsel %vm3371, %v3307, %v3436
    %v3501 = vsel %vm3372, %v3308, %v3437
    %v3502 = vsel %vm3373, %v3309, %v3438
    %v3503 = vsel %vm3374, %v3310, %v3439
    %v3504 = vsel %vm3375, %v3311, %v3440
    %v3505 = vsel %vm3376, %v3312, %v3441
    %v3506 = vsel %vm3377, %v3313, %v3442
    %v3507 = vsel %vm3378, %v3314, %v3443
    %v3508 = vsel %vm3379, %v3315, %v3444
    %v3509 = vsel %vm3380, %v3316, %v3445
    %v3510 = vsel %vm3381, %v3317, %v3446
    %v3511 = vsel %vm3382, %v3318, %v3447
    %v3512 = vsel %vm3383, %v3319, %v3448
    %v3513 = vsel %vm3384, %v3320, %v3449
    %v3514 = vsel %vm3385, %v3321, %v3450
    %v3515 = vsel %vm3386, %v3322, %v3451
    %v3516 = vsel %vm3387, %v3323, %v3452
    %v3517 = vsel %vm3388, %v3324, %v3453
    %v3518 = vsel %vm3389, %v3325, %v3454
    %v3519 = vsel %vm3390, %v3326, %v3455
    %v3520 = vsel %vm3391, %v3327, %v3456
    %v3521 = vsel %vm3392, %v3328, %v3457
    %v3522 = vsel %vm3393, %v3329, %v3458
    %v3523 = vsel %vm3394, %v3330, %v3459
    %v3524 = vsel %vm3395, %v3331, %v3460
    %v3525 = vsel %vm3396, %v3332, %v3461
    %v3526 = vsel %vm3397, %v3333, %v3462
    %v3527 = vsel %vm3398, %v3334, %v3463
    %v3528 = vsel %vm3399, %v3335, %v3464
    %v3529 = vsel %vm3400, %v3336, %v3465
    %v3530 = vsel %vm3401, %v3337, %v3466
    %v3531 = vsel %vm3402, %v3338, %v3467
    %v3532 = vsel %vm3403, %v3339, %v3468
    %v3533 = vsel %vm3404, %v3340, %v3469
    %v3534 = vsel %vm3405, %v3341, %v3470
    %v3535 = vsel %vm3406, %v3342, %v3471
    %v3536 = vsel %vm3407, %v3343, %v3472
    %v3537 = vsel %vm3408, %v3344, %v3473
    %v3538 = vsel %vm3409, %v3345, %v3474
    %v3539 = vsel %vm3410, %v3346, %v3475
    %v3540 = vsel %vm3411, %v3347, %v3476
    %v3541 = vsel %vm3412, %v3348, %v3477
    %v3542 = vsel %vm3413, %v3349, %v3478
    %v3543 = vsel %vm3414, %v3350, %v3479
    %3544 = vst [vmem:[#allocation5] sm:$0xff] %v3480
    %3545 = vst [vmem:[#allocation5 + $0x8] sm:$0xff] %v3481
    %3546 = vst [vmem:[#allocation5 + $0x10] sm:$0xff] %v3482
    %3547 = vst [vmem:[#allocation5 + $0x18] sm:$0xff] %v3483
    %3548 = vst [vmem:[#allocation5 + $0x20] sm:$0xff] %v3484
    %3549 = vst [vmem:[#allocation5 + $0x28] sm:$0xff] %v3485
    %3550 = vst [vmem:[#allocation5 + $0x30] sm:$0xff] %v3486
    %3551 = vst [vmem:[#allocation5 + $0x38] sm:$0xff] %v3487
    %3552 = vst [vmem:[#allocation5 + $0x40] sm:$0xff] %v3488
    %3553 = vst [vmem:[#allocation5 + $0x48] sm:$0xff] %v3489
    %3554 = vst [vmem:[#allocation5 + $0x50] sm:$0xff] %v3490
    %3555 = vst [vmem:[#allocation5 + $0x58] sm:$0xff] %v3491
    %3556 = vst [vmem:[#allocation5 + $0x60] sm:$0xff] %v3492
    %3557 = vst [vmem:[#allocation5 + $0x68] sm:$0xff] %v3493
    %3558 = vst [vmem:[#allocation5 + $0x70] sm:$0xff] %v3494
    %3559 = vst [vmem:[#allocation5 + $0x78] sm:$0xff] %v3495
    %3560 = vst [vmem:[#allocation5 + $0x80] sm:$0xff] %v3496
    %3561 = vst [vmem:[#allocation5 + $0x88] sm:$0xff] %v3497
    %3562 = vst [vmem:[#allocation5 + $0x90] sm:$0xff] %v3498
    %3563 = vst [vmem:[#allocation5 + $0x98] sm:$0xff] %v3499
    %3564 = vst [vmem:[#allocation5 + $0xa0] sm:$0xff] %v3500
    %3565 = vst [vmem:[#allocation5 + $0xa8] sm:$0xff] %v3501
    %3566 = vst [vmem:[#allocation5 + $0xb0] sm:$0xff] %v3502
    %3567 = vst [vmem:[#allocation5 + $0xb8] sm:$0xff] %v3503
    %3568 = vst [vmem:[#allocation5 + $0xc0] sm:$0xff] %v3504
    %3569 = vst [vmem:[#allocation5 + $0xc8] sm:$0xff] %v3505
    %3570 = vst [vmem:[#allocation5 + $0xd0] sm:$0xff] %v3506
    %3571 = vst [vmem:[#allocation5 + $0xd8] sm:$0xff] %v3507
    %3572 = vst [vmem:[#allocation5 + $0xe0] sm:$0xff] %v3508
    %3573 = vst [vmem:[#allocation5 + $0xe8] sm:$0xff] %v3509
    %3574 = vst [vmem:[#allocation5 + $0xf0] sm:$0xff] %v3510
    %3575 = vst [vmem:[#allocation5 + $0xf8] sm:$0xff] %v3511
    %3576 = vst [vmem:[#allocation5 + $0x100] sm:$0xff] %v3512
    %3577 = vst [vmem:[#allocation5 + $0x108] sm:$0xff] %v3513
    %3578 = vst [vmem:[#allocation5 + $0x110] sm:$0xff] %v3514
    %3579 = vst [vmem:[#allocation5 + $0x118] sm:$0xff] %v3515
    %3580 = vst [vmem:[#allocation5 + $0x120] sm:$0xff] %v3516
    %3581 = vst [vmem:[#allocation5 + $0x128] sm:$0xff] %v3517
    %3582 = vst [vmem:[#allocation5 + $0x130] sm:$0xff] %v3518
    %3583 = vst [vmem:[#allocation5 + $0x138] sm:$0xff] %v3519
    %3584 = vst [vmem:[#allocation5 + $0x140] sm:$0xff] %v3520
    %3585 = vst [vmem:[#allocation5 + $0x148] sm:$0xff] %v3521
    %3586 = vst [vmem:[#allocation5 + $0x150] sm:$0xff] %v3522
    %3587 = vst [vmem:[#allocation5 + $0x158] sm:$0xff] %v3523
    %3588 = vst [vmem:[#allocation5 + $0x160] sm:$0xff] %v3524
    %3589 = vst [vmem:[#allocation5 + $0x168] sm:$0xff] %v3525
    %3590 = vst [vmem:[#allocation5 + $0x170] sm:$0xff] %v3526
    %3591 = vst [vmem:[#allocation5 + $0x178] sm:$0xff] %v3527
    %3592 = vst [vmem:[#allocation5 + $0x180] sm:$0xff] %v3528
    %3593 = vst [vmem:[#allocation5 + $0x188] sm:$0xff] %v3529
    %3594 = vst [vmem:[#allocation5 + $0x190] sm:$0xff] %v3530
    %3595 = vst [vmem:[#allocation5 + $0x198] sm:$0xff] %v3531
    %3596 = vst [vmem:[#allocation5 + $0x1a0] sm:$0xff] %v3532
    %3597 = vst [vmem:[#allocation5 + $0x1a8] sm:$0xff] %v3533
    %3598 = vst [vmem:[#allocation5 + $0x1b0] sm:$0xff] %v3534
    %3599 = vst [vmem:[#allocation5 + $0x1b8] sm:$0xff] %v3535
    %3600 = vst [vmem:[#allocation5 + $0x1c0] sm:$0xff] %v3536
    %3601 = vst [vmem:[#allocation5 + $0x1c8] sm:$0xff] %v3537
    %3602 = vst [vmem:[#allocation5 + $0x1d0] sm:$0xff] %v3538
    %3603 = vst [vmem:[#allocation5 + $0x1d8] sm:$0xff] %v3539
    %3604 = vst [vmem:[#allocation5 + $0x1e0] sm:$0xff] %v3540
    %3605 = vst [vmem:[#allocation5 + $0x1e8] sm:$0xff] %v3541
    %3606 = vst [vmem:[#allocation5 + $0x1f0] sm:$0xff] %v3542
    %3607 = vst [vmem:[#allocation5 + $0x1f8] sm:$0xff] %v3543
    // Predicated region
    $region42: #{tpu_custom_call.1} parent=1 // pred_check
      _
    $region43: #{tpu_custom_call.1} parent=1 // pred_check_branch
      %3609 = sbr.rel (0) target = $region45
    $region44: #{tpu_custom_call.1} parent=1 // pred_region
      %3611 = vsyncadd [#allocation3], 0
      %s3612 = sshll.u32 [#allocation5], 4
      %s3613 = int_to_ptr.vmem [resolvable:$true] %s3612
      %s3614 = sshll.u32 %s9, 4
      %s3615 = int_to_ptr.hbm [resolvable:$true] %s3614
      %3620 = dma.vmem_to_hbm [thread:$0]  %s3613, 8192, %s3615, [#allocation3], 128, 128, 8
    $region45: #{tpu_custom_call.1} parent=1 // pred_fallthru
      _
    // Predicated region
    $region46: #{tpu_custom_call.1} parent=1 // pred_check
      _
    $region47: #{tpu_custom_call.1} parent=1 // pred_check_branch
      %3622 = sbr.rel (0) target = $region49
    $region48: #{tpu_custom_call.1} parent=1 // pred_region
      %3624 = dma.done [#allocation3], 8192
    $region49: #{tpu_custom_call.1} parent=1 // pred_fallthru
      _
    %3625 = vsyncpa [#allocation3], 1
    %3626 = vsyncpa [#allocation4], 1

</llo_original>
